<compile_context>
chip_gen: v6e
topology: v6e:2x2x1
jax: 0.10.0
libtpu: 0.0.40
codegen_flags: <defaults>
</compile_context>

<pallas_src>
from typing import NamedTuple

import jax
import jax.numpy as jnp
from jax.experimental import pallas as pl
from jax.experimental.pallas import tpu as pltpu


# ----------------------------------------------------------------------------
# hardware / tiling / compiler-parameter helpers
# ----------------------------------------------------------------------------
def _physical_vmem_bytes():
    # Generation-aware VMEM capacity; conservative fallback = v7x per-TC VMEM.
    try:
        return int(pltpu.get_tpu_info().vmem_capacity_bytes)
    except Exception:
        return 64 * 2 ** 20


def _pick_batch_tile(b):
    # Blocks of [B, d] tensors put the batch on the sublane axis: the tile must
    # either be a multiple of 8 or cover the whole (small) batch.  Prefer
    # tiles that give >= 2 "parallel" batch blocks so both v7x TensorCores are
    # used.  (For B <= 8 the batch cannot be split without padding.)
    if b > 8 and b % 8 == 0:
        return 8
    return b


def _pick_hw_tile(hw, tb, d):
    # Target tile bytes: bigger tiles amortize the ~0.35 us/grid-step overhead
    # on 128-MiB-VMEM parts (v5e/v6e); keep smaller tiles on v7x (64 MiB).
    target_bytes = 4 * 2 ** 20 if _physical_vmem_bytes() >= 96 * 2 ** 20 else 2 * 2 ** 20
    target = max(8, target_bytes // max(1, tb * d * 4))
    best = None
    t = 8
    while t <= min(hw, target):
        if hw % t == 0:
            best = t
        t += 8
    return best if best is not None else hw


def _vmem_limit_bytes(tb, thw, S, d):
    f32, bf16 = 4, 2
    tile = tb * thw * d
    # streamed, double-buffered blocks: k (bf16 in) + rv (bf16 out)
    streamed = 2 * 2 * tile * bf16
    # batch-row blocks (double-buffered): c, q, m, c_out, m_out, m_hat [tb,d];
    # cw [tb,S,d]; mask + cv [tb,S]; gate [tb,1]
    rows = 2 * (6 * tb * d + tb * S * d + 2 * tb * S + tb) * f32
    # weight blocks (double-buffered by default): 10 dxd bf16 + ~10 [1,d] f32
    weights = 2 * (10 * d * d * bf16 + 10 * d * f32)
    # VMEM scratch + in-body f32 temporaries (convk, ki, I, I_, ra_in, softmax)
    scratch = 2 * tb * d * f32
    temps = 8 * tile * f32
    est = streamed + rows + weights + scratch + temps
    cap = max(_physical_vmem_bytes() - 16 * 2 ** 20, 32 * 2 ** 20)
    return int(min(max(int(1.5 * est), 32 * 2 ** 20), cap))


# ----------------------------------------------------------------------------
# One MAC step (Control + Read + Write), tiled over (batch, spatial)
# ----------------------------------------------------------------------------
def _mac_step_kernel(
    # per-block data
    c_ref, q_ref, cw_ref, mask_ref, m_ref, k_ref,
    # ControlUnit params
    w_cq_c_ref, w_cq_q_ref, b_cq_ref, w_ca_ref, b_ca_ref,
    # ReadUnit params
    w_lm_ref, b_lm_ref, w_ck_ref, b_ck_ref, w_ci_i_ref, w_ci_k_ref, b_ci_ref,
    w_cra_ref, b_cra_ref,
    # WriteUnit params
    w_wm_r_ref, w_wm_m_ref, b_wm_ref, w_wm2_ref, b_wm2_ref, w_wc_ref, b_wc_ref,
    # outputs
    c_out_ref, m_out_ref, cv_out_ref, rv_out_ref, gate_out_ref, mhat_out_ref,
    # scratch
    lm_scr, r_scr,
):
    tb, thw, d = k_ref.shape
    f32 = jnp.float32
    bf16 = jnp.bfloat16
    hw = pl.program_id(1)

    # ------------- ControlUnit (+ linear_m(m)): once per batch block ---------
    @pl.when(hw == 0)
    def _():
        c = c_ref[...]
        q = q_ref[...]
        cw = cw_ref[...]                                              # [tb, S, d]
        # linear_cq(cat([c, q])) with the concat split into two matmuls
        cq = (jnp.dot(c.astype(bf16), w_cq_c_ref[...], preferred_element_type=f32)
              + jnp.dot(q.astype(bf16), w_cq_q_ref[...], preferred_element_type=f32)
              + b_cq_ref[...])
        prod = cq[:, None, :] * cw                                    # [tb, S, d]
        # linear_ca (out_features=1): VPU multiply + lane reduce
        ca = jnp.sum(prod * w_ca_ref[...], axis=-1) + b_ca_ref[0, 0]  # [tb, S]
        # mask_tensor(..., -inf) with a finite sentinel so an all-padded row
        # cannot produce (-inf) - (-inf) = NaN inside exp.
        ca = jnp.where(mask_ref[...] > 0.5, ca, f32(-1e30))
        ca = ca - jnp.max(ca, axis=1, keepdims=True)
        e = jnp.exp(ca)
        cv = e * pl.reciprocal(jnp.sum(e, axis=1, keepdims=True), approx=True)
        # At production S (~30+, d>=512) switch this contraction to an MXU
        # einsum ('bs,bsd->bd'); at demo S=8 the VPU/XLU path is cheaper.
        c_new = jnp.sum(cv[:, :, None] * cw, axis=1)                  # [tb, d]
        c_out_ref[...] = c_new
        cv_out_ref[...] = cv
        # ReadUnit's linear_m(m) is spatial-invariant: compute once, stash.
        lm_scr[...] = (jnp.dot(m_ref[...].astype(bf16), w_lm_ref[...],
                               preferred_element_type=f32) + b_lm_ref[...])
        r_scr[...] = jnp.zeros_like(r_scr)

    # ------------- ReadUnit: streamed over spatial tiles ---------------------
    c_new = c_out_ref[...]                                            # resident output block
    lm = lm_scr[...]
    k_t = k_ref[...]                                                  # [tb, thw, d] (bf16)
    kb = k_t.reshape(tb * thw, d).astype(bf16)
    # conv_k(k) and the k-half of conv_I(cat([I, k])) are RECOMPUTED here on
    # the (otherwise idle) MXU rather than streamed from HBM: in the mem-bound
    # regime this trades free FLOPs for ~8 B/elem of per-step HBM traffic.
    convk = jnp.dot(kb, w_ck_ref[...], preferred_element_type=f32) + b_ck_ref[...]
    ki = jnp.dot(kb, w_ci_k_ref[...], preferred_element_type=f32) + b_ci_ref[...]
    I = (lm[:, None, :] * convk.reshape(tb, thw, d)).reshape(tb * thw, d)
    # conv_I(cat([I, k])) = I @ W_I + (k @ W_k + b)
    I_ = jnp.dot(I.astype(bf16), w_ci_i_ref[...], preferred_element_type=f32) + ki
    ra_in = (I_.reshape(tb, thw, d) * c_new[:, None, :]).reshape(tb * thw, d)
    ra = (jnp.dot(ra_in.astype(bf16), w_cra_ref[...], preferred_element_type=f32)
          + b_cra_ref[...])
    # nn.Softmax2d == per-location channel softmax (kept in f32; on v6e/v7x a
    # bf16 exp path would also be valid and halves VPU/EUP work).
    ra = ra - jnp.max(ra, axis=-1, keepdims=True)
    e = jnp.exp(ra)
    rv = e * pl.reciprocal(jnp.sum(e, axis=-1, keepdims=True), approx=True)
    rv3 = rv.reshape(tb, thw, d)
    rv_out_ref[...] = rv3.astype(rv_out_ref.dtype)                    # bf16 out
    # partial r = (rv * k).sum over this spatial tile, accumulated in f32
    r_scr[...] += jnp.sum(rv3 * k_t.astype(f32), axis=1)

    # ------------- WriteUnit: once per batch block, after the last tile ------
    @pl.when(hw == pl.num_programs(1) - 1)
    def _():
        r = r_scr[...]
        m = m_ref[...]
        c_fin = c_out_ref[...]
        # linear_m(cat([r, m])) with the concat split into two matmuls
        m_prev = (jnp.dot(r.astype(bf16), w_wm_r_ref[...], preferred_element_type=f32)
                  + jnp.dot(m.astype(bf16), w_wm_m_ref[...], preferred_element_type=f32)
                  + b_wm_ref[...])
        m_hat = jnp.dot(m_prev.astype(bf16), w_wm2_ref[...],
                        preferred_element_type=f32) + b_wm2_ref[...]
        # linear_c (out_features=1): VPU multiply + lane reduce; sigmoid in f32
        gate = jax.nn.sigmoid(
            jnp.sum(c_fin * w_wc_ref[...], axis=-1, keepdims=True) + b_wc_ref[0, 0])
        m_out_ref[...] = gate * m + (1.0 - gate) * m_hat
        gate_out_ref[...] = gate
        mhat_out_ref[...] = m_hat


# ----------------------------------------------------------------------------
# Python wrappers
# ----------------------------------------------------------------------------
class KnowledgePre(NamedTuple):
    k_cl: jax.Array     # [B, HW, d] channel-last knowledge base (bf16)
    hw_shape: tuple     # (H, W)


def precompute_knowledge(k_nchw, *, dtype=jnp.bfloat16):
    """Step-invariant work: NCHW -> channel-last layout + bf16 cast.

    A multi-step MAC rollout should call this ONCE per image and reuse the
    result for every mac_cell_step (removes the per-step transpose HBM round
    trip and halves the streamed knowledge-base bytes)."""
    B, d, H, W = k_nchw.shape
    k_cl = jnp.transpose(k_nchw, (0, 2, 3, 1)).reshape(B, H * W, d).astype(dtype)
    return KnowledgePre(k_cl, (H, W))


def mac_cell_step(params, c, m, kpre, q, cw, mask, cs=(), ms=(),
                  *, batch_tile=None, hw_tile=None, rv_nchw=False):
    """One MAC step given the precomputed channel-last knowledge base."""
    k_cl, (H, W) = kpre
    B, HW, d = k_cl.shape
    S = cw.shape[1]

    tb = batch_tile or _pick_batch_tile(B)
    thw = hw_tile or _pick_hw_tile(HW, tb, d)
    assert B % tb == 0 and HW % thw == 0, (B, tb, HW, thw)
    nb, nhw = B // tb, HW // thw

    row = lambda b, h: (b, 0)
    row3 = lambda b, h: (b, 0, 0)
    tile3 = lambda b, h: (b, h, 0)
    const2 = lambda b, h: (0, 0)
    smem_scalar = pl.BlockSpec(memory_space=pltpu.MemorySpace.SMEM)

    in_specs = [
        pl.BlockSpec((tb, d), row),           # c
        pl.BlockSpec((tb, d), row),           # q
        pl.BlockSpec((tb, S, d), row3),       # cw
        pl.BlockSpec((tb, S), row),           # mask
        pl.BlockSpec((tb, d), row),           # m
        pl.BlockSpec((tb, thw, d), tile3),    # k (channel-last, bf16)
        pl.BlockSpec((d, d), const2),         # w_cq_c
        pl.BlockSpec((d, d), const2),         # w_cq_q
        pl.BlockSpec((1, d), const2),         # b_cq
        pl.BlockSpec((1, d), const2),         # w_ca row vector
        smem_scalar,                          # b_ca (scalar, SMEM)
        pl.BlockSpec((d, d), const2),         # w_lm
        pl.BlockSpec((1, d), const2),         # b_lm
        pl.BlockSpec((d, d), const2),         # w_ck
        pl.BlockSpec((1, d), const2),         # b_ck
        pl.BlockSpec((d, d), const2),         # w_cI_I
        pl.BlockSpec((d, d), const2),         # w_cI_k
        pl.BlockSpec((1, d), const2),         # b_cI
        pl.BlockSpec((d, d), const2),         # w_cra
        pl.BlockSpec((1, d), const2),         # b_cra
        pl.BlockSpec((d, d), const2),         # w_wm_r
        pl.BlockSpec((d, d), const2),         # w_wm_m
        pl.BlockSpec((1, d), const2),         # b_wm
        pl.BlockSpec((d, d), const2),         # w_wm2
        pl.BlockSpec((1, d), const2),         # b_wm2
        pl.BlockSpec((1, d), const2),         # w_wc row vector
        smem_scalar,                          # b_wc (scalar, SMEM)
    ]
    out_specs = (
        pl.BlockSpec((tb, d), row),           # c_new
        pl.BlockSpec((tb, d), row),           # m_new
        pl.BlockSpec((tb, S), row),           # cv
        pl.BlockSpec((tb, thw, d), tile3),    # rv (channel-last, bf16)
        pl.BlockSpec((tb, 1), row),           # sigmoid gate
        pl.BlockSpec((tb, d), row),           # m_hat (pre-gate candidate)
    )
    out_shapes = (
        jax.ShapeDtypeStruct((B, d), jnp.float32),
        jax.ShapeDtypeStruct((B, d), jnp.float32),
        jax.ShapeDtypeStruct((B, S), jnp.float32),
        jax.ShapeDtypeStruct((B, HW, d), jnp.bfloat16),
        jax.ShapeDtypeStruct((B, 1), jnp.float32),
        jax.ShapeDtypeStruct((B, d), jnp.float32),
    )

    c_new, m_new, cv, rv, gate, m_hat = pl.pallas_call(
        _mac_step_kernel,
        grid=(nb, nhw),
        in_specs=in_specs,
        out_specs=out_specs,
        out_shape=out_shapes,
        scratch_shapes=[pltpu.VMEM((tb, d), jnp.float32),   # linear_m(m)
                        pltpu.VMEM((tb, d), jnp.float32)],  # r accumulator
        compiler_params=pltpu.CompilerParams(
            dimension_semantics=("parallel", "arbitrary"),
            vmem_limit_bytes=_vmem_limit_bytes(tb, thw, S, d)),
    )(c, q, cw, mask, m, k_cl,
      params["w_cq_c"], params["w_cq_q"], params["b_cq"], params["w_ca"], params["b_ca"],
      params["w_lm"], params["b_lm"], params["w_ck"], params["b_ck"],
      params["w_cI_I"], params["w_cI_k"], params["b_cI"], params["w_cra"], params["b_cra"],
      params["w_wm_r"], params["w_wm_m"], params["b_wm"], params["w_wm2"], params["b_wm2"],
      params["w_wc"], params["b_wc"])

    if cs and ms:
        # WriteUnit prior-step self-attention branch (tiny, variable-length
        # list of previous steps; plain-JAX glue outside the kernel).
        cs_s = jnp.stack(list(cs))                         # [T, B, d]
        ms_s = jnp.stack(list(ms))                         # [T, B, d]
        sa_logit = jnp.einsum("tbd,do->tbo",
                              cs_s * gate[None], params["w_sa"]) + params["b_sa"]
        sa = jax.nn.softmax(sa_logit, axis=0)              # softmax over steps
        m_sa = jnp.sum(sa * ms_s, axis=0)                  # [B, d]
        m_hat = m_hat + m_sa @ params["w_s"]               # linear_s (no bias)
        m_new = gate * m + (1.0 - gate) * m_hat

    cv = cv[:, :, None]                                    # match torch [B, S, 1]
    if rv_nchw:
        # Torch layout parity only; for rollouts keep rv channel-last/bf16 to
        # avoid an extra full HBM read+write of pure layout plumbing per step.
        rv = jnp.transpose(rv.reshape(B, H, W, d), (0, 3, 1, 2)).astype(jnp.float32)
    return c_new, m_new, cv, rv


def mac_cell(params, c, m, k_nchw, q, cw, mask, cs=(), ms=(),
             *, batch_tile=None, hw_tile=None):
    """Drop-in MACCell.forward (torch conventions: k is NCHW, rv returned NCHW).
    For a multi-step rollout prefer precompute_knowledge() once +
    mac_cell_step(..., rv_nchw=False) per step."""
    kpre = precompute_knowledge(k_nchw)
    return mac_cell_step(params, c, m, kpre, q, cw, mask, cs, ms,
                         batch_tile=batch_tile, hw_tile=hw_tile, rv_nchw=True)


# ----------------------------------------------------------------------------
# Parameters (Linear weights stored [in, out]; concat weights pre-split;
# MXU weights in bf16, biases / row-vectors in f32)
# ----------------------------------------------------------------------------
def init_params(key, d):
    keys = jax.random.split(key, 14)
    f32, bf16 = jnp.float32, jnp.bfloat16

    def lin(k, fan_in, fan_out, dtype=bf16):
        w = jax.random.normal(k, (fan_in, fan_out), f32) / jnp.sqrt(jnp.float32(fan_in))
        return w.astype(dtype)

    p = {}
    # ControlUnit: linear_cq(2d->d) split into the c / q halves
    p["w_cq_c"] = lin(keys[0], d, d)
    p["w_cq_q"] = lin(keys[1], d, d)
    p["b_cq"] = jnp.zeros((1, d), f32)
    # linear_ca (out=1) stored as a [1, d] row for the VPU lane reduction
    p["w_ca"] = lin(keys[2], d, 1, f32).reshape(1, d)
    p["b_ca"] = jnp.zeros((1, 1), f32)
    # ReadUnit (1x1 convs as [in, out] matrices); conv_I(2d->d) split into I / k halves
    p["w_lm"] = lin(keys[3], d, d);   p["b_lm"] = jnp.zeros((1, d), f32)
    p["w_ck"] = lin(keys[4], d, d);   p["b_ck"] = jnp.zeros((1, d), f32)
    p["w_cI_I"] = lin(keys[5], d, d)
    p["w_cI_k"] = lin(keys[6], d, d)
    p["b_cI"] = jnp.zeros((1, d), f32)
    p["w_cra"] = lin(keys[7], d, d);  p["b_cra"] = jnp.zeros((1, d), f32)
    # WriteUnit: linear_m(2d->d) split into r / m halves
    p["w_wm_r"] = lin(keys[8], d, d)
    p["w_wm_m"] = lin(keys[9], d, d)
    p["b_wm"] = jnp.zeros((1, d), f32)
    p["w_wm2"] = lin(keys[10], d, d); p["b_wm2"] = jnp.zeros((1, d), f32)
    p["w_wc"] = lin(keys[11], d, 1, f32).reshape(1, d)
    p["b_wc"] = jnp.ones((1, 1), f32)              # torch: linear_c.bias.data.fill_(1)
    # prior-step self-attention branch (plain-JAX glue)
    p["w_sa"] = lin(keys[12], d, 1, f32); p["b_sa"] = jnp.zeros((1,), f32)
    p["w_s"] = lin(keys[13], d, d, f32)            # linear_s, no bias
    return p


if __name__ == "__main__":
    B, d, S, H, W = 2, 32, 8, 4, 4
    key = jax.random.PRNGKey(0)
    kp, kc, km, kk, kq, kcw = jax.random.split(key, 6)
    params = init_params(kp, d)

    c0 = jax.random.normal(kc, (B, d), jnp.float32)            # control state
    m0 = jax.random.normal(km, (B, d), jnp.float32)            # memory state
    k_nchw = jax.random.normal(kk, (B, d, H, W), jnp.float32)  # knowledge base (NCHW)
    q = jax.random.normal(kq, (B, d), jnp.float32)             # question vector
    cw = jax.random.normal(kcw, (B, S, d), jnp.float32)        # contextual words
    mask = jnp.array([[1, 1, 1, 1, 1, 1, 0, 0],
                      [1, 1, 1, 1, 1, 1, 1, 1]], jnp.float32)  # 1=valid, 0=pad

    # Drop-in MACCell.forward.  hw_tile=8 -> 2 spatial grid steps, exercising
    # the streamed r-accumulation.  cs=ms=[] skips the self-attention branch,
    # like torch's `if cs and ms:` test.
    c1, m1, cv, rv = mac_cell(params, c0, m0, k_nchw, q, cw, mask,
                              cs=[], ms=[], hw_tile=8)
    jax.block_until_ready((c1, m1, cv, rv))
    assert c1.shape == (B, d) and m1.shape == (B, d)
    assert cv.shape == (B, S, 1) and rv.shape == (B, d, H, W)
    assert bool(jnp.all(jnp.isfinite(m1))) and bool(jnp.all(jnp.isfinite(rv)))

    # Rollout-style usage: layout/cast hoisted once, rv kept channel-last bf16.
    kpre = precompute_knowledge(params_or_k := k_nchw) if False else precompute_knowledge(k_nchw)
    c2, m2, cv2, rv2 = mac_cell_step(params, c1, m1, kpre, q, cw, mask,
                                     cs=[c1], ms=[m1], hw_tile=8)
    jax.block_until_ready((c2, m2, cv2, rv2))
    assert rv2.shape == (B, H * W, d) and rv2.dtype == jnp.bfloat16
    assert bool(jnp.all(jnp.isfinite(m2)))
    print("KERNEL_OK")
</pallas_src>

<mosaic_0001>
module attributes {stable_mosaic.version = 11 : i64} {
  func.func @_mac_step_kernel(%arg0: i32, %arg1: i32, %arg2: memref<2x32xf32, #tpu.memory_space<vmem>>, %arg3: memref<2x32xf32, #tpu.memory_space<vmem>>, %arg4: memref<2x8x32xf32, #tpu.memory_space<vmem>>, %arg5: memref<2x8xf32, #tpu.memory_space<vmem>>, %arg6: memref<2x32xf32, #tpu.memory_space<vmem>>, %arg7: memref<2x8x32xbf16, #tpu.memory_space<vmem>>, %arg8: memref<32x32xbf16, #tpu.memory_space<vmem>>, %arg9: memref<32x32xbf16, #tpu.memory_space<vmem>>, %arg10: memref<1x32xf32, #tpu.memory_space<vmem>>, %arg11: memref<1x32xf32, #tpu.memory_space<vmem>>, %arg12: memref<1x1xf32, #tpu.memory_space<smem>>, %arg13: memref<32x32xbf16, #tpu.memory_space<vmem>>, %arg14: memref<1x32xf32, #tpu.memory_space<vmem>>, %arg15: memref<32x32xbf16, #tpu.memory_space<vmem>>, %arg16: memref<1x32xf32, #tpu.memory_space<vmem>>, %arg17: memref<32x32xbf16, #tpu.memory_space<vmem>>, %arg18: memref<32x32xbf16, #tpu.memory_space<vmem>>, %arg19: memref<1x32xf32, #tpu.memory_space<vmem>>, %arg20: memref<32x32xbf16, #tpu.memory_space<vmem>>, %arg21: memref<1x32xf32, #tpu.memory_space<vmem>>, %arg22: memref<32x32xbf16, #tpu.memory_space<vmem>>, %arg23: memref<32x32xbf16, #tpu.memory_space<vmem>>, %arg24: memref<1x32xf32, #tpu.memory_space<vmem>>, %arg25: memref<32x32xbf16, #tpu.memory_space<vmem>>, %arg26: memref<1x32xf32, #tpu.memory_space<vmem>>, %arg27: memref<1x32xf32, #tpu.memory_space<vmem>>, %arg28: memref<1x1xf32, #tpu.memory_space<smem>>, %arg29: memref<2x32xf32, #tpu.memory_space<vmem>>, %arg30: memref<2x32xf32, #tpu.memory_space<vmem>>, %arg31: memref<2x8xf32, #tpu.memory_space<vmem>>, %arg32: memref<2x8x32xbf16, #tpu.memory_space<vmem>>, %arg33: memref<2x1xf32, #tpu.memory_space<vmem>>, %arg34: memref<2x32xf32, #tpu.memory_space<vmem>>, %arg35: memref<2x32xf32, #tpu.memory_space<vmem>>, %arg36: memref<2x32xf32, #tpu.memory_space<vmem>>) attributes {dimension_semantics = [#tpu.dimension_semantics<parallel>, #tpu.dimension_semantics<arbitrary>], iteration_bounds = array<i64: 1, 2>, scalar_prefetch = 0 : i64, scratch_operands = 2 : i64, tpu.core_type = #tpu.core_type<tc>, window_params = [{transform_indices = @transform_0, window_bounds = array<i64: 2, 32>}, {transform_indices = @transform_1, window_bounds = array<i64: 2, 32>}, {transform_indices = @transform_2, window_bounds = array<i64: 2, 8, 32>}, {transform_indices = @transform_3, window_bounds = array<i64: 2, 8>}, {transform_indices = @transform_4, window_bounds = array<i64: 2, 32>}, {transform_indices = @transform_5, window_bounds = array<i64: 2, 8, 32>}, {pipeline_mode = #tpu.pipeline_mode<synchronous>, transform_indices = @transform_6, window_bounds = array<i64: 32, 32>}, {pipeline_mode = #tpu.pipeline_mode<synchronous>, transform_indices = @transform_7, window_bounds = array<i64: 32, 32>}, {pipeline_mode = #tpu.pipeline_mode<synchronous>, transform_indices = @transform_8, window_bounds = array<i64: 1, 32>}, {pipeline_mode = #tpu.pipeline_mode<synchronous>, transform_indices = @transform_9, window_bounds = array<i64: 1, 32>}, {transform_indices = @transform_10, window_bounds = array<i64: 1, 1>}, {pipeline_mode = #tpu.pipeline_mode<synchronous>, transform_indices = @transform_11, window_bounds = array<i64: 32, 32>}, {pipeline_mode = #tpu.pipeline_mode<synchronous>, transform_indices = @transform_12, window_bounds = array<i64: 1, 32>}, {pipeline_mode = #tpu.pipeline_mode<synchronous>, transform_indices = @transform_13, window_bounds = array<i64: 32, 32>}, {pipeline_mode = #tpu.pipeline_mode<synchronous>, transform_indices = @transform_14, window_bounds = array<i64: 1, 32>}, {pipeline_mode = #tpu.pipeline_mode<synchronous>, transform_indices = @transform_15, window_bounds = array<i64: 32, 32>}, {pipeline_mode = #tpu.pipeline_mode<synchronous>, transform_indices = @transform_16, window_bounds = array<i64: 32, 32>}, {pipeline_mode = #tpu.pipeline_mode<synchronous>, transform_indices = @transform_17, window_bounds = array<i64: 1, 32>}, {pipeline_mode = #tpu.pipeline_mode<synchronous>, transform_indices = @transform_18, window_bounds = array<i64: 32, 32>}, {pipeline_mode = #tpu.pipeline_mode<synchronous>, transform_indices = @transform_19, window_bounds = array<i64: 1, 32>}, {pipeline_mode = #tpu.pipeline_mode<synchronous>, transform_indices = @transform_20, window_bounds = array<i64: 32, 32>}, {pipeline_mode = #tpu.pipeline_mode<synchronous>, transform_indices = @transform_21, window_bounds = array<i64: 32, 32>}, {pipeline_mode = #tpu.pipeline_mode<synchronous>, transform_indices = @transform_22, window_bounds = array<i64: 1, 32>}, {pipeline_mode = #tpu.pipeline_mode<synchronous>, transform_indices = @transform_23, window_bounds = array<i64: 32, 32>}, {pipeline_mode = #tpu.pipeline_mode<synchronous>, transform_indices = @transform_24, window_bounds = array<i64: 1, 32>}, {pipeline_mode = #tpu.pipeline_mode<synchronous>, transform_indices = @transform_25, window_bounds = array<i64: 1, 32>}, {transform_indices = @transform_26, window_bounds = array<i64: 1, 1>}, {transform_indices = @transform_27, window_bounds = array<i64: 2, 32>}, {transform_indices = @transform_28, window_bounds = array<i64: 2, 32>}, {transform_indices = @transform_29, window_bounds = array<i64: 2, 8>}, {transform_indices = @transform_30, window_bounds = array<i64: 2, 8, 32>}, {transform_indices = @transform_31, window_bounds = array<i64: 2, 1>}, {transform_indices = @transform_32, window_bounds = array<i64: 2, 32>}]} {
    %c0_i32 = arith.constant 0 : i32
    %0 = arith.cmpi eq, %arg1, %c0_i32 : i32
    %1 = arith.extui %0 : i1 to i32
    %c0_i32_0 = arith.constant 0 : i32
    %2 = arith.cmpi ne, %1, %c0_i32_0 : i32
    scf.if %2 {
      %c0_35 = arith.constant 0 : index
      %c0_36 = arith.constant 0 : index
      %59 = vector.load %arg2[%c0_35, %c0_36] : memref<2x32xf32, #tpu.memory_space<vmem>>, vector<2x32xf32>
      %c0_37 = arith.constant 0 : index
      %c0_38 = arith.constant 0 : index
      %60 = vector.load %arg3[%c0_37, %c0_38] : memref<2x32xf32, #tpu.memory_space<vmem>>, vector<2x32xf32>
      %c0_39 = arith.constant 0 : index
      %c0_40 = arith.constant 0 : index
      %c0_41 = arith.constant 0 : index
      %61 = vector.load %arg4[%c0_39, %c0_40, %c0_41] : memref<2x8x32xf32, #tpu.memory_space<vmem>>, vector<2x8x32xf32>
      %62 = arith.truncf %59 : vector<2x32xf32> to vector<2x32xbf16>
      %c0_42 = arith.constant 0 : index
      %c0_43 = arith.constant 0 : index
      %63 = vector.load %arg8[%c0_42, %c0_43] : memref<32x32xbf16, #tpu.memory_space<vmem>>, vector<32x32xbf16>
      %cst_44 = arith.constant dense<0.000000e+00> : vector<2x32xf32>
      %64 = tpu.matmul %62, %63, %cst_44 {dimension_numbers = #tpu.dot_dimension_numbers<[1], [0], [0], [1], [0, 0, 1, 1], [], []>} : vector<2x32xbf16>, vector<32x32xbf16>, vector<2x32xf32> -> vector<2x32xf32>
      %65 = arith.truncf %60 : vector<2x32xf32> to vector<2x32xbf16>
      %c0_45 = arith.constant 0 : index
      %c0_46 = arith.constant 0 : index
      %66 = vector.load %arg9[%c0_45, %c0_46] : memref<32x32xbf16, #tpu.memory_space<vmem>>, vector<32x32xbf16>
      %cst_47 = arith.constant dense<0.000000e+00> : vector<2x32xf32>
      %67 = tpu.matmul %65, %66, %cst_47 {dimension_numbers = #tpu.dot_dimension_numbers<[1], [0], [0], [1], [0, 0, 1, 1], [], []>} : vector<2x32xbf16>, vector<32x32xbf16>, vector<2x32xf32> -> vector<2x32xf32>
      %68 = arith.addf %64, %67 : vector<2x32xf32>
      %c0_48 = arith.constant 0 : index
      %c0_49 = arith.constant 0 : index
      %69 = vector.load %arg10[%c0_48, %c0_49] : memref<1x32xf32, #tpu.memory_space<vmem>>, vector<1x32xf32>
      %70 = vector.broadcast %69 : vector<1x32xf32> to vector<2x32xf32>
      %71 = arith.addf %68, %70 : vector<2x32xf32>
      %72 = vector.shape_cast %71 : vector<2x32xf32> to vector<2x1x32xf32>
      %73 = vector.broadcast %72 : vector<2x1x32xf32> to vector<2x8x32xf32>
      %74 = arith.mulf %73, %61 : vector<2x8x32xf32>
      %c0_50 = arith.constant 0 : index
      %c0_51 = arith.constant 0 : index
      %75 = vector.load %arg11[%c0_50, %c0_51] : memref<1x32xf32, #tpu.memory_space<vmem>>, vector<1x32xf32>
      %76 = vector.shape_cast %75 : vector<1x32xf32> to vector<1x1x32xf32>
      %77 = vector.broadcast %76 : vector<1x1x32xf32> to vector<2x8x32xf32>
      %78 = arith.mulf %74, %77 : vector<2x8x32xf32>
      %cst_52 = arith.constant dense<0.000000e+00> : vector<2x8xf32>
      %79 = vector.multi_reduction <add>, %78, %cst_52 [2] : vector<2x8x32xf32> to vector<2x8xf32>
      %c0_53 = arith.constant 0 : index
      %c0_54 = arith.constant 0 : index
      %80 = memref.load %arg12[%c0_53, %c0_54] : memref<1x1xf32, #tpu.memory_space<smem>>
      %81 = vector.broadcast %80 : f32 to vector<2x8xf32>
      %82 = arith.addf %79, %81 : vector<2x8xf32>
      %c0_55 = arith.constant 0 : index
      %c0_56 = arith.constant 0 : index
      %83 = vector.load %arg5[%c0_55, %c0_56] : memref<2x8xf32, #tpu.memory_space<vmem>>, vector<2x8xf32>
      %cst_57 = arith.constant 5.000000e-01 : f32
      %84 = vector.broadcast %cst_57 : f32 to vector<2x8xf32>
      %85 = arith.cmpf ogt, %83, %84 : vector<2x8xf32>
      %cst_58 = arith.constant -1.000000e+30 : f32
      %86 = vector.broadcast %cst_58 : f32 to vector<2x8xf32>
      %87 = arith.select %85, %82, %86 : vector<2x8xi1>, vector<2x8xf32>
      %cst_59 = arith.constant dense<0xFF800000> : vector<2xf32>
      %88 = vector.multi_reduction <maximumf>, %87, %cst_59 [1] : vector<2x8xf32> to vector<2xf32>
      %89 = vector.shape_cast %88 : vector<2xf32> to vector<2x1xf32>
      %90 = vector.broadcast %89 : vector<2x1xf32> to vector<2x8xf32>
      %91 = arith.subf %87, %90 : vector<2x8xf32>
      %92 = math.exp %91 : vector<2x8xf32>
      %cst_60 = arith.constant dense<0.000000e+00> : vector<2xf32>
      %93 = vector.multi_reduction <add>, %92, %cst_60 [1] : vector<2x8xf32> to vector<2xf32>
      %94 = vector.shape_cast %93 : vector<2xf32> to vector<2x1xf32>
      %95 = tpu.reciprocal %94 {approx = true} : vector<2x1xf32> -> vector<2x1xf32>
      %96 = vector.broadcast %95 : vector<2x1xf32> to vector<2x8xf32>
      %97 = arith.mulf %92, %96 : vector<2x8xf32>
      %98 = vector.shape_cast %97 : vector<2x8xf32> to vector<2x8x1xf32>
      %99 = vector.broadcast %98 : vector<2x8x1xf32> to vector<2x8x32xf32>
      %100 = arith.mulf %99, %61 : vector<2x8x32xf32>
      %cst_61 = arith.constant dense<0.000000e+00> : vector<2x32xf32>
      %101 = vector.multi_reduction <add>, %100, %cst_61 [1] : vector<2x8x32xf32> to vector<2x32xf32>
      %c0_62 = arith.constant 0 : index
      %c0_63 = arith.constant 0 : index
      %102 = vector.load %arg29[%c0_62, %c0_63] : memref<2x32xf32, #tpu.memory_space<vmem>>, vector<2x32xf32>
      tpu.vector_store %arg29[%c0_62, %c0_63], %101 {strides = array<i32>} : memref<2x32xf32, #tpu.memory_space<vmem>>, vector<2x32xf32>,
      %c0_64 = arith.constant 0 : index
      %c0_65 = arith.constant 0 : index
      %103 = vector.load %arg31[%c0_64, %c0_65] : memref<2x8xf32, #tpu.memory_space<vmem>>, vector<2x8xf32>
      tpu.vector_store %arg31[%c0_64, %c0_65], %97 {strides = array<i32>} : memref<2x8xf32, #tpu.memory_space<vmem>>, vector<2x8xf32>,
      %c0_66 = arith.constant 0 : index
      %c0_67 = arith.constant 0 : index
      %104 = vector.load %arg6[%c0_66, %c0_67] : memref<2x32xf32, #tpu.memory_space<vmem>>, vector<2x32xf32>
      %105 = arith.truncf %104 : vector<2x32xf32> to vector<2x32xbf16>
      %c0_68 = arith.constant 0 : index
      %c0_69 = arith.constant 0 : index
      %106 = vector.load %arg13[%c0_68, %c0_69] : memref<32x32xbf16, #tpu.memory_space<vmem>>, vector<32x32xbf16>
      %cst_70 = arith.constant dense<0.000000e+00> : vector<2x32xf32>
      %107 = tpu.matmul %105, %106, %cst_70 {dimension_numbers = #tpu.dot_dimension_numbers<[1], [0], [0], [1], [0, 0, 1, 1], [], []>} : vector<2x32xbf16>, vector<32x32xbf16>, vector<2x32xf32> -> vector<2x32xf32>
      %c0_71 = arith.constant 0 : index
      %c0_72 = arith.constant 0 : index
      %108 = vector.load %arg14[%c0_71, %c0_72] : memref<1x32xf32, #tpu.memory_space<vmem>>, vector<1x32xf32>
      %109 = vector.broadcast %108 : vector<1x32xf32> to vector<2x32xf32>
      %110 = arith.addf %107, %109 : vector<2x32xf32>
      %c0_73 = arith.constant 0 : index
      %c0_74 = arith.constant 0 : index
      %111 = vector.load %arg35[%c0_73, %c0_74] : memref<2x32xf32, #tpu.memory_space<vmem>>, vector<2x32xf32>
      tpu.vector_store %arg35[%c0_73, %c0_74], %110 {strides = array<i32>} : memref<2x32xf32, #tpu.memory_space<vmem>>, vector<2x32xf32>,
      %cst_75 = arith.constant 0.000000e+00 : f32
      %112 = vector.broadcast %cst_75 : f32 to vector<2x32xf32>
      %c0_76 = arith.constant 0 : index
      %c0_77 = arith.constant 0 : index
      %113 = vector.load %arg36[%c0_76, %c0_77] : memref<2x32xf32, #tpu.memory_space<vmem>>, vector<2x32xf32>
      tpu.vector_store %arg36[%c0_76, %c0_77], %112 {strides = array<i32>} : memref<2x32xf32, #tpu.memory_space<vmem>>, vector<2x32xf32>,
    } else {
    }
    %c0 = arith.constant 0 : index
    %c0_1 = arith.constant 0 : index
    %3 = vector.load %arg29[%c0, %c0_1] : memref<2x32xf32, #tpu.memory_space<vmem>>, vector<2x32xf32>
    %c0_2 = arith.constant 0 : index
    %c0_3 = arith.constant 0 : index
    %4 = vector.load %arg35[%c0_2, %c0_3] : memref<2x32xf32, #tpu.memory_space<vmem>>, vector<2x32xf32>
    %c0_4 = arith.constant 0 : index
    %c0_5 = arith.constant 0 : index
    %c0_6 = arith.constant 0 : index
    %5 = vector.load %arg7[%c0_4, %c0_5, %c0_6] : memref<2x8x32xbf16, #tpu.memory_space<vmem>>, vector<2x8x32xbf16>
    %6 = vector.shape_cast %5 : vector<2x8x32xbf16> to vector<16x32xbf16>
    %c0_7 = arith.constant 0 : index
    %c0_8 = arith.constant 0 : index
    %7 = vector.load %arg15[%c0_7, %c0_8] : memref<32x32xbf16, #tpu.memory_space<vmem>>, vector<32x32xbf16>
    %cst = arith.constant dense<0.000000e+00> : vector<16x32xf32>
    %8 = tpu.matmul %6, %7, %cst {dimension_numbers = #tpu.dot_dimension_numbers<[1], [0], [0], [1], [0, 0, 1, 1], [], []>} : vector<16x32xbf16>, vector<32x32xbf16>, vector<16x32xf32> -> vector<16x32xf32>
    %c0_9 = arith.constant 0 : index
    %c0_10 = arith.constant 0 : index
    %9 = vector.load %arg16[%c0_9, %c0_10] : memref<1x32xf32, #tpu.memory_space<vmem>>, vector<1x32xf32>
    %10 = vector.broadcast %9 : vector<1x32xf32> to vector<16x32xf32>
    %11 = arith.addf %8, %10 : vector<16x32xf32>
    %c0_11 = arith.constant 0 : index
    %c0_12 = arith.constant 0 : index
    %12 = vector.load %arg18[%c0_11, %c0_12] : memref<32x32xbf16, #tpu.memory_space<vmem>>, vector<32x32xbf16>
    %cst_13 = arith.constant dense<0.000000e+00> : vector<16x32xf32>
    %13 = tpu.matmul %6, %12, %cst_13 {dimension_numbers = #tpu.dot_dimension_numbers<[1], [0], [0], [1], [0, 0, 1, 1], [], []>} : vector<16x32xbf16>, vector<32x32xbf16>, vector<16x32xf32> -> vector<16x32xf32>
    %c0_14 = arith.constant 0 : index
    %c0_15 = arith.constant 0 : index
    %14 = vector.load %arg19[%c0_14, %c0_15] : memref<1x32xf32, #tpu.memory_space<vmem>>, vector<1x32xf32>
    %15 = vector.broadcast %14 : vector<1x32xf32> to vector<16x32xf32>
    %16 = arith.addf %13, %15 : vector<16x32xf32>
    %17 = vector.shape_cast %4 : vector<2x32xf32> to vector<2x1x32xf32>
    %18 = vector.shape_cast %11 : vector<16x32xf32> to vector<2x8x32xf32>
    %19 = vector.broadcast %17 : vector<2x1x32xf32> to vector<2x8x32xf32>
    %20 = arith.mulf %19, %18 : vector<2x8x32xf32>
    %21 = vector.shape_cast %20 : vector<2x8x32xf32> to vector<16x32xf32>
    %22 = arith.truncf %21 : vector<16x32xf32> to vector<16x32xbf16>
    %c0_16 = arith.constant 0 : index
    %c0_17 = arith.constant 0 : index
    %23 = vector.load %arg17[%c0_16, %c0_17] : memref<32x32xbf16, #tpu.memory_space<vmem>>, vector<32x32xbf16>
    %cst_18 = arith.constant dense<0.000000e+00> : vector<16x32xf32>
    %24 = tpu.matmul %22, %23, %cst_18 {dimension_numbers = #tpu.dot_dimension_numbers<[1], [0], [0], [1], [0, 0, 1, 1], [], []>} : vector<16x32xbf16>, vector<32x32xbf16>, vector<16x32xf32> -> vector<16x32xf32>
    %25 = arith.addf %24, %16 : vector<16x32xf32>
    %26 = vector.shape_cast %25 : vector<16x32xf32> to vector<2x8x32xf32>
    %27 = vector.shape_cast %3 : vector<2x32xf32> to vector<2x1x32xf32>
    %28 = vector.broadcast %27 : vector<2x1x32xf32> to vector<2x8x32xf32>
    %29 = arith.mulf %26, %28 : vector<2x8x32xf32>
    %30 = vector.shape_cast %29 : vector<2x8x32xf32> to vector<16x32xf32>
    %31 = arith.truncf %30 : vector<16x32xf32> to vector<16x32xbf16>
    %c0_19 = arith.constant 0 : index
    %c0_20 = arith.constant 0 : index
    %32 = vector.load %arg20[%c0_19, %c0_20] : memref<32x32xbf16, #tpu.memory_space<vmem>>, vector<32x32xbf16>
    %cst_21 = arith.constant dense<0.000000e+00> : vector<16x32xf32>
    %33 = tpu.matmul %31, %32, %cst_21 {dimension_numbers = #tpu.dot_dimension_numbers<[1], [0], [0], [1], [0, 0, 1, 1], [], []>} : vector<16x32xbf16>, vector<32x32xbf16>, vector<16x32xf32> -> vector<16x32xf32>
    %c0_22 = arith.constant 0 : index
    %c0_23 = arith.constant 0 : index
    %34 = vector.load %arg21[%c0_22, %c0_23] : memref<1x32xf32, #tpu.memory_space<vmem>>, vector<1x32xf32>
    %35 = vector.broadcast %34 : vector<1x32xf32> to vector<16x32xf32>
    %36 = arith.addf %33, %35 : vector<16x32xf32>
    %cst_24 = arith.constant dense<0xFF800000> : vector<16xf32>
    %37 = vector.multi_reduction <maximumf>, %36, %cst_24 [1] : vector<16x32xf32> to vector<16xf32>
    %38 = vector.shape_cast %37 : vector<16xf32> to vector<16x1xf32>
    %39 = vector.broadcast %38 : vector<16x1xf32> to vector<16x32xf32>
    %40 = arith.subf %36, %39 : vector<16x32xf32>
    %41 = math.exp %40 : vector<16x32xf32>
    %cst_25 = arith.constant dense<0.000000e+00> : vector<16xf32>
    %42 = vector.multi_reduction <add>, %41, %cst_25 [1] : vector<16x32xf32> to vector<16xf32>
    %43 = vector.shape_cast %42 : vector<16xf32> to vector<16x1xf32>
    %44 = tpu.reciprocal %43 {approx = true} : vector<16x1xf32> -> vector<16x1xf32>
    %45 = vector.broadcast %44 : vector<16x1xf32> to vector<16x32xf32>
    %46 = arith.mulf %41, %45 : vector<16x32xf32>
    %47 = vector.shape_cast %46 : vector<16x32xf32> to vector<2x8x32xf32>
    %48 = arith.truncf %47 : vector<2x8x32xf32> to vector<2x8x32xbf16>
    %c0_26 = arith.constant 0 : index
    %c0_27 = arith.constant 0 : index
    %c0_28 = arith.constant 0 : index
    %49 = vector.load %arg32[%c0_26, %c0_27, %c0_28] : memref<2x8x32xbf16, #tpu.memory_space<vmem>>, vector<2x8x32xbf16>
    tpu.vector_store %arg32[%c0_26, %c0_27, %c0_28], %48 {strides = array<i32>} : memref<2x8x32xbf16, #tpu.memory_space<vmem>>, vector<2x8x32xbf16>,
    %c0_29 = arith.constant 0 : index
    %c0_30 = arith.constant 0 : index
    %50 = vector.load %arg36[%c0_29, %c0_30] : memref<2x32xf32, #tpu.memory_space<vmem>>, vector<2x32xf32>
    %51 = arith.extf %5 : vector<2x8x32xbf16> to vector<2x8x32xf32>
    %52 = arith.mulf %47, %51 : vector<2x8x32xf32>
    %cst_31 = arith.constant dense<0.000000e+00> : vector<2x32xf32>
    %53 = vector.multi_reduction <add>, %52, %cst_31 [1] : vector<2x8x32xf32> to vector<2x32xf32>
    %54 = arith.addf %50, %53 : vector<2x32xf32>
    %c0_32 = arith.constant 0 : index
    %c0_33 = arith.constant 0 : index
    %55 = vector.load %arg36[%c0_32, %c0_33] : memref<2x32xf32, #tpu.memory_space<vmem>>, vector<2x32xf32>
    tpu.vector_store %arg36[%c0_32, %c0_33], %54 {strides = array<i32>} : memref<2x32xf32, #tpu.memory_space<vmem>>, vector<2x32xf32>,
    %c1_i32 = arith.constant 1 : i32
    %56 = arith.cmpi eq, %arg1, %c1_i32 : i32
    %57 = arith.extui %56 : i1 to i32
    %c0_i32_34 = arith.constant 0 : i32
    %58 = arith.cmpi ne, %57, %c0_i32_34 : i32
    scf.if %58 {
      %c0_35 = arith.constant 0 : index
      %c0_36 = arith.constant 0 : index
      %59 = vector.load %arg36[%c0_35, %c0_36] : memref<2x32xf32, #tpu.memory_space<vmem>>, vector<2x32xf32>
      %c0_37 = arith.constant 0 : index
      %c0_38 = arith.constant 0 : index
      %60 = vector.load %arg6[%c0_37, %c0_38] : memref<2x32xf32, #tpu.memory_space<vmem>>, vector<2x32xf32>
      %c0_39 = arith.constant 0 : index
      %c0_40 = arith.constant 0 : index
      %61 = vector.load %arg29[%c0_39, %c0_40] : memref<2x32xf32, #tpu.memory_space<vmem>>, vector<2x32xf32>
      %62 = arith.truncf %59 : vector<2x32xf32> to vector<2x32xbf16>
      %c0_41 = arith.constant 0 : index
      %c0_42 = arith.constant 0 : index
      %63 = vector.load %arg22[%c0_41, %c0_42] : memref<32x32xbf16, #tpu.memory_space<vmem>>, vector<32x32xbf16>
      %cst_43 = arith.constant dense<0.000000e+00> : vector<2x32xf32>
      %64 = tpu.matmul %62, %63, %cst_43 {dimension_numbers = #tpu.dot_dimension_numbers<[1], [0], [0], [1], [0, 0, 1, 1], [], []>} : vector<2x32xbf16>, vector<32x32xbf16>, vector<2x32xf32> -> vector<2x32xf32>
      %65 = arith.truncf %60 : vector<2x32xf32> to vector<2x32xbf16>
      %c0_44 = arith.constant 0 : index
      %c0_45 = arith.constant 0 : index
      %66 = vector.load %arg23[%c0_44, %c0_45] : memref<32x32xbf16, #tpu.memory_space<vmem>>, vector<32x32xbf16>
      %cst_46 = arith.constant dense<0.000000e+00> : vector<2x32xf32>
      %67 = tpu.matmul %65, %66, %cst_46 {dimension_numbers = #tpu.dot_dimension_numbers<[1], [0], [0], [1], [0, 0, 1, 1], [], []>} : vector<2x32xbf16>, vector<32x32xbf16>, vector<2x32xf32> -> vector<2x32xf32>
      %68 = arith.addf %64, %67 : vector<2x32xf32>
      %c0_47 = arith.constant 0 : index
      %c0_48 = arith.constant 0 : index
      %69 = vector.load %arg24[%c0_47, %c0_48] : memref<1x32xf32, #tpu.memory_space<vmem>>, vector<1x32xf32>
      %70 = vector.broadcast %69 : vector<1x32xf32> to vector<2x32xf32>
      %71 = arith.addf %68, %70 : vector<2x32xf32>
      %72 = arith.truncf %71 : vector<2x32xf32> to vector<2x32xbf16>
      %c0_49 = arith.constant 0 : index
      %c0_50 = arith.constant 0 : index
      %73 = vector.load %arg25[%c0_49, %c0_50] : memref<32x32xbf16, #tpu.memory_space<vmem>>, vector<32x32xbf16>
      %cst_51 = arith.constant dense<0.000000e+00> : vector<2x32xf32>
      %74 = tpu.matmul %72, %73, %cst_51 {dimension_numbers = #tpu.dot_dimension_numbers<[1], [0], [0], [1], [0, 0, 1, 1], [], []>} : vector<2x32xbf16>, vector<32x32xbf16>, vector<2x32xf32> -> vector<2x32xf32>
      %c0_52 = arith.constant 0 : index
      %c0_53 = arith.constant 0 : index
      %75 = vector.load %arg26[%c0_52, %c0_53] : memref<1x32xf32, #tpu.memory_space<vmem>>, vector<1x32xf32>
      %76 = vector.broadcast %75 : vector<1x32xf32> to vector<2x32xf32>
      %77 = arith.addf %74, %76 : vector<2x32xf32>
      %c0_54 = arith.constant 0 : index
      %c0_55 = arith.constant 0 : index
      %78 = vector.load %arg27[%c0_54, %c0_55] : memref<1x32xf32, #tpu.memory_space<vmem>>, vector<1x32xf32>
      %79 = vector.broadcast %78 : vector<1x32xf32> to vector<2x32xf32>
      %80 = arith.mulf %61, %79 : vector<2x32xf32>
      %cst_56 = arith.constant dense<0.000000e+00> : vector<2xf32>
      %81 = vector.multi_reduction <add>, %80, %cst_56 [1] : vector<2x32xf32> to vector<2xf32>
      %82 = vector.shape_cast %81 : vector<2xf32> to vector<2x1xf32>
      %c0_57 = arith.constant 0 : index
      %c0_58 = arith.constant 0 : index
      %83 = memref.load %arg28[%c0_57, %c0_58] : memref<1x1xf32, #tpu.memory_space<smem>>
      %84 = vector.broadcast %83 : f32 to vector<2x1xf32>
      %85 = arith.addf %82, %84 : vector<2x1xf32>
      %86 = arith.negf %85 : vector<2x1xf32>
      %87 = math.exp %86 : vector<2x1xf32>
      %cst_59 = arith.constant 1.000000e+00 : f32
      %88 = vector.broadcast %cst_59 : f32 to vector<2x1xf32>
      %89 = arith.addf %88, %87 : vector<2x1xf32>
      %90 = arith.divf %88, %89 : vector<2x1xf32>
      %91 = vector.broadcast %90 : vector<2x1xf32> to vector<2x32xf32>
      %92 = arith.mulf %91, %60 : vector<2x32xf32>
      %cst_60 = arith.constant 1.000000e+00 : f32
      %93 = vector.broadcast %cst_60 : f32 to vector<2x1xf32>
      %94 = arith.subf %93, %90 : vector<2x1xf32>
      %95 = vector.broadcast %94 : vector<2x1xf32> to vector<2x32xf32>
      %96 = arith.mulf %95, %77 : vector<2x32xf32>
      %97 = arith.addf %92, %96 : vector<2x32xf32>
      %c0_61 = arith.constant 0 : index
      %c0_62 = arith.constant 0 : index
      %98 = vector.load %arg30[%c0_61, %c0_62] : memref<2x32xf32, #tpu.memory_space<vmem>>, vector<2x32xf32>
      tpu.vector_store %arg30[%c0_61, %c0_62], %97 {strides = array<i32>} : memref<2x32xf32, #tpu.memory_space<vmem>>, vector<2x32xf32>,
      %c0_63 = arith.constant 0 : index
      %c0_64 = arith.constant 0 : index
      %99 = vector.load %arg33[%c0_63, %c0_64] : memref<2x1xf32, #tpu.memory_space<vmem>>, vector<2x1xf32>
      tpu.vector_store %arg33[%c0_63, %c0_64], %90 {strides = array<i32>} : memref<2x1xf32, #tpu.memory_space<vmem>>, vector<2x1xf32>,
      %c0_65 = arith.constant 0 : index
      %c0_66 = arith.constant 0 : index
      %100 = vector.load %arg34[%c0_65, %c0_66] : memref<2x32xf32, #tpu.memory_space<vmem>>, vector<2x32xf32>
      tpu.vector_store %arg34[%c0_65, %c0_66], %77 {strides = array<i32>} : memref<2x32xf32, #tpu.memory_space<vmem>>, vector<2x32xf32>,
    } else {
    }
    return
  }
  func.func @transform_0(%arg0: i32, %arg1: i32) -> (i32, i32) {
    %c0_i32 = arith.constant 0 : i32
    %c0_i32_0 = arith.constant 0 : i32
    return %arg0, %c0_i32 : i32, i32
  }
  func.func @transform_1(%arg0: i32, %arg1: i32) -> (i32, i32) {
    %c0_i32 = arith.constant 0 : i32
    %c0_i32_0 = arith.constant 0 : i32
    return %arg0, %c0_i32 : i32, i32
  }
  func.func @transform_2(%arg0: i32, %arg1: i32) -> (i32, i32, i32) {
    %c0_i32 = arith.constant 0 : i32
    %c0_i32_0 = arith.constant 0 : i32
    %c0_i32_1 = arith.constant 0 : i32
    return %arg0, %c0_i32, %c0_i32_0 : i32, i32, i32
  }
  func.func @transform_3(%arg0: i32, %arg1: i32) -> (i32, i32) {
    %c0_i32 = arith.constant 0 : i32
    %c0_i32_0 = arith.constant 0 : i32
    return %arg0, %c0_i32 : i32, i32
  }
  func.func @transform_4(%arg0: i32, %arg1: i32) -> (i32, i32) {
    %c0_i32 = arith.constant 0 : i32
    %c0_i32_0 = arith.constant 0 : i32
    return %arg0, %c0_i32 : i32, i32
  }
  func.func @transform_5(%arg0: i32, %arg1: i32) -> (i32, i32, i32) {
    %c0_i32 = arith.constant 0 : i32
    %c0_i32_0 = arith.constant 0 : i32
    return %arg0, %arg1, %c0_i32 : i32, i32, i32
  }
  func.func @transform_6(%arg0: i32, %arg1: i32) -> (i32, i32) {
    %c0_i32 = arith.constant 0 : i32
    %c0_i32_0 = arith.constant 0 : i32
    %c0_i32_1 = arith.constant 0 : i32
    return %c0_i32, %c0_i32_0 : i32, i32
  }
  func.func @transform_7(%arg0: i32, %arg1: i32) -> (i32, i32) {
    %c0_i32 = arith.constant 0 : i32
    %c0_i32_0 = arith.constant 0 : i32
    %c0_i32_1 = arith.constant 0 : i32
    return %c0_i32, %c0_i32_0 : i32, i32
  }
  func.func @transform_8(%arg0: i32, %arg1: i32) -> (i32, i32) {
    %c0_i32 = arith.constant 0 : i32
    %c0_i32_0 = arith.constant 0 : i32
    %c0_i32_1 = arith.constant 0 : i32
    return %c0_i32, %c0_i32_0 : i32, i32
  }
  func.func @transform_9(%arg0: i32, %arg1: i32) -> (i32, i32) {
    %c0_i32 = arith.constant 0 : i32
    %c0_i32_0 = arith.constant 0 : i32
    %c0_i32_1 = arith.constant 0 : i32
    return %c0_i32, %c0_i32_0 : i32, i32
  }
  func.func @transform_10(%arg0: i32, %arg1: i32) -> (i32, i32) {
    %c0_i32 = arith.constant 0 : i32
    %c0_i32_0 = arith.constant 0 : i32
    %c0_i32_1 = arith.constant 0 : i32
    return %c0_i32, %c0_i32_0 : i32, i32
  }
  func.func @transform_11(%arg0: i32, %arg1: i32) -> (i32, i32) {
    %c0_i32 = arith.constant 0 : i32
    %c0_i32_0 = arith.constant 0 : i32
    %c0_i32_1 = arith.constant 0 : i32
    return %c0_i32, %c0_i32_0 : i32, i32
  }
  func.func @transform_12(%arg0: i32, %arg1: i32) -> (i32, i32) {
    %c0_i32 = arith.constant 0 : i32
    %c0_i32_0 = arith.constant 0 : i32
    %c0_i32_1 = arith.constant 0 : i32
    return %c0_i32, %c0_i32_0 : i32, i32
  }
  func.func @transform_13(%arg0: i32, %arg1: i32) -> (i32, i32) {
    %c0_i32 = arith.constant 0 : i32
    %c0_i32_0 = arith.constant 0 : i32
    %c0_i32_1 = arith.constant 0 : i32
    return %c0_i32, %c0_i32_0 : i32, i32
  }
  func.func @transform_14(%arg0: i32, %arg1: i32) -> (i32, i32) {
    %c0_i32 = arith.constant 0 : i32
    %c0_i32_0 = arith.constant 0 : i32
    %c0_i32_1 = arith.constant 0 : i32
    return %c0_i32, %c0_i32_0 : i32, i32
  }
  func.func @transform_15(%arg0: i32, %arg1: i32) -> (i32, i32) {
    %c0_i32 = arith.constant 0 : i32
    %c0_i32_0 = arith.constant 0 : i32
    %c0_i32_1 = arith.constant 0 : i32
    return %c0_i32, %c0_i32_0 : i32, i32
  }
  func.func @transform_16(%arg0: i32, %arg1: i32) -> (i32, i32) {
    %c0_i32 = arith.constant 0 : i32
    %c0_i32_0 = arith.constant 0 : i32
    %c0_i32_1 = arith.constant 0 : i32
    return %c0_i32, %c0_i32_0 : i32, i32
  }
  func.func @transform_17(%arg0: i32, %arg1: i32) -> (i32, i32) {
    %c0_i32 = arith.constant 0 : i32
    %c0_i32_0 = arith.constant 0 : i32
    %c0_i32_1 = arith.constant 0 : i32
    return %c0_i32, %c0_i32_0 : i32, i32
  }
  func.func @transform_18(%arg0: i32, %arg1: i32) -> (i32, i32) {
    %c0_i32 = arith.constant 0 : i32
    %c0_i32_0 = arith.constant 0 : i32
    %c0_i32_1 = arith.constant 0 : i32
    return %c0_i32, %c0_i32_0 : i32, i32
  }
  func.func @transform_19(%arg0: i32, %arg1: i32) -> (i32, i32) {
    %c0_i32 = arith.constant 0 : i32
    %c0_i32_0 = arith.constant 0 : i32
    %c0_i32_1 = arith.constant 0 : i32
    return %c0_i32, %c0_i32_0 : i32, i32
  }
  func.func @transform_20(%arg0: i32, %arg1: i32) -> (i32, i32) {
    %c0_i32 = arith.constant 0 : i32
    %c0_i32_0 = arith.constant 0 : i32
    %c0_i32_1 = arith.constant 0 : i32
    return %c0_i32, %c0_i32_0 : i32, i32
  }
  func.func @transform_21(%arg0: i32, %arg1: i32) -> (i32, i32) {
    %c0_i32 = arith.constant 0 : i32
    %c0_i32_0 = arith.constant 0 : i32
    %c0_i32_1 = arith.constant 0 : i32
    return %c0_i32, %c0_i32_0 : i32, i32
  }
  func.func @transform_22(%arg0: i32, %arg1: i32) -> (i32, i32) {
    %c0_i32 = arith.constant 0 : i32
    %c0_i32_0 = arith.constant 0 : i32
    %c0_i32_1 = arith.constant 0 : i32
    return %c0_i32, %c0_i32_0 : i32, i32
  }
  func.func @transform_23(%arg0: i32, %arg1: i32) -> (i32, i32) {
    %c0_i32 = arith.constant 0 : i32
    %c0_i32_0 = arith.constant 0 : i32
    %c0_i32_1 = arith.constant 0 : i32
    return %c0_i32, %c0_i32_0 : i32, i32
  }
  func.func @transform_24(%arg0: i32, %arg1: i32) -> (i32, i32) {
    %c0_i32 = arith.constant 0 : i32
    %c0_i32_0 = arith.constant 0 : i32
    %c0_i32_1 = arith.constant 0 : i32
    return %c0_i32, %c0_i32_0 : i32, i32
  }
  func.func @transform_25(%arg0: i32, %arg1: i32) -> (i32, i32) {
    %c0_i32 = arith.constant 0 : i32
    %c0_i32_0 = arith.constant 0 : i32
    %c0_i32_1 = arith.constant 0 : i32
    return %c0_i32, %c0_i32_0 : i32, i32
  }
  func.func @transform_26(%arg0: i32, %arg1: i32) -> (i32, i32) {
    %c0_i32 = arith.constant 0 : i32
    %c0_i32_0 = arith.constant 0 : i32
    %c0_i32_1 = arith.constant 0 : i32
    return %c0_i32, %c0_i32_0 : i32, i32
  }
  func.func @transform_27(%arg0: i32, %arg1: i32) -> (i32, i32) {
    %c0_i32 = arith.constant 0 : i32
    %c0_i32_0 = arith.constant 0 : i32
    return %arg0, %c0_i32 : i32, i32
  }
  func.func @transform_28(%arg0: i32, %arg1: i32) -> (i32, i32) {
    %c0_i32 = arith.constant 0 : i32
    %c0_i32_0 = arith.constant 0 : i32
    return %arg0, %c0_i32 : i32, i32
  }
  func.func @transform_29(%arg0: i32, %arg1: i32) -> (i32, i32) {
    %c0_i32 = arith.constant 0 : i32
    %c0_i32_0 = arith.constant 0 : i32
    return %arg0, %c0_i32 : i32, i32
  }
  func.func @transform_30(%arg0: i32, %arg1: i32) -> (i32, i32, i32) {
    %c0_i32 = arith.constant 0 : i32
    %c0_i32_0 = arith.constant 0 : i32
    return %arg0, %arg1, %c0_i32 : i32, i32, i32
  }
  func.func @transform_31(%arg0: i32, %arg1: i32) -> (i32, i32) {
    %c0_i32 = arith.constant 0 : i32
    %c0_i32_0 = arith.constant 0 : i32
    return %arg0, %c0_i32 : i32, i32
  }
  func.func @transform_32(%arg0: i32, %arg1: i32) -> (i32, i32) {
    %c0_i32 = arith.constant 0 : i32
    %c0_i32_0 = arith.constant 0 : i32
    return %arg0, %c0_i32 : i32, i32
  }
}

</mosaic_0001>

<llo_original>
// kernel: tpu_custom_call.1
$region0: #{tpu_custom_call.1}
  #allocation0 [shape = 'u32[]', space=smem, size = 0x4, offset = 0x4, fixed_abs, tag = 'smem constant byte address 0x4 - core index']
  #allocation1 [shape = 'u32[144,128]{1,0:T(1,128)}', space=vmem, size = 0x12000, scoped, tag = 'internal scratch']
  #allocation2 [shape = 'f32[2,32]{1,0:T(2,128)}', space=vmem, size = 0x400, scoped, tag = 'scratch operand']
  #allocation3 [shape = 'f32[2,32]{1,0:T(2,128)}', space=vmem, size = 0x400, scoped, tag = 'scratch operand']
  #allocation4 [shape = 'f32[1,1]{1,0:T(1,128)S(6)}', space=smem, size = 0x200, scoped, tag = 'scoped memory for tpu_custom_call.1']
  #allocation5 [shape = 'f32[1,1]{1,0:T(1,128)S(6)}', space=smem, size = 0x200, scoped, tag = 'scoped memory for tpu_custom_call.1']
  %s0 = inlined_call_operand.smem [shape: u32[33], index: -1, kind: input, shape index: {}]
  %s1 = sld [smem:[%s0]]
  %s2 = scalar_lea.smem %s0, 1
  %s3 = sld [smem:[%s2]]
  %s4 = scalar_lea.smem %s0, 2
  %s5 = sld [smem:[%s4]]
  %s6 = scalar_lea.smem %s0, 3
  %s7 = sld [smem:[%s6]]
  %s8 = scalar_lea.smem %s0, 4
  %s9 = sld [smem:[%s8]]
  %s10 = scalar_lea.smem %s0, 5
  %s11 = sld [smem:[%s10]]
  %s12 = scalar_lea.smem %s0, 6
  %s13 = sld [smem:[%s12]]
  %s14 = scalar_lea.smem %s0, 7
  %s15 = sld [smem:[%s14]]
  %s16 = scalar_lea.smem %s0, 8
  %s17 = sld [smem:[%s16]]
  %s18 = scalar_lea.smem %s0, 9
  %s19 = sld [smem:[%s18]]
  %s20 = scalar_lea.smem %s0, 10
  %s21 = sld [smem:[%s20]]
  %s22 = scalar_lea.smem %s0, 11
  %s23 = sld [smem:[%s22]]
  %s24 = scalar_lea.smem %s0, 12
  %s25 = sld [smem:[%s24]]
  %s26 = scalar_lea.smem %s0, 13
  %s27 = sld [smem:[%s26]]
  %s28 = scalar_lea.smem %s0, 14
  %s29 = sld [smem:[%s28]]
  %s30 = scalar_lea.smem %s0, 15
  %s31 = sld [smem:[%s30]]
  %s32 = scalar_lea.smem %s0, 16
  %s33 = sld [smem:[%s32]]
  %s34 = scalar_lea.smem %s0, 17
  %s35 = sld [smem:[%s34]]
  %s36 = scalar_lea.smem %s0, 18
  %s37 = sld [smem:[%s36]]
  %s38 = scalar_lea.smem %s0, 19
  %s39 = sld [smem:[%s38]]
  %s40 = scalar_lea.smem %s0, 20
  %s41 = sld [smem:[%s40]]
  %s42 = scalar_lea.smem %s0, 21
  %s43 = sld [smem:[%s42]]
  %s44 = scalar_lea.smem %s0, 22
  %s45 = sld [smem:[%s44]]
  %s46 = scalar_lea.smem %s0, 23
  %s47 = sld [smem:[%s46]]
  %s48 = scalar_lea.smem %s0, 24
  %s49 = sld [smem:[%s48]]
  %s50 = scalar_lea.smem %s0, 25
  %s51 = sld [smem:[%s50]]
  %s52 = scalar_lea.smem %s0, 26
  %s53 = sld [smem:[%s52]]
  %s54 = scalar_lea.smem %s0, 27
  %s55 = sld [smem:[%s54]]
  %s56 = scalar_lea.smem %s0, 28
  %s57 = sld [smem:[%s56]]
  %s58 = scalar_lea.smem %s0, 29
  %s59 = sld [smem:[%s58]]
  %s60 = scalar_lea.smem %s0, 30
  %s61 = sld [smem:[%s60]]
  %s62 = scalar_lea.smem %s0, 31
  %s63 = sld [smem:[%s62]]
  %s64 = scalar_lea.smem %s0, 32
  %s65 = sld [smem:[%s64]]
  %66 = xla_tuple %s55, %s57, %s59, %s61, %s63, %s65
  %s67 = sld [smem:[#allocation0]]
  $region261: #{tpu_custom_call.1} parent=0
    _
  %s69 = ssub.s32 1, %s67
  %s70 = scalar_select 0, %s69, %s67
  %71 = sst [smem:[#allocation4]] %s21
  %72 = sst [smem:[#allocation5]] %s53
  $region1: #{tpu_custom_call.1} parent=0
    #allocation6 [shape = 'u8[1024]{0}', space=vmem, size = 0x400, scoped, tag = 'input window, operand 0, single buffered']
    #allocation7 [shape = 's32[2]{0}', space=sflag, size = 0x8, scoped, tag = 'scoped memory for tpu_custom_call.1']
    #allocation8 [shape = 's32[2]{0}', space=sflag, size = 0x8, scoped, tag = 'scoped memory for tpu_custom_call.1']
    #allocation9 [shape = 'u8[1024]{0}', space=vmem, size = 0x400, scoped, tag = 'input window, operand 1, single buffered']
    #allocation10 [shape = 's32[1]{0}', space=sflag, size = 0x4, scoped, tag = 'scoped memory for tpu_custom_call.1']
    #allocation11 [shape = 'u8[8192]{0}', space=vmem, size = 0x2000, scoped, tag = 'input window, operand 2, single buffered']
    #allocation12 [shape = 'u8[1024]{0}', space=vmem, size = 0x400, scoped, tag = 'input window, operand 3, single buffered']
    #allocation13 [shape = 's32[1]{0}', space=sflag, size = 0x4, scoped, tag = 'scoped memory for tpu_custom_call.1']
    #allocation14 [shape = 'u8[1024]{0}', space=vmem, size = 0x400, scoped, tag = 'input window, operand 4, single buffered']
    #allocation15 [shape = 'u8[8192]{0}', space=vmem, size = 0x2000, scoped, tag = 'input window, operand 5']
    #allocation16 [shape = 's32[2]{0}', space=sflag, size = 0x8, scoped, tag = 'scoped memory for tpu_custom_call.1']
    #allocation17 [shape = 'u8[8192]{0}', space=vmem, size = 0x2000, scoped, tag = 'input window, operand 6, single buffered']
    #allocation18 [shape = 'u8[512]{0}', space=vmem, size = 0x400, scoped, tag = 'input window, operand 9, single buffered']
    #allocation19 [shape = 's32[1]{0}', space=sflag, size = 0x4, scoped, tag = 'scoped memory for tpu_custom_call.1']
    #allocation20 [shape = 'u8[8192]{0}', space=vmem, size = 0x2000, scoped, tag = 'input window, operand 11, single buffered']
    #allocation21 [shape = 'u8[512]{0}', space=vmem, size = 0x400, scoped, tag = 'input window, operand 12, single buffered']
    #allocation22 [shape = 's32[1]{0}', space=sflag, size = 0x4, scoped, tag = 'scoped memory for tpu_custom_call.1']
    #allocation23 [shape = 'u8[8192]{0}', space=vmem, size = 0x2000, scoped, tag = 'input window, operand 13, single buffered']
    #allocation24 [shape = 'u8[512]{0}', space=vmem, size = 0x400, scoped, tag = 'input window, operand 14, single buffered']
    #allocation25 [shape = 's32[1]{0}', space=sflag, size = 0x4, scoped, tag = 'scoped memory for tpu_custom_call.1']
    #allocation26 [shape = 'u8[8192]{0}', space=vmem, size = 0x2000, scoped, tag = 'input window, operand 15, single buffered']
    #allocation27 [shape = 'u8[8192]{0}', space=vmem, size = 0x2000, scoped, tag = 'input window, operand 16, single buffered']
    #allocation28 [shape = 's32[1]{0}', space=sflag, size = 0x4, scoped, tag = 'scoped memory for tpu_custom_call.1']
    #allocation29 [shape = 'u8[512]{0}', space=vmem, size = 0x400, scoped, tag = 'input window, operand 17, single buffered']
    #allocation30 [shape = 'u8[8192]{0}', space=vmem, size = 0x2000, scoped, tag = 'input window, operand 20, single buffered']
    #allocation31 [shape = 's32[1]{0}', space=sflag, size = 0x4, scoped, tag = 'scoped memory for tpu_custom_call.1']
    #allocation32 [shape = 'u8[8192]{0}', space=vmem, size = 0x2000, scoped, tag = 'input window, operand 21, single buffered']
    #allocation33 [shape = 'u8[8192]{0}', space=vmem, size = 0x2000, scoped, tag = 'input window, operand 23, single buffered']
    #allocation34 [shape = 's32[1]{0}', space=sflag, size = 0x4, scoped, tag = 'scoped memory for tpu_custom_call.1']
    #allocation35 [shape = 'u8[1024]{0}', space=vmem, size = 0x400, scoped, tag = 'output window, operand 0, single buffered']
    #allocation36 [shape = 'u8[1024]{0}', space=vmem, size = 0x400, scoped, tag = 'output window, operand 1, single buffered']
    #allocation37 [shape = 's32[1]{0}', space=sflag, size = 0x4, scoped, tag = 'scoped memory for tpu_custom_call.1']
    #allocation38 [shape = 'u8[1024]{0}', space=vmem, size = 0x400, scoped, tag = 'output window, operand 2, single buffered']
    #allocation39 [shape = 'u8[8192]{0}', space=vmem, size = 0x2000, scoped, tag = 'output window, operand 3']
    #allocation40 [shape = 's32[2]{0}', space=sflag, size = 0x8, scoped, tag = 'scoped memory for tpu_custom_call.1']
    #allocation41 [shape = 'u8[1024]{0}', space=vmem, size = 0x400, scoped, tag = 'output window, operand 5, single buffered']
    %73 = vsyncpa [#allocation7], 0
    %74 = vsyncpa [#allocation10], 0
    %75 = vsyncpa [#allocation13], 0
    %76 = vsyncpa [#allocation16], 0
    %s77 = scalar_lea.sflag [#allocation16], 1
    %78 = vsyncpa %s77, 0
    %79 = vsyncpa [#allocation19], 0
    %80 = vsyncpa [#allocation22], 0
    %81 = vsyncpa [#allocation25], 0
    %82 = vsyncpa [#allocation28], 0
    %83 = vsyncpa [#allocation31], 0
    %84 = vsyncpa [#allocation34], 0
    %85 = vsyncpa [#allocation8], 0
    %86 = vsyncpa [#allocation37], 0
    %87 = vsyncpa [#allocation40], 0
    %s88 = scalar_lea.sflag [#allocation40], 1
    %89 = vsyncpa %s88, 0
    loop: start=0, step=1, limit=4
    $region2: #{tpu_custom_call.1} parent=1 // loop_pre_header
      _
    $region3: #{tpu_custom_call.1} parent=1 // loop_header
      %s91 = sphi 0, %s95
      %p92 = scmp.ge.s32.totalorder %s91, 4
      %s98 = sphi 0, %s110
      %s99 = sphi 0, %s106
      %s100 = sphi 0, %s98
      %s101 = sphi 0, %s99
      %s102 = sphi 0, %s100
      %s103 = sphi 0, %s101
      %s113 = sphi 0, %s115
      %s116 = sphi 0, %s113
      %s117 = sphi 0, %s116
      %s133 = sphi 0, %s117
      %s139 = sphi 0, %s141
      %s142 = sphi 0, %s139
      %s143 = sphi 0, %s142
      %s159 = sphi 0, %s143
      %s165 = sphi 0, %s167
      %s168 = sphi 0, %s165
      %s169 = sphi 0, %s168
      %s185 = sphi 0, %s169
      %s191 = sphi 0, %s193
      %s194 = sphi 0, %s191
      %s195 = sphi 0, %s194
      %s211 = sphi 0, %s195
      %s217 = sphi 0, %s219
      %s220 = sphi 0, %s217
      %s221 = sphi 0, %s220
      %s237 = sphi 0, %s221
      %s245 = sphi 0, %s247
      %s248 = sphi 0, %s245
      %s249 = sphi 0, %s248
      %s265 = sphi 0, %s249
      %s269 = sphi 0, %s269
      %s271 = sphi 0, %s269
      %s272 = sphi 0, %s271
      %s286 = sphi 0, %s272
      %s290 = sphi 0, %s290
      %s292 = sphi 0, %s290
      %s293 = sphi 0, %s292
      %s307 = sphi 0, %s293
      %s311 = sphi 0, %s311
      %s313 = sphi 0, %s311
      %s314 = sphi 0, %s313
      %s328 = sphi 0, %s314
      %s332 = sphi 0, %s332
      %s334 = sphi 0, %s332
      %s335 = sphi 0, %s334
      %s349 = sphi 0, %s335
      %s353 = sphi 0, %s353
      %s355 = sphi 0, %s353
      %s356 = sphi 0, %s355
      %s370 = sphi 0, %s356
      %s374 = sphi 0, %s374
      %s376 = sphi 0, %s374
      %s377 = sphi 0, %s376
      %s391 = sphi 0, %s377
      %s395 = sphi 0, %s395
      %s397 = sphi 0, %s395
      %s398 = sphi 0, %s397
      %s412 = sphi 0, %s398
      %s416 = sphi 0, %s416
      %s418 = sphi 0, %s416
      %s419 = sphi 0, %s418
      %s433 = sphi 0, %s419
      %s437 = sphi 0, %s437
      %s439 = sphi 0, %s437
      %s440 = sphi 0, %s439
      %s454 = sphi 0, %s440
      %s458 = sphi 0, %s458
      %s460 = sphi 0, %s458
      %s461 = sphi 0, %s460
      %s475 = sphi 0, %s461
      %s479 = sphi 0, %s479
      %s481 = sphi 0, %s479
      %s482 = sphi 0, %s481
      %s496 = sphi 0, %s482
      %s500 = sphi 0, %s500
      %s502 = sphi 0, %s500
      %s503 = sphi 0, %s502
      %s517 = sphi 0, %s503
      %s521 = sphi 0, %s521
      %s523 = sphi 0, %s521
      %s524 = sphi 0, %s523
      %s538 = sphi 0, %s524
      %s542 = sphi 0, %s542
      %s544 = sphi 0, %s542
      %s545 = sphi 0, %s544
      %s559 = sphi 0, %s545
      %s563 = sphi 0, %s563
      %s565 = sphi 0, %s563
      %s566 = sphi 0, %s565
      %s580 = sphi 0, %s566
      %s584 = sphi 0, %s584
      %s586 = sphi 0, %s584
      %s587 = sphi 0, %s586
      %s601 = sphi 0, %s587
      %s605 = sphi 0, %s605
      %s607 = sphi 0, %s605
      %s608 = sphi 0, %s607
      %s622 = sphi 0, %s608
      %s626 = sphi 0, %s626
      %s628 = sphi 0, %s626
      %s629 = sphi 0, %s628
      %s643 = sphi 0, %s629
      %s647 = sphi 0, %s647
      %s649 = sphi 0, %s647
      %s650 = sphi 0, %s649
      %s664 = sphi 0, %s650
      %s668 = sphi 0, %s668
      %s670 = sphi 0, %s668
      %s671 = sphi 0, %s670
      %s685 = sphi 0, %s671
      %s689 = sphi 0, %s689
      %s691 = sphi 0, %s689
      %s692 = sphi 0, %s691
      %s706 = sphi 0, %s692
      %s712 = sphi 0, %s714
      %s715 = sphi 0, %s712
      %s716 = sphi 0, %s715
      %s732 = sphi 0, %s716
      %s738 = sphi 0, %s740
      %s741 = sphi 0, %s738
      %s742 = sphi 0, %s741
      %s758 = sphi 0, %s742
      %s764 = sphi 0, %s766
      %s767 = sphi 0, %s764
      %s768 = sphi 0, %s767
      %s784 = sphi 0, %s768
      %s792 = sphi 0, %s794
      %s795 = sphi 0, %s792
      %s796 = sphi 0, %s795
      %s812 = sphi 0, %s796
      %s818 = sphi 0, %s820
      %s821 = sphi 0, %s818
      %s822 = sphi 0, %s821
      %s838 = sphi 0, %s822
      %s844 = sphi 0, %s846
      %s847 = sphi 0, %s844
      %s848 = sphi 0, %s847
      %s864 = sphi 0, %s848
    $region4: #{tpu_custom_call.1} parent=1 // loop_header_branch
      %94 = sbr.rel (%p92) target = $region8
    $region5: #{tpu_custom_call.1} parent=1 // loop_body
      %s96 = ssub.s32 %s91, 1
      %s97 = ssub.s32 %s91, 2
      %s104 = sadd.s32 1, %s99
      %p105 = scmp.ge.s32.totalorder %s104, 2
      %s106 = scalar_select %p105, 0, %s104
      %s107 = sadd.s32 1, %s98
      %s108 = scalar_select %p105, %s107, %s98
      %p109 = scmp.ge.s32.totalorder %s108, 1
      %s110 = scalar_select %p109, 0, %s108
      %s111 = ssub.s32 %s98, %s110
      %p112 = scmp.eq.s32.totalorder %s111, 0
      %s114 = sadd.s32 %s113, 1
      %s115 = scalar_select %p112, %s113, %s114
      %p118 = pneg %p112
      %p119 = scmp.eq.s32.totalorder %s91, 1
      %p120 = por %p118, %p119
      %p121 = scmp.ne.s32.totalorder %s113, %s116
      %p122 = scmp.eq.s32.totalorder %s91, 0
      %p123 = por %p121, %p122
      %p124 = scmp.ne.s32.totalorder %s113, %s116
      %p125 = scmp.eq.s32.totalorder %s96, 1
      %p126 = por %p124, %p125
      %p127 = scmp.ne.s32.totalorder %s116, %s117
      %p128 = scmp.eq.s32.totalorder %s96, 0
      %p129 = por %p127, %p128
      %p130 = scmp.ne.s32.totalorder %s116, %s117
      %p131 = scmp.eq.s32.totalorder %s97, 1
      %p132 = por %p130, %p131
      %p134 = scmp.ne.s32.totalorder %s117, %s133
      %p135 = scmp.eq.s32.totalorder %s97, 0
      %p136 = por %p134, %p135
      %s137 = ssub.s32 %s98, %s110
      %p138 = scmp.eq.s32.totalorder %s137, 0
      %s140 = sadd.s32 %s139, 1
      %s141 = scalar_select %p138, %s139, %s140
      %p144 = pneg %p138
      %p145 = scmp.eq.s32.totalorder %s91, 1
      %p146 = por %p144, %p145
      %p147 = scmp.ne.s32.totalorder %s139, %s142
      %p148 = scmp.eq.s32.totalorder %s91, 0
      %p149 = por %p147, %p148
      %p150 = scmp.ne.s32.totalorder %s139, %s142
      %p151 = scmp.eq.s32.totalorder %s96, 1
      %p152 = por %p150, %p151
      %p153 = scmp.ne.s32.totalorder %s142, %s143
      %p154 = scmp.eq.s32.totalorder %s96, 0
      %p155 = por %p153, %p154
      %p156 = scmp.ne.s32.totalorder %s142, %s143
      %p157 = scmp.eq.s32.totalorder %s97, 1
      %p158 = por %p156, %p157
      %p160 = scmp.ne.s32.totalorder %s143, %s159
      %p161 = scmp.eq.s32.totalorder %s97, 0
      %p162 = por %p160, %p161
      %s163 = ssub.s32 %s98, %s110
      %p164 = scmp.eq.s32.totalorder %s163, 0
      %s166 = sadd.s32 %s165, 1
      %s167 = scalar_select %p164, %s165, %s166
      %p170 = pneg %p164
      %p171 = scmp.eq.s32.totalorder %s91, 1
      %p172 = por %p170, %p171
      %p173 = scmp.ne.s32.totalorder %s165, %s168
      %p174 = scmp.eq.s32.totalorder %s91, 0
      %p175 = por %p173, %p174
      %p176 = scmp.ne.s32.totalorder %s165, %s168
      %p177 = scmp.eq.s32.totalorder %s96, 1
      %p178 = por %p176, %p177
      %p179 = scmp.ne.s32.totalorder %s168, %s169
      %p180 = scmp.eq.s32.totalorder %s96, 0
      %p181 = por %p179, %p180
      %p182 = scmp.ne.s32.totalorder %s168, %s169
      %p183 = scmp.eq.s32.totalorder %s97, 1
      %p184 = por %p182, %p183
      %p186 = scmp.ne.s32.totalorder %s169, %s185
      %p187 = scmp.eq.s32.totalorder %s97, 0
      %p188 = por %p186, %p187
      %s189 = ssub.s32 %s98, %s110
      %p190 = scmp.eq.s32.totalorder %s189, 0
      %s192 = sadd.s32 %s191, 1
      %s193 = scalar_select %p190, %s191, %s192
      %p196 = pneg %p190
      %p197 = scmp.eq.s32.totalorder %s91, 1
      %p198 = por %p196, %p197
      %p199 = scmp.ne.s32.totalorder %s191, %s194
      %p200 = scmp.eq.s32.totalorder %s91, 0
      %p201 = por %p199, %p200
      %p202 = scmp.ne.s32.totalorder %s191, %s194
      %p203 = scmp.eq.s32.totalorder %s96, 1
      %p204 = por %p202, %p203
      %p205 = scmp.ne.s32.totalorder %s194, %s195
      %p206 = scmp.eq.s32.totalorder %s96, 0
      %p207 = por %p205, %p206
      %p208 = scmp.ne.s32.totalorder %s194, %s195
      %p209 = scmp.eq.s32.totalorder %s97, 1
      %p210 = por %p208, %p209
      %p212 = scmp.ne.s32.totalorder %s195, %s211
      %p213 = scmp.eq.s32.totalorder %s97, 0
      %p214 = por %p212, %p213
      %s215 = ssub.s32 %s98, %s110
      %p216 = scmp.eq.s32.totalorder %s215, 0
      %s218 = sadd.s32 %s217, 1
      %s219 = scalar_select %p216, %s217, %s218
      %p222 = pneg %p216
      %p223 = scmp.eq.s32.totalorder %s91, 1
      %p224 = por %p222, %p223
      %p225 = scmp.ne.s32.totalorder %s217, %s220
      %p226 = scmp.eq.s32.totalorder %s91, 0
      %p227 = por %p225, %p226
      %p228 = scmp.ne.s32.totalorder %s217, %s220
      %p229 = scmp.eq.s32.totalorder %s96, 1
      %p230 = por %p228, %p229
      %p231 = scmp.ne.s32.totalorder %s220, %s221
      %p232 = scmp.eq.s32.totalorder %s96, 0
      %p233 = por %p231, %p232
      %p234 = scmp.ne.s32.totalorder %s220, %s221
      %p235 = scmp.eq.s32.totalorder %s97, 1
      %p236 = por %p234, %p235
      %p238 = scmp.ne.s32.totalorder %s221, %s237
      %p239 = scmp.eq.s32.totalorder %s97, 0
      %p240 = por %p238, %p239
      %s241 = ssub.s32 %s98, %s110
      %s242 = ssub.s32 %s99, %s106
      %s243 = sor.u32 %s241, %s242
      %p244 = scmp.eq.s32.totalorder %s243, 0
      %s246 = sadd.s32 %s245, 1
      %s247 = scalar_select %p244, %s245, %s246
      %p250 = pneg %p244
      %p251 = scmp.eq.s32.totalorder %s91, 1
      %p252 = por %p250, %p251
      %p253 = scmp.ne.s32.totalorder %s245, %s248
      %p254 = scmp.eq.s32.totalorder %s91, 0
      %p255 = por %p253, %p254
      %p256 = scmp.ne.s32.totalorder %s245, %s248
      %p257 = scmp.eq.s32.totalorder %s96, 1
      %p258 = por %p256, %p257
      %p259 = scmp.ne.s32.totalorder %s248, %s249
      %p260 = scmp.eq.s32.totalorder %s96, 0
      %p261 = por %p259, %p260
      %p262 = scmp.ne.s32.totalorder %s248, %s249
      %p263 = scmp.eq.s32.totalorder %s97, 1
      %p264 = por %p262, %p263
      %p266 = scmp.ne.s32.totalorder %s249, %s265
      %p267 = scmp.eq.s32.totalorder %s97, 0
      %p268 = por %p266, %p267
      %s270 = sadd.s32 %s269, 1
      %p273 = scmp.eq.s32.totalorder %s91, 1
      %p274 = scmp.ne.s32.totalorder %s269, %s271
      %p275 = scmp.eq.s32.totalorder %s91, 0
      %p276 = por %p274, %p275
      %p277 = scmp.ne.s32.totalorder %s269, %s271
      %p278 = scmp.eq.s32.totalorder %s96, 1
      %p279 = por %p277, %p278
      %p280 = scmp.ne.s32.totalorder %s271, %s272
      %p281 = scmp.eq.s32.totalorder %s96, 0
      %p282 = por %p280, %p281
      %p283 = scmp.ne.s32.totalorder %s271, %s272
      %p284 = scmp.eq.s32.totalorder %s97, 1
      %p285 = por %p283, %p284
      %p287 = scmp.ne.s32.totalorder %s272, %s286
      %p288 = scmp.eq.s32.totalorder %s97, 0
      %p289 = por %p287, %p288
      %s291 = sadd.s32 %s290, 1
      %p294 = scmp.eq.s32.totalorder %s91, 1
      %p295 = scmp.ne.s32.totalorder %s290, %s292
      %p296 = scmp.eq.s32.totalorder %s91, 0
      %p297 = por %p295, %p296
      %p298 = scmp.ne.s32.totalorder %s290, %s292
      %p299 = scmp.eq.s32.totalorder %s96, 1
      %p300 = por %p298, %p299
      %p301 = scmp.ne.s32.totalorder %s292, %s293
      %p302 = scmp.eq.s32.totalorder %s96, 0
      %p303 = por %p301, %p302
      %p304 = scmp.ne.s32.totalorder %s292, %s293
      %p305 = scmp.eq.s32.totalorder %s97, 1
      %p306 = por %p304, %p305
      %p308 = scmp.ne.s32.totalorder %s293, %s307
      %p309 = scmp.eq.s32.totalorder %s97, 0
      %p310 = por %p308, %p309
      %s312 = sadd.s32 %s311, 1
      %p315 = scmp.eq.s32.totalorder %s91, 1
      %p316 = scmp.ne.s32.totalorder %s311, %s313
      %p317 = scmp.eq.s32.totalorder %s91, 0
      %p318 = por %p316, %p317
      %p319 = scmp.ne.s32.totalorder %s311, %s313
      %p320 = scmp.eq.s32.totalorder %s96, 1
      %p321 = por %p319, %p320
      %p322 = scmp.ne.s32.totalorder %s313, %s314
      %p323 = scmp.eq.s32.totalorder %s96, 0
      %p324 = por %p322, %p323
      %p325 = scmp.ne.s32.totalorder %s313, %s314
      %p326 = scmp.eq.s32.totalorder %s97, 1
      %p327 = por %p325, %p326
      %p329 = scmp.ne.s32.totalorder %s314, %s328
      %p330 = scmp.eq.s32.totalorder %s97, 0
      %p331 = por %p329, %p330
      %s333 = sadd.s32 %s332, 1
      %p336 = scmp.eq.s32.totalorder %s91, 1
      %p337 = scmp.ne.s32.totalorder %s332, %s334
      %p338 = scmp.eq.s32.totalorder %s91, 0
      %p339 = por %p337, %p338
      %p340 = scmp.ne.s32.totalorder %s332, %s334
      %p341 = scmp.eq.s32.totalorder %s96, 1
      %p342 = por %p340, %p341
      %p343 = scmp.ne.s32.totalorder %s334, %s335
      %p344 = scmp.eq.s32.totalorder %s96, 0
      %p345 = por %p343, %p344
      %p346 = scmp.ne.s32.totalorder %s334, %s335
      %p347 = scmp.eq.s32.totalorder %s97, 1
      %p348 = por %p346, %p347
      %p350 = scmp.ne.s32.totalorder %s335, %s349
      %p351 = scmp.eq.s32.totalorder %s97, 0
      %p352 = por %p350, %p351
      %s354 = sadd.s32 %s353, 1
      %p357 = scmp.eq.s32.totalorder %s91, 1
      %p358 = scmp.ne.s32.totalorder %s353, %s355
      %p359 = scmp.eq.s32.totalorder %s91, 0
      %p360 = por %p358, %p359
      %p361 = scmp.ne.s32.totalorder %s353, %s355
      %p362 = scmp.eq.s32.totalorder %s96, 1
      %p363 = por %p361, %p362
      %p364 = scmp.ne.s32.totalorder %s355, %s356
      %p365 = scmp.eq.s32.totalorder %s96, 0
      %p366 = por %p364, %p365
      %p367 = scmp.ne.s32.totalorder %s355, %s356
      %p368 = scmp.eq.s32.totalorder %s97, 1
      %p369 = por %p367, %p368
      %p371 = scmp.ne.s32.totalorder %s356, %s370
      %p372 = scmp.eq.s32.totalorder %s97, 0
      %p373 = por %p371, %p372
      %s375 = sadd.s32 %s374, 1
      %p378 = scmp.eq.s32.totalorder %s91, 1
      %p379 = scmp.ne.s32.totalorder %s374, %s376
      %p380 = scmp.eq.s32.totalorder %s91, 0
      %p381 = por %p379, %p380
      %p382 = scmp.ne.s32.totalorder %s374, %s376
      %p383 = scmp.eq.s32.totalorder %s96, 1
      %p384 = por %p382, %p383
      %p385 = scmp.ne.s32.totalorder %s376, %s377
      %p386 = scmp.eq.s32.totalorder %s96, 0
      %p387 = por %p385, %p386
      %p388 = scmp.ne.s32.totalorder %s376, %s377
      %p389 = scmp.eq.s32.totalorder %s97, 1
      %p390 = por %p388, %p389
      %p392 = scmp.ne.s32.totalorder %s377, %s391
      %p393 = scmp.eq.s32.totalorder %s97, 0
      %p394 = por %p392, %p393
      %s396 = sadd.s32 %s395, 1
      %p399 = scmp.eq.s32.totalorder %s91, 1
      %p400 = scmp.ne.s32.totalorder %s395, %s397
      %p401 = scmp.eq.s32.totalorder %s91, 0
      %p402 = por %p400, %p401
      %p403 = scmp.ne.s32.totalorder %s395, %s397
      %p404 = scmp.eq.s32.totalorder %s96, 1
      %p405 = por %p403, %p404
      %p406 = scmp.ne.s32.totalorder %s397, %s398
      %p407 = scmp.eq.s32.totalorder %s96, 0
      %p408 = por %p406, %p407
      %p409 = scmp.ne.s32.totalorder %s397, %s398
      %p410 = scmp.eq.s32.totalorder %s97, 1
      %p411 = por %p409, %p410
      %p413 = scmp.ne.s32.totalorder %s398, %s412
      %p414 = scmp.eq.s32.totalorder %s97, 0
      %p415 = por %p413, %p414
      %s417 = sadd.s32 %s416, 1
      %p420 = scmp.eq.s32.totalorder %s91, 1
      %p421 = scmp.ne.s32.totalorder %s416, %s418
      %p422 = scmp.eq.s32.totalorder %s91, 0
      %p423 = por %p421, %p422
      %p424 = scmp.ne.s32.totalorder %s416, %s418
      %p425 = scmp.eq.s32.totalorder %s96, 1
      %p426 = por %p424, %p425
      %p427 = scmp.ne.s32.totalorder %s418, %s419
      %p428 = scmp.eq.s32.totalorder %s96, 0
      %p429 = por %p427, %p428
      %p430 = scmp.ne.s32.totalorder %s418, %s419
      %p431 = scmp.eq.s32.totalorder %s97, 1
      %p432 = por %p430, %p431
      %p434 = scmp.ne.s32.totalorder %s419, %s433
      %p435 = scmp.eq.s32.totalorder %s97, 0
      %p436 = por %p434, %p435
      %s438 = sadd.s32 %s437, 1
      %p441 = scmp.eq.s32.totalorder %s91, 1
      %p442 = scmp.ne.s32.totalorder %s437, %s439
      %p443 = scmp.eq.s32.totalorder %s91, 0
      %p444 = por %p442, %p443
      %p445 = scmp.ne.s32.totalorder %s437, %s439
      %p446 = scmp.eq.s32.totalorder %s96, 1
      %p447 = por %p445, %p446
      %p448 = scmp.ne.s32.totalorder %s439, %s440
      %p449 = scmp.eq.s32.totalorder %s96, 0
      %p450 = por %p448, %p449
      %p451 = scmp.ne.s32.totalorder %s439, %s440
      %p452 = scmp.eq.s32.totalorder %s97, 1
      %p453 = por %p451, %p452
      %p455 = scmp.ne.s32.totalorder %s440, %s454
      %p456 = scmp.eq.s32.totalorder %s97, 0
      %p457 = por %p455, %p456
      %s459 = sadd.s32 %s458, 1
      %p462 = scmp.eq.s32.totalorder %s91, 1
      %p463 = scmp.ne.s32.totalorder %s458, %s460
      %p464 = scmp.eq.s32.totalorder %s91, 0
      %p465 = por %p463, %p464
      %p466 = scmp.ne.s32.totalorder %s458, %s460
      %p467 = scmp.eq.s32.totalorder %s96, 1
      %p468 = por %p466, %p467
      %p469 = scmp.ne.s32.totalorder %s460, %s461
      %p470 = scmp.eq.s32.totalorder %s96, 0
      %p471 = por %p469, %p470
      %p472 = scmp.ne.s32.totalorder %s460, %s461
      %p473 = scmp.eq.s32.totalorder %s97, 1
      %p474 = por %p472, %p473
      %p476 = scmp.ne.s32.totalorder %s461, %s475
      %p477 = scmp.eq.s32.totalorder %s97, 0
      %p478 = por %p476, %p477
      %s480 = sadd.s32 %s479, 1
      %p483 = scmp.eq.s32.totalorder %s91, 1
      %p484 = scmp.ne.s32.totalorder %s479, %s481
      %p485 = scmp.eq.s32.totalorder %s91, 0
      %p486 = por %p484, %p485
      %p487 = scmp.ne.s32.totalorder %s479, %s481
      %p488 = scmp.eq.s32.totalorder %s96, 1
      %p489 = por %p487, %p488
      %p490 = scmp.ne.s32.totalorder %s481, %s482
      %p491 = scmp.eq.s32.totalorder %s96, 0
      %p492 = por %p490, %p491
      %p493 = scmp.ne.s32.totalorder %s481, %s482
      %p494 = scmp.eq.s32.totalorder %s97, 1
      %p495 = por %p493, %p494
      %p497 = scmp.ne.s32.totalorder %s482, %s496
      %p498 = scmp.eq.s32.totalorder %s97, 0
      %p499 = por %p497, %p498
      %s501 = sadd.s32 %s500, 1
      %p504 = scmp.eq.s32.totalorder %s91, 1
      %p505 = scmp.ne.s32.totalorder %s500, %s502
      %p506 = scmp.eq.s32.totalorder %s91, 0
      %p507 = por %p505, %p506
      %p508 = scmp.ne.s32.totalorder %s500, %s502
      %p509 = scmp.eq.s32.totalorder %s96, 1
      %p510 = por %p508, %p509
      %p511 = scmp.ne.s32.totalorder %s502, %s503
      %p512 = scmp.eq.s32.totalorder %s96, 0
      %p513 = por %p511, %p512
      %p514 = scmp.ne.s32.totalorder %s502, %s503
      %p515 = scmp.eq.s32.totalorder %s97, 1
      %p516 = por %p514, %p515
      %p518 = scmp.ne.s32.totalorder %s503, %s517
      %p519 = scmp.eq.s32.totalorder %s97, 0
      %p520 = por %p518, %p519
      %s522 = sadd.s32 %s521, 1
      %p525 = scmp.eq.s32.totalorder %s91, 1
      %p526 = scmp.ne.s32.totalorder %s521, %s523
      %p527 = scmp.eq.s32.totalorder %s91, 0
      %p528 = por %p526, %p527
      %p529 = scmp.ne.s32.totalorder %s521, %s523
      %p530 = scmp.eq.s32.totalorder %s96, 1
      %p531 = por %p529, %p530
      %p532 = scmp.ne.s32.totalorder %s523, %s524
      %p533 = scmp.eq.s32.totalorder %s96, 0
      %p534 = por %p532, %p533
      %p535 = scmp.ne.s32.totalorder %s523, %s524
      %p536 = scmp.eq.s32.totalorder %s97, 1
      %p537 = por %p535, %p536
      %p539 = scmp.ne.s32.totalorder %s524, %s538
      %p540 = scmp.eq.s32.totalorder %s97, 0
      %p541 = por %p539, %p540
      %s543 = sadd.s32 %s542, 1
      %p546 = scmp.eq.s32.totalorder %s91, 1
      %p547 = scmp.ne.s32.totalorder %s542, %s544
      %p548 = scmp.eq.s32.totalorder %s91, 0
      %p549 = por %p547, %p548
      %p550 = scmp.ne.s32.totalorder %s542, %s544
      %p551 = scmp.eq.s32.totalorder %s96, 1
      %p552 = por %p550, %p551
      %p553 = scmp.ne.s32.totalorder %s544, %s545
      %p554 = scmp.eq.s32.totalorder %s96, 0
      %p555 = por %p553, %p554
      %p556 = scmp.ne.s32.totalorder %s544, %s545
      %p557 = scmp.eq.s32.totalorder %s97, 1
      %p558 = por %p556, %p557
      %p560 = scmp.ne.s32.totalorder %s545, %s559
      %p561 = scmp.eq.s32.totalorder %s97, 0
      %p562 = por %p560, %p561
      %s564 = sadd.s32 %s563, 1
      %p567 = scmp.eq.s32.totalorder %s91, 1
      %p568 = scmp.ne.s32.totalorder %s563, %s565
      %p569 = scmp.eq.s32.totalorder %s91, 0
      %p570 = por %p568, %p569
      %p571 = scmp.ne.s32.totalorder %s563, %s565
      %p572 = scmp.eq.s32.totalorder %s96, 1
      %p573 = por %p571, %p572
      %p574 = scmp.ne.s32.totalorder %s565, %s566
      %p575 = scmp.eq.s32.totalorder %s96, 0
      %p576 = por %p574, %p575
      %p577 = scmp.ne.s32.totalorder %s565, %s566
      %p578 = scmp.eq.s32.totalorder %s97, 1
      %p579 = por %p577, %p578
      %p581 = scmp.ne.s32.totalorder %s566, %s580
      %p582 = scmp.eq.s32.totalorder %s97, 0
      %p583 = por %p581, %p582
      %s585 = sadd.s32 %s584, 1
      %p588 = scmp.eq.s32.totalorder %s91, 1
      %p589 = scmp.ne.s32.totalorder %s584, %s586
      %p590 = scmp.eq.s32.totalorder %s91, 0
      %p591 = por %p589, %p590
      %p592 = scmp.ne.s32.totalorder %s584, %s586
      %p593 = scmp.eq.s32.totalorder %s96, 1
      %p594 = por %p592, %p593
      %p595 = scmp.ne.s32.totalorder %s586, %s587
      %p596 = scmp.eq.s32.totalorder %s96, 0
      %p597 = por %p595, %p596
      %p598 = scmp.ne.s32.totalorder %s586, %s587
      %p599 = scmp.eq.s32.totalorder %s97, 1
      %p600 = por %p598, %p599
      %p602 = scmp.ne.s32.totalorder %s587, %s601
      %p603 = scmp.eq.s32.totalorder %s97, 0
      %p604 = por %p602, %p603
      %s606 = sadd.s32 %s605, 1
      %p609 = scmp.eq.s32.totalorder %s91, 1
      %p610 = scmp.ne.s32.totalorder %s605, %s607
      %p611 = scmp.eq.s32.totalorder %s91, 0
      %p612 = por %p610, %p611
      %p613 = scmp.ne.s32.totalorder %s605, %s607
      %p614 = scmp.eq.s32.totalorder %s96, 1
      %p615 = por %p613, %p614
      %p616 = scmp.ne.s32.totalorder %s607, %s608
      %p617 = scmp.eq.s32.totalorder %s96, 0
      %p618 = por %p616, %p617
      %p619 = scmp.ne.s32.totalorder %s607, %s608
      %p620 = scmp.eq.s32.totalorder %s97, 1
      %p621 = por %p619, %p620
      %p623 = scmp.ne.s32.totalorder %s608, %s622
      %p624 = scmp.eq.s32.totalorder %s97, 0
      %p625 = por %p623, %p624
      %s627 = sadd.s32 %s626, 1
      %p630 = scmp.eq.s32.totalorder %s91, 1
      %p631 = scmp.ne.s32.totalorder %s626, %s628
      %p632 = scmp.eq.s32.totalorder %s91, 0
      %p633 = por %p631, %p632
      %p634 = scmp.ne.s32.totalorder %s626, %s628
      %p635 = scmp.eq.s32.totalorder %s96, 1
      %p636 = por %p634, %p635
      %p637 = scmp.ne.s32.totalorder %s628, %s629
      %p638 = scmp.eq.s32.totalorder %s96, 0
      %p639 = por %p637, %p638
      %p640 = scmp.ne.s32.totalorder %s628, %s629
      %p641 = scmp.eq.s32.totalorder %s97, 1
      %p642 = por %p640, %p641
      %p644 = scmp.ne.s32.totalorder %s629, %s643
      %p645 = scmp.eq.s32.totalorder %s97, 0
      %p646 = por %p644, %p645
      %s648 = sadd.s32 %s647, 1
      %p651 = scmp.eq.s32.totalorder %s91, 1
      %p652 = scmp.ne.s32.totalorder %s647, %s649
      %p653 = scmp.eq.s32.totalorder %s91, 0
      %p654 = por %p652, %p653
      %p655 = scmp.ne.s32.totalorder %s647, %s649
      %p656 = scmp.eq.s32.totalorder %s96, 1
      %p657 = por %p655, %p656
      %p658 = scmp.ne.s32.totalorder %s649, %s650
      %p659 = scmp.eq.s32.totalorder %s96, 0
      %p660 = por %p658, %p659
      %p661 = scmp.ne.s32.totalorder %s649, %s650
      %p662 = scmp.eq.s32.totalorder %s97, 1
      %p663 = por %p661, %p662
      %p665 = scmp.ne.s32.totalorder %s650, %s664
      %p666 = scmp.eq.s32.totalorder %s97, 0
      %p667 = por %p665, %p666
      %s669 = sadd.s32 %s668, 1
      %p672 = scmp.eq.s32.totalorder %s91, 1
      %p673 = scmp.ne.s32.totalorder %s668, %s670
      %p674 = scmp.eq.s32.totalorder %s91, 0
      %p675 = por %p673, %p674
      %p676 = scmp.ne.s32.totalorder %s668, %s670
      %p677 = scmp.eq.s32.totalorder %s96, 1
      %p678 = por %p676, %p677
      %p679 = scmp.ne.s32.totalorder %s670, %s671
      %p680 = scmp.eq.s32.totalorder %s96, 0
      %p681 = por %p679, %p680
      %p682 = scmp.ne.s32.totalorder %s670, %s671
      %p683 = scmp.eq.s32.totalorder %s97, 1
      %p684 = por %p682, %p683
      %p686 = scmp.ne.s32.totalorder %s671, %s685
      %p687 = scmp.eq.s32.totalorder %s97, 0
      %p688 = por %p686, %p687
      %s690 = sadd.s32 %s689, 1
      %p693 = scmp.eq.s32.totalorder %s91, 1
      %p694 = scmp.ne.s32.totalorder %s689, %s691
      %p695 = scmp.eq.s32.totalorder %s91, 0
      %p696 = por %p694, %p695
      %p697 = scmp.ne.s32.totalorder %s689, %s691
      %p698 = scmp.eq.s32.totalorder %s96, 1
      %p699 = por %p697, %p698
      %p700 = scmp.ne.s32.totalorder %s691, %s692
      %p701 = scmp.eq.s32.totalorder %s96, 0
      %p702 = por %p700, %p701
      %p703 = scmp.ne.s32.totalorder %s691, %s692
      %p704 = scmp.eq.s32.totalorder %s97, 1
      %p705 = por %p703, %p704
      %p707 = scmp.ne.s32.totalorder %s692, %s706
      %p708 = scmp.eq.s32.totalorder %s97, 0
      %p709 = por %p707, %p708
      %s710 = ssub.s32 %s98, %s110
      %p711 = scmp.eq.s32.totalorder %s710, 0
      %s713 = sadd.s32 %s712, 1
      %s714 = scalar_select %p711, %s712, %s713
      %p717 = pneg %p711
      %p718 = scmp.eq.s32.totalorder %s91, 1
      %p719 = por %p717, %p718
      %p720 = scmp.ne.s32.totalorder %s712, %s715
      %p721 = scmp.eq.s32.totalorder %s91, 0
      %p722 = por %p720, %p721
      %p723 = scmp.ne.s32.totalorder %s712, %s715
      %p724 = scmp.eq.s32.totalorder %s96, 1
      %p725 = por %p723, %p724
      %p726 = scmp.ne.s32.totalorder %s715, %s716
      %p727 = scmp.eq.s32.totalorder %s96, 0
      %p728 = por %p726, %p727
      %p729 = scmp.ne.s32.totalorder %s715, %s716
      %p730 = scmp.eq.s32.totalorder %s97, 1
      %p731 = por %p729, %p730
      %p733 = scmp.ne.s32.totalorder %s716, %s732
      %p734 = scmp.eq.s32.totalorder %s97, 0
      %p735 = por %p733, %p734
      %s736 = ssub.s32 %s98, %s110
      %p737 = scmp.eq.s32.totalorder %s736, 0
      %s739 = sadd.s32 %s738, 1
      %s740 = scalar_select %p737, %s738, %s739
      %p743 = pneg %p737
      %p744 = scmp.eq.s32.totalorder %s91, 1
      %p745 = por %p743, %p744
      %p746 = scmp.ne.s32.totalorder %s738, %s741
      %p747 = scmp.eq.s32.totalorder %s91, 0
      %p748 = por %p746, %p747
      %p749 = scmp.ne.s32.totalorder %s738, %s741
      %p750 = scmp.eq.s32.totalorder %s96, 1
      %p751 = por %p749, %p750
      %p752 = scmp.ne.s32.totalorder %s741, %s742
      %p753 = scmp.eq.s32.totalorder %s96, 0
      %p754 = por %p752, %p753
      %p755 = scmp.ne.s32.totalorder %s741, %s742
      %p756 = scmp.eq.s32.totalorder %s97, 1
      %p757 = por %p755, %p756
      %p759 = scmp.ne.s32.totalorder %s742, %s758
      %p760 = scmp.eq.s32.totalorder %s97, 0
      %p761 = por %p759, %p760
      %s762 = ssub.s32 %s98, %s110
      %p763 = scmp.eq.s32.totalorder %s762, 0
      %s765 = sadd.s32 %s764, 1
      %s766 = scalar_select %p763, %s764, %s765
      %p769 = pneg %p763
      %p770 = scmp.eq.s32.totalorder %s91, 1
      %p771 = por %p769, %p770
      %p772 = scmp.ne.s32.totalorder %s764, %s767
      %p773 = scmp.eq.s32.totalorder %s91, 0
      %p774 = por %p772, %p773
      %p775 = scmp.ne.s32.totalorder %s764, %s767
      %p776 = scmp.eq.s32.totalorder %s96, 1
      %p777 = por %p775, %p776
      %p778 = scmp.ne.s32.totalorder %s767, %s768
      %p779 = scmp.eq.s32.totalorder %s96, 0
      %p780 = por %p778, %p779
      %p781 = scmp.ne.s32.totalorder %s767, %s768
      %p782 = scmp.eq.s32.totalorder %s97, 1
      %p783 = por %p781, %p782
      %p785 = scmp.ne.s32.totalorder %s768, %s784
      %p786 = scmp.eq.s32.totalorder %s97, 0
      %p787 = por %p785, %p786
      %s788 = ssub.s32 %s98, %s110
      %s789 = ssub.s32 %s99, %s106
      %s790 = sor.u32 %s788, %s789
      %p791 = scmp.eq.s32.totalorder %s790, 0
      %s793 = sadd.s32 %s792, 1
      %s794 = scalar_select %p791, %s792, %s793
      %p797 = pneg %p791
      %p798 = scmp.eq.s32.totalorder %s91, 1
      %p799 = por %p797, %p798
      %p800 = scmp.ne.s32.totalorder %s792, %s795
      %p801 = scmp.eq.s32.totalorder %s91, 0
      %p802 = por %p800, %p801
      %p803 = scmp.ne.s32.totalorder %s792, %s795
      %p804 = scmp.eq.s32.totalorder %s96, 1
      %p805 = por %p803, %p804
      %p806 = scmp.ne.s32.totalorder %s795, %s796
      %p807 = scmp.eq.s32.totalorder %s96, 0
      %p808 = por %p806, %p807
      %p809 = scmp.ne.s32.totalorder %s795, %s796
      %p810 = scmp.eq.s32.totalorder %s97, 1
      %p811 = por %p809, %p810
      %p813 = scmp.ne.s32.totalorder %s796, %s812
      %p814 = scmp.eq.s32.totalorder %s97, 0
      %p815 = por %p813, %p814
      %s816 = ssub.s32 %s98, %s110
      %p817 = scmp.eq.s32.totalorder %s816, 0
      %s819 = sadd.s32 %s818, 1
      %s820 = scalar_select %p817, %s818, %s819
      %p823 = pneg %p817
      %p824 = scmp.eq.s32.totalorder %s91, 1
      %p825 = por %p823, %p824
      %p826 = scmp.ne.s32.totalorder %s818, %s821
      %p827 = scmp.eq.s32.totalorder %s91, 0
      %p828 = por %p826, %p827
      %p829 = scmp.ne.s32.totalorder %s818, %s821
      %p830 = scmp.eq.s32.totalorder %s96, 1
      %p831 = por %p829, %p830
      %p832 = scmp.ne.s32.totalorder %s821, %s822
      %p833 = scmp.eq.s32.totalorder %s96, 0
      %p834 = por %p832, %p833
      %p835 = scmp.ne.s32.totalorder %s821, %s822
      %p836 = scmp.eq.s32.totalorder %s97, 1
      %p837 = por %p835, %p836
      %p839 = scmp.ne.s32.totalorder %s822, %s838
      %p840 = scmp.eq.s32.totalorder %s97, 0
      %p841 = por %p839, %p840
      %s842 = ssub.s32 %s98, %s110
      %p843 = scmp.eq.s32.totalorder %s842, 0
      %s845 = sadd.s32 %s844, 1
      %s846 = scalar_select %p843, %s844, %s845
      %p849 = pneg %p843
      %p850 = scmp.eq.s32.totalorder %s91, 1
      %p851 = por %p849, %p850
      %p852 = scmp.ne.s32.totalorder %s844, %s847
      %p853 = scmp.eq.s32.totalorder %s91, 0
      %p854 = por %p852, %p853
      %p855 = scmp.ne.s32.totalorder %s844, %s847
      %p856 = scmp.eq.s32.totalorder %s96, 1
      %p857 = por %p855, %p856
      %p858 = scmp.ne.s32.totalorder %s847, %s848
      %p859 = scmp.eq.s32.totalorder %s96, 0
      %p860 = por %p858, %p859
      %p861 = scmp.ne.s32.totalorder %s847, %s848
      %p862 = scmp.eq.s32.totalorder %s97, 1
      %p863 = por %p861, %p862
      %p865 = scmp.ne.s32.totalorder %s848, %s864
      %p866 = scmp.eq.s32.totalorder %s97, 0
      %p867 = por %p865, %p866
      %p868 = scmp.le.s32.totalorder 1, %s91
      %p869 = scmp.lt.s32.totalorder %s91, 3
      %p870 = pnand %p868, %p869
      %p871 = pneg %p870
      // Predicated region
      $region9: #{tpu_custom_call.1} parent=5 // pred_check
        _
      $region10: #{tpu_custom_call.1} parent=5 // pred_check_branch
        %873 = sbr.rel (%p870) target = $region12
      $region11: #{tpu_custom_call.1} parent=5 // pred_region
        %s874 = ssub.s32 %s91, 1
        // Predicated region
        $region13: #{tpu_custom_call.1} parent=11 // pred_check
          %p875 = pneg %p129
        $region14: #{tpu_custom_call.1} parent=11 // pred_check_branch
          %877 = sbr.rel (%p875) target = $region16
        $region15: #{tpu_custom_call.1} parent=11 // pred_region
          %s879 = ssub.s32 32, 32
          %880 = vsyncadd [#allocation7], %s879
          %s881 = smul.addr %s100, 32
          %s882 = scalar_lea.hbm %s1, %s881
          %s884 = sshll.u32 [#allocation6], 4
          %s885 = int_to_ptr.vmem [resolvable:$true] %s884
          %887 = dma.hbm_to_vmem [thread:$0]  %s882, 32, %s885, [#allocation7]
        $region16: #{tpu_custom_call.1} parent=11 // pred_fallthru
          _
        // Predicated region
        $region17: #{tpu_custom_call.1} parent=11 // pred_check
          %p888 = pneg %p155
        $region18: #{tpu_custom_call.1} parent=11 // pred_check_branch
          %890 = sbr.rel (%p888) target = $region20
        $region19: #{tpu_custom_call.1} parent=11 // pred_region
          %s892 = ssub.s32 32, 32
          %893 = vsyncadd [#allocation10], %s892
          %s894 = smul.addr %s100, 32
          %s895 = scalar_lea.hbm %s3, %s894
          %s897 = sshll.u32 [#allocation9], 4
          %s898 = int_to_ptr.vmem [resolvable:$true] %s897
          %900 = dma.hbm_to_vmem [thread:$0]  %s895, 32, %s898, [#allocation10]
        $region20: #{tpu_custom_call.1} parent=11 // pred_fallthru
          _
        // Predicated region
        $region21: #{tpu_custom_call.1} parent=11 // pred_check
          %p901 = pneg %p181
        $region22: #{tpu_custom_call.1} parent=11 // pred_check_branch
          %903 = sbr.rel (%p901) target = $region24
        $region23: #{tpu_custom_call.1} parent=11 // pred_region
          %s904 = smul.u32 2, %s100
          %s906 = ssub.s32 256, 256
          %907 = vsyncadd [#allocation10], %s906
          %s908 = smul.addr %s904, 128
          %s909 = scalar_lea.hbm %s5, %s908
          %s910 = sshll.u32 [#allocation11], 4
          %s911 = int_to_ptr.vmem [resolvable:$true] %s910
          %916 = dma.hbm_to_vmem [thread:$0]  %s909, 256, %s911, [#allocation10], 128, 128, 8
        $region24: #{tpu_custom_call.1} parent=11 // pred_fallthru
          _
        // Predicated region
        $region25: #{tpu_custom_call.1} parent=11 // pred_check
          %p917 = pneg %p207
        $region26: #{tpu_custom_call.1} parent=11 // pred_check_branch
          %919 = sbr.rel (%p917) target = $region28
        $region27: #{tpu_custom_call.1} parent=11 // pred_region
          %s921 = ssub.s32 32, 32
          %922 = vsyncadd [#allocation13], %s921
          %s923 = smul.addr %s100, 32
          %s924 = scalar_lea.hbm %s7, %s923
          %s926 = sshll.u32 [#allocation12], 4
          %s927 = int_to_ptr.vmem [resolvable:$true] %s926
          %929 = dma.hbm_to_vmem [thread:$0]  %s924, 32, %s927, [#allocation13]
        $region28: #{tpu_custom_call.1} parent=11 // pred_fallthru
          _
        // Predicated region
        $region29: #{tpu_custom_call.1} parent=11 // pred_check
          %p930 = pneg %p233
        $region30: #{tpu_custom_call.1} parent=11 // pred_check_branch
          %932 = sbr.rel (%p930) target = $region32
        $region31: #{tpu_custom_call.1} parent=11 // pred_region
          %s934 = ssub.s32 32, 32
          %935 = vsyncadd [#allocation13], %s934
          %s936 = smul.addr %s100, 32
          %s937 = scalar_lea.hbm %s9, %s936
          %s939 = sshll.u32 [#allocation14], 4
          %s940 = int_to_ptr.vmem [resolvable:$true] %s939
          %942 = dma.hbm_to_vmem [thread:$0]  %s937, 32, %s940, [#allocation13]
        $region32: #{tpu_custom_call.1} parent=11 // pred_fallthru
          _
        // Predicated region
        $region33: #{tpu_custom_call.1} parent=11 // pred_check
          %p943 = pneg %p282
        $region34: #{tpu_custom_call.1} parent=11 // pred_check_branch
          %945 = sbr.rel (%p943) target = $region36
        $region35: #{tpu_custom_call.1} parent=11 // pred_region
          %s947 = ssub.s32 256, 256
          %948 = vsyncadd [#allocation16], %s947
          %s949 = sshll.u32 [#allocation17], 4
          %s950 = int_to_ptr.vmem [resolvable:$true] %s949
          %955 = dma.hbm_to_vmem [thread:$0]  %s13, 256, %s950, [#allocation16], 64, 64, 4
        $region36: #{tpu_custom_call.1} parent=11 // pred_fallthru
          _
        // Predicated region
        $region37: #{tpu_custom_call.1} parent=11 // pred_check
          %p956 = pneg %p303
        $region38: #{tpu_custom_call.1} parent=11 // pred_check_branch
          %958 = sbr.rel (%p956) target = $region40
        $region39: #{tpu_custom_call.1} parent=11 // pred_region
          _
        $region40: #{tpu_custom_call.1} parent=11 // pred_fallthru
          _
        // Predicated region
        $region41: #{tpu_custom_call.1} parent=11 // pred_check
          %p959 = pneg %p324
        $region42: #{tpu_custom_call.1} parent=11 // pred_check_branch
          %961 = sbr.rel (%p959) target = $region44
        $region43: #{tpu_custom_call.1} parent=11 // pred_region
          _
        $region44: #{tpu_custom_call.1} parent=11 // pred_fallthru
          _
        // Predicated region
        $region45: #{tpu_custom_call.1} parent=11 // pred_check
          %p962 = pneg %p345
        $region46: #{tpu_custom_call.1} parent=11 // pred_check_branch
          %964 = sbr.rel (%p962) target = $region48
        $region47: #{tpu_custom_call.1} parent=11 // pred_region
          %s966 = ssub.s32 16, 16
          %967 = vsyncadd [#allocation19], %s966
          %s969 = sshll.u32 [#allocation18], 4
          %s970 = int_to_ptr.vmem [resolvable:$true] %s969
          %972 = dma.hbm_to_vmem [thread:$0]  %s19, 16, %s970, [#allocation19]
        $region48: #{tpu_custom_call.1} parent=11 // pred_fallthru
          _
        // Predicated region
        $region49: #{tpu_custom_call.1} parent=11 // pred_check
          %p973 = pneg %p366
        $region50: #{tpu_custom_call.1} parent=11 // pred_check_branch
          %975 = sbr.rel (%p973) target = $region52
        $region51: #{tpu_custom_call.1} parent=11 // pred_region
          _
        $region52: #{tpu_custom_call.1} parent=11 // pred_fallthru
          _
        // Predicated region
        $region53: #{tpu_custom_call.1} parent=11 // pred_check
          %p976 = pneg %p387
        $region54: #{tpu_custom_call.1} parent=11 // pred_check_branch
          %978 = sbr.rel (%p976) target = $region56
        $region55: #{tpu_custom_call.1} parent=11 // pred_region
          %s980 = ssub.s32 256, 256
          %981 = vsyncadd [#allocation19], %s980
          %s982 = sshll.u32 [#allocation20], 4
          %s983 = int_to_ptr.vmem [resolvable:$true] %s982
          %988 = dma.hbm_to_vmem [thread:$0]  %s23, 256, %s983, [#allocation19], 64, 64, 4
        $region56: #{tpu_custom_call.1} parent=11 // pred_fallthru
          _
        // Predicated region
        $region57: #{tpu_custom_call.1} parent=11 // pred_check
          %p989 = pneg %p408
        $region58: #{tpu_custom_call.1} parent=11 // pred_check_branch
          %991 = sbr.rel (%p989) target = $region60
        $region59: #{tpu_custom_call.1} parent=11 // pred_region
          %s993 = ssub.s32 16, 16
          %994 = vsyncadd [#allocation22], %s993
          %s996 = sshll.u32 [#allocation21], 4
          %s997 = int_to_ptr.vmem [resolvable:$true] %s996
          %999 = dma.hbm_to_vmem [thread:$0]  %s25, 16, %s997, [#allocation22]
        $region60: #{tpu_custom_call.1} parent=11 // pred_fallthru
          _
        // Predicated region
        $region61: #{tpu_custom_call.1} parent=11 // pred_check
          %p1000 = pneg %p429
        $region62: #{tpu_custom_call.1} parent=11 // pred_check_branch
          %1002 = sbr.rel (%p1000) target = $region64
        $region63: #{tpu_custom_call.1} parent=11 // pred_region
          %s1004 = ssub.s32 256, 256
          %1005 = vsyncadd [#allocation22], %s1004
          %s1006 = sshll.u32 [#allocation23], 4
          %s1007 = int_to_ptr.vmem [resolvable:$true] %s1006
          %1012 = dma.hbm_to_vmem [thread:$0]  %s27, 256, %s1007, [#allocation22], 64, 64, 4
        $region64: #{tpu_custom_call.1} parent=11 // pred_fallthru
          _
        // Predicated region
        $region65: #{tpu_custom_call.1} parent=11 // pred_check
          %p1013 = pneg %p450
        $region66: #{tpu_custom_call.1} parent=11 // pred_check_branch
          %1015 = sbr.rel (%p1013) target = $region68
        $region67: #{tpu_custom_call.1} parent=11 // pred_region
          %s1017 = ssub.s32 16, 16
          %1018 = vsyncadd [#allocation25], %s1017
          %s1020 = sshll.u32 [#allocation24], 4
          %s1021 = int_to_ptr.vmem [resolvable:$true] %s1020
          %1023 = dma.hbm_to_vmem [thread:$0]  %s29, 16, %s1021, [#allocation25]
        $region68: #{tpu_custom_call.1} parent=11 // pred_fallthru
          _
        // Predicated region
        $region69: #{tpu_custom_call.1} parent=11 // pred_check
          %p1024 = pneg %p471
        $region70: #{tpu_custom_call.1} parent=11 // pred_check_branch
          %1026 = sbr.rel (%p1024) target = $region72
        $region71: #{tpu_custom_call.1} parent=11 // pred_region
          %s1028 = ssub.s32 256, 256
          %1029 = vsyncadd [#allocation25], %s1028
          %s1030 = sshll.u32 [#allocation26], 4
          %s1031 = int_to_ptr.vmem [resolvable:$true] %s1030
          %1036 = dma.hbm_to_vmem [thread:$0]  %s31, 256, %s1031, [#allocation25], 64, 64, 4
        $region72: #{tpu_custom_call.1} parent=11 // pred_fallthru
          _
        // Predicated region
        $region73: #{tpu_custom_call.1} parent=11 // pred_check
          %p1037 = pneg %p492
        $region74: #{tpu_custom_call.1} parent=11 // pred_check_branch
          %1039 = sbr.rel (%p1037) target = $region76
        $region75: #{tpu_custom_call.1} parent=11 // pred_region
          %s1041 = ssub.s32 256, 256
          %1042 = vsyncadd [#allocation28], %s1041
          %s1043 = sshll.u32 [#allocation27], 4
          %s1044 = int_to_ptr.vmem [resolvable:$true] %s1043
          %1049 = dma.hbm_to_vmem [thread:$0]  %s33, 256, %s1044, [#allocation28], 64, 64, 4
        $region76: #{tpu_custom_call.1} parent=11 // pred_fallthru
          _
        // Predicated region
        $region77: #{tpu_custom_call.1} parent=11 // pred_check
          %p1050 = pneg %p513
        $region78: #{tpu_custom_call.1} parent=11 // pred_check_branch
          %1052 = sbr.rel (%p1050) target = $region80
        $region79: #{tpu_custom_call.1} parent=11 // pred_region
          %s1054 = ssub.s32 16, 16
          %1055 = vsyncadd [#allocation28], %s1054
          %s1057 = sshll.u32 [#allocation29], 4
          %s1058 = int_to_ptr.vmem [resolvable:$true] %s1057
          %1060 = dma.hbm_to_vmem [thread:$0]  %s35, 16, %s1058, [#allocation28]
        $region80: #{tpu_custom_call.1} parent=11 // pred_fallthru
          _
        // Predicated region
        $region81: #{tpu_custom_call.1} parent=11 // pred_check
          %p1061 = pneg %p534
        $region82: #{tpu_custom_call.1} parent=11 // pred_check_branch
          %1063 = sbr.rel (%p1061) target = $region84
        $region83: #{tpu_custom_call.1} parent=11 // pred_region
          _
        $region84: #{tpu_custom_call.1} parent=11 // pred_fallthru
          _
        // Predicated region
        $region85: #{tpu_custom_call.1} parent=11 // pred_check
          %p1064 = pneg %p555
        $region86: #{tpu_custom_call.1} parent=11 // pred_check_branch
          %1066 = sbr.rel (%p1064) target = $region88
        $region87: #{tpu_custom_call.1} parent=11 // pred_region
          _
        $region88: #{tpu_custom_call.1} parent=11 // pred_fallthru
          _
        // Predicated region
        $region89: #{tpu_custom_call.1} parent=11 // pred_check
          %p1067 = pneg %p576
        $region90: #{tpu_custom_call.1} parent=11 // pred_check_branch
          %1069 = sbr.rel (%p1067) target = $region92
        $region91: #{tpu_custom_call.1} parent=11 // pred_region
          %s1071 = ssub.s32 256, 256
          %1072 = vsyncadd [#allocation31], %s1071
          %s1073 = sshll.u32 [#allocation30], 4
          %s1074 = int_to_ptr.vmem [resolvable:$true] %s1073
          %1079 = dma.hbm_to_vmem [thread:$0]  %s41, 256, %s1074, [#allocation31], 64, 64, 4
        $region92: #{tpu_custom_call.1} parent=11 // pred_fallthru
          _
        // Predicated region
        $region93: #{tpu_custom_call.1} parent=11 // pred_check
          %p1080 = pneg %p597
        $region94: #{tpu_custom_call.1} parent=11 // pred_check_branch
          %1082 = sbr.rel (%p1080) target = $region96
        $region95: #{tpu_custom_call.1} parent=11 // pred_region
          %s1084 = ssub.s32 256, 256
          %1085 = vsyncadd [#allocation31], %s1084
          %s1086 = sshll.u32 [#allocation32], 4
          %s1087 = int_to_ptr.vmem [resolvable:$true] %s1086
          %1092 = dma.hbm_to_vmem [thread:$0]  %s43, 256, %s1087, [#allocation31], 64, 64, 4
        $region96: #{tpu_custom_call.1} parent=11 // pred_fallthru
          _
        // Predicated region
        $region97: #{tpu_custom_call.1} parent=11 // pred_check
          %p1093 = pneg %p618
        $region98: #{tpu_custom_call.1} parent=11 // pred_check_branch
          %1095 = sbr.rel (%p1093) target = $region100
        $region99: #{tpu_custom_call.1} parent=11 // pred_region
          _
        $region100: #{tpu_custom_call.1} parent=11 // pred_fallthru
          _
        // Predicated region
        $region101: #{tpu_custom_call.1} parent=11 // pred_check
          %p1096 = pneg %p639
        $region102: #{tpu_custom_call.1} parent=11 // pred_check_branch
          %1098 = sbr.rel (%p1096) target = $region104
        $region103: #{tpu_custom_call.1} parent=11 // pred_region
          %s1100 = ssub.s32 256, 256
          %1101 = vsyncadd [#allocation34], %s1100
          %s1102 = sshll.u32 [#allocation33], 4
          %s1103 = int_to_ptr.vmem [resolvable:$true] %s1102
          %1108 = dma.hbm_to_vmem [thread:$0]  %s47, 256, %s1103, [#allocation34], 64, 64, 4
        $region104: #{tpu_custom_call.1} parent=11 // pred_fallthru
          _
        // Predicated region
        $region105: #{tpu_custom_call.1} parent=11 // pred_check
          %p1109 = pneg %p660
        $region106: #{tpu_custom_call.1} parent=11 // pred_check_branch
          %1111 = sbr.rel (%p1109) target = $region108
        $region107: #{tpu_custom_call.1} parent=11 // pred_region
          _
        $region108: #{tpu_custom_call.1} parent=11 // pred_fallthru
          _
        // Predicated region
        $region109: #{tpu_custom_call.1} parent=11 // pred_check
          %p1112 = pneg %p681
        $region110: #{tpu_custom_call.1} parent=11 // pred_check_branch
          %1114 = sbr.rel (%p1112) target = $region112
        $region111: #{tpu_custom_call.1} parent=11 // pred_region
          _
        $region112: #{tpu_custom_call.1} parent=11 // pred_fallthru
          _
        // Predicated region
        $region113: #{tpu_custom_call.1} parent=11 // pred_check
          %p1115 = pneg %p702
        $region114: #{tpu_custom_call.1} parent=11 // pred_check_branch
          %1117 = sbr.rel (%p1115) target = $region116
        $region115: #{tpu_custom_call.1} parent=11 // pred_region
          _
        $region116: #{tpu_custom_call.1} parent=11 // pred_fallthru
          _
      $region12: #{tpu_custom_call.1} parent=5 // pred_fallthru
        _
      %p1118 = scmp.lt.s32.totalorder %s91, 2
      // Predicated region
      $region117: #{tpu_custom_call.1} parent=5 // pred_check
        %p1119 = pneg %p1118
      $region118: #{tpu_custom_call.1} parent=5 // pred_check_branch
        %1121 = sbr.rel (%p1119) target = $region120
      $region119: #{tpu_custom_call.1} parent=5 // pred_region
        // Predicated region
        $region121: #{tpu_custom_call.1} parent=119 // pred_check
          %p1122 = pneg %p255
        $region122: #{tpu_custom_call.1} parent=119 // pred_check_branch
          %1124 = sbr.rel (%p1122) target = $region124
        $region123: #{tpu_custom_call.1} parent=119 // pred_region
          %s1125 = sand.u32 %s91, 1
          %s1126 = scalar_lea.sflag [#allocation16], %s1125
          %s1127 = sand.u32 %s245, 1
          %s1128 = smul.addr %s1127, 8
          %s1129 = scalar_lea.vmem [#allocation15], %s1128
          %s1130 = smul.u32 2, %s98
          %s1132 = ssub.s32 128, 128
          %1133 = vsyncadd %s1126, %s1132
          %s1134 = smul.addr %s1130, 2
          %s1135 = sadd.s32 %s99, %s1134
          %s1136 = smul.addr %s1135, 64
          %s1137 = scalar_lea.hbm %s11, %s1136
          %s1138 = sshll.u32 %s1129, 4
          %s1139 = int_to_ptr.vmem [resolvable:$true] %s1138
          %1144 = dma.hbm_to_vmem [thread:$0]  %s1137, 128, %s1139, %s1126, 128, 64, 4
        $region124: #{tpu_custom_call.1} parent=119 // pred_fallthru
          _
      $region120: #{tpu_custom_call.1} parent=5 // pred_fallthru
        _
      %p1145 = scmp.le.s32.totalorder 1, %s91
      %p1146 = scmp.lt.s32.totalorder %s91, 3
      %p1147 = pnand %p1145, %p1146
      %p1148 = pneg %p1147
      // Predicated region
      $region125: #{tpu_custom_call.1} parent=5 // pred_check
        _
      $region126: #{tpu_custom_call.1} parent=5 // pred_check_branch
        %1150 = sbr.rel (%p1147) target = $region128
      $region127: #{tpu_custom_call.1} parent=5 // pred_region
        %s1151 = ssub.s32 %s91, 1
        // Predicated region
        $region129: #{tpu_custom_call.1} parent=127 // pred_check
          %p1152 = pneg %p129
        $region130: #{tpu_custom_call.1} parent=127 // pred_check_branch
          %1154 = sbr.rel (%p1152) target = $region132
        $region131: #{tpu_custom_call.1} parent=127 // pred_region
          %1155 = dma.done [#allocation7], 32
        $region132: #{tpu_custom_call.1} parent=127 // pred_fallthru
          _
        // Predicated region
        $region133: #{tpu_custom_call.1} parent=127 // pred_check
          %p1156 = pneg %p155
        $region134: #{tpu_custom_call.1} parent=127 // pred_check_branch
          %1158 = sbr.rel (%p1156) target = $region136
        $region135: #{tpu_custom_call.1} parent=127 // pred_region
          %1159 = dma.done [#allocation10], 32
        $region136: #{tpu_custom_call.1} parent=127 // pred_fallthru
          _
        // Predicated region
        $region137: #{tpu_custom_call.1} parent=127 // pred_check
          %p1160 = pneg %p181
        $region138: #{tpu_custom_call.1} parent=127 // pred_check_branch
          %1162 = sbr.rel (%p1160) target = $region140
        $region139: #{tpu_custom_call.1} parent=127 // pred_region
          %1163 = dma.done [#allocation10], 256
        $region140: #{tpu_custom_call.1} parent=127 // pred_fallthru
          _
        // Predicated region
        $region141: #{tpu_custom_call.1} parent=127 // pred_check
          %p1164 = pneg %p207
        $region142: #{tpu_custom_call.1} parent=127 // pred_check_branch
          %1166 = sbr.rel (%p1164) target = $region144
        $region143: #{tpu_custom_call.1} parent=127 // pred_region
          %1167 = dma.done [#allocation13], 32
        $region144: #{tpu_custom_call.1} parent=127 // pred_fallthru
          _
        // Predicated region
        $region145: #{tpu_custom_call.1} parent=127 // pred_check
          %p1168 = pneg %p233
        $region146: #{tpu_custom_call.1} parent=127 // pred_check_branch
          %1170 = sbr.rel (%p1168) target = $region148
        $region147: #{tpu_custom_call.1} parent=127 // pred_region
          %1171 = dma.done [#allocation13], 32
        $region148: #{tpu_custom_call.1} parent=127 // pred_fallthru
          _
        %s1172 = sand.u32 %s96, 1
        %s1173 = scalar_lea.sflag [#allocation16], %s1172
        %s1174 = sand.u32 %s248, 1
        %s1175 = smul.addr %s1174, 8
        %s1176 = scalar_lea.vmem [#allocation15], %s1175
        // Predicated region
        $region149: #{tpu_custom_call.1} parent=127 // pred_check
          %p1177 = pneg %p261
        $region150: #{tpu_custom_call.1} parent=127 // pred_check_branch
          %1179 = sbr.rel (%p1177) target = $region152
        $region151: #{tpu_custom_call.1} parent=127 // pred_region
          %1180 = dma.done %s1173, 128
        $region152: #{tpu_custom_call.1} parent=127 // pred_fallthru
          _
        // Predicated region
        $region153: #{tpu_custom_call.1} parent=127 // pred_check
          %p1181 = pneg %p282
        $region154: #{tpu_custom_call.1} parent=127 // pred_check_branch
          %1183 = sbr.rel (%p1181) target = $region156
        $region155: #{tpu_custom_call.1} parent=127 // pred_region
          %1184 = dma.done [#allocation16], 256
        $region156: #{tpu_custom_call.1} parent=127 // pred_fallthru
          _
        // Predicated region
        $region157: #{tpu_custom_call.1} parent=127 // pred_check
          %p1185 = pneg %p345
        $region158: #{tpu_custom_call.1} parent=127 // pred_check_branch
          %1187 = sbr.rel (%p1185) target = $region160
        $region159: #{tpu_custom_call.1} parent=127 // pred_region
          %1188 = dma.done [#allocation19], 16
        $region160: #{tpu_custom_call.1} parent=127 // pred_fallthru
          _
        // Predicated region
        $region161: #{tpu_custom_call.1} parent=127 // pred_check
          %p1189 = pneg %p387
        $region162: #{tpu_custom_call.1} parent=127 // pred_check_branch
          %1191 = sbr.rel (%p1189) target = $region164
        $region163: #{tpu_custom_call.1} parent=127 // pred_region
          %1192 = dma.done [#allocation19], 256
        $region164: #{tpu_custom_call.1} parent=127 // pred_fallthru
          _
        // Predicated region
        $region165: #{tpu_custom_call.1} parent=127 // pred_check
          %p1193 = pneg %p408
        $region166: #{tpu_custom_call.1} parent=127 // pred_check_branch
          %1195 = sbr.rel (%p1193) target = $region168
        $region167: #{tpu_custom_call.1} parent=127 // pred_region
          %1196 = dma.done [#allocation22], 16
        $region168: #{tpu_custom_call.1} parent=127 // pred_fallthru
          _
        // Predicated region
        $region169: #{tpu_custom_call.1} parent=127 // pred_check
          %p1197 = pneg %p429
        $region170: #{tpu_custom_call.1} parent=127 // pred_check_branch
          %1199 = sbr.rel (%p1197) target = $region172
        $region171: #{tpu_custom_call.1} parent=127 // pred_region
          %1200 = dma.done [#allocation22], 256
        $region172: #{tpu_custom_call.1} parent=127 // pred_fallthru
          _
        // Predicated region
        $region173: #{tpu_custom_call.1} parent=127 // pred_check
          %p1201 = pneg %p450
        $region174: #{tpu_custom_call.1} parent=127 // pred_check_branch
          %1203 = sbr.rel (%p1201) target = $region176
        $region175: #{tpu_custom_call.1} parent=127 // pred_region
          %1204 = dma.done [#allocation25], 16
        $region176: #{tpu_custom_call.1} parent=127 // pred_fallthru
          _
        // Predicated region
        $region177: #{tpu_custom_call.1} parent=127 // pred_check
          %p1205 = pneg %p471
        $region178: #{tpu_custom_call.1} parent=127 // pred_check_branch
          %1207 = sbr.rel (%p1205) target = $region180
        $region179: #{tpu_custom_call.1} parent=127 // pred_region
          %1208 = dma.done [#allocation25], 256
        $region180: #{tpu_custom_call.1} parent=127 // pred_fallthru
          _
        // Predicated region
        $region181: #{tpu_custom_call.1} parent=127 // pred_check
          %p1209 = pneg %p492
        $region182: #{tpu_custom_call.1} parent=127 // pred_check_branch
          %1211 = sbr.rel (%p1209) target = $region184
        $region183: #{tpu_custom_call.1} parent=127 // pred_region
          %1212 = dma.done [#allocation28], 256
        $region184: #{tpu_custom_call.1} parent=127 // pred_fallthru
          _
        // Predicated region
        $region185: #{tpu_custom_call.1} parent=127 // pred_check
          %p1213 = pneg %p513
        $region186: #{tpu_custom_call.1} parent=127 // pred_check_branch
          %1215 = sbr.rel (%p1213) target = $region188
        $region187: #{tpu_custom_call.1} parent=127 // pred_region
          %1216 = dma.done [#allocation28], 16
        $region188: #{tpu_custom_call.1} parent=127 // pred_fallthru
          _
        // Predicated region
        $region189: #{tpu_custom_call.1} parent=127 // pred_check
          %p1217 = pneg %p576
        $region190: #{tpu_custom_call.1} parent=127 // pred_check_branch
          %1219 = sbr.rel (%p1217) target = $region192
        $region191: #{tpu_custom_call.1} parent=127 // pred_region
          %1220 = dma.done [#allocation31], 256
        $region192: #{tpu_custom_call.1} parent=127 // pred_fallthru
          _
        // Predicated region
        $region193: #{tpu_custom_call.1} parent=127 // pred_check
          %p1221 = pneg %p597
        $region194: #{tpu_custom_call.1} parent=127 // pred_check_branch
          %1223 = sbr.rel (%p1221) target = $region196
        $region195: #{tpu_custom_call.1} parent=127 // pred_region
          %1224 = dma.done [#allocation31], 256
        $region196: #{tpu_custom_call.1} parent=127 // pred_fallthru
          _
        // Predicated region
        $region197: #{tpu_custom_call.1} parent=127 // pred_check
          %p1225 = pneg %p639
        $region198: #{tpu_custom_call.1} parent=127 // pred_check_branch
          %1227 = sbr.rel (%p1225) target = $region200
        $region199: #{tpu_custom_call.1} parent=127 // pred_region
          %1228 = dma.done [#allocation34], 256
        $region200: #{tpu_custom_call.1} parent=127 // pred_fallthru
          _
        %p1229 = pneg %p129
        %p1230 = pneg %p126
        %p1231 = pneg %p155
        %p1232 = pneg %p152
        %p1233 = pneg %p181
        %p1234 = pneg %p178
        %p1235 = pneg %p207
        %p1236 = pneg %p204
        %p1237 = pneg %p233
        %p1238 = pneg %p230
        %s1239 = sand.u32 %s96, 1
        %s1240 = scalar_lea.sflag [#allocation16], %s1239
        %s1241 = sand.u32 %s248, 1
        %s1242 = smul.addr %s1241, 8
        %s1243 = scalar_lea.vmem [#allocation15], %s1242
        %p1244 = pneg %p261
        %p1245 = pneg %p258
        %p1246 = pneg %p282
        %p1247 = pneg %p279
        %p1248 = pneg %p303
        %p1249 = pneg %p300
        %p1250 = pneg %p324
        %p1251 = pneg %p321
        %p1252 = pneg %p345
        %p1253 = pneg %p342
        %p1254 = pneg %p366
        %p1255 = pneg %p363
        %p1256 = pneg %p387
        %p1257 = pneg %p384
        %p1258 = pneg %p408
        %p1259 = pneg %p405
        %p1260 = pneg %p429
        %p1261 = pneg %p426
        %p1262 = pneg %p450
        %p1263 = pneg %p447
        %p1264 = pneg %p471
        %p1265 = pneg %p468
        %p1266 = pneg %p492
        %p1267 = pneg %p489
        %p1268 = pneg %p513
        %p1269 = pneg %p510
        %p1270 = pneg %p534
        %p1271 = pneg %p531
        %p1272 = pneg %p555
        %p1273 = pneg %p552
        %p1274 = pneg %p576
        %p1275 = pneg %p573
        %p1276 = pneg %p597
        %p1277 = pneg %p594
        %p1278 = pneg %p618
        %p1279 = pneg %p615
        %p1280 = pneg %p639
        %p1281 = pneg %p636
        %p1282 = pneg %p660
        %p1283 = pneg %p657
        %p1284 = pneg %p681
        %p1285 = pneg %p678
        %p1286 = pneg %p702
        %p1287 = pneg %p699
        %p1288 = pneg %p728
        %p1289 = pneg %p725
        %p1290 = pneg %p754
        %p1291 = pneg %p751
        %p1292 = pneg %p780
        %p1293 = pneg %p777
        %p1294 = pneg %p808
        %p1295 = pneg %p805
        %s1296 = sand.u32 %s96, 1
        %s1297 = scalar_lea.sflag [#allocation40], %s1296
        %s1298 = sand.u32 %s795, 1
        %s1299 = smul.addr %s1298, 8
        %s1300 = scalar_lea.vmem [#allocation39], %s1299
        %p1301 = pneg %p834
        %p1302 = pneg %p831
        %p1303 = scmp.lt.s32.totalorder %s100, 0
        %s1304 = scalar_select %p1303, %s100, 0
        %s1305 = smul.addr %s1304, 2
        %s1306 = scalar_lea.vmem %s63, %s1305
        %p1307 = pneg %p860
        %p1308 = pneg %p857
        %s1309 = smul.u32 2, %s100
        %s1310 = smul.u32 2, %s100
        %s1311 = smul.u32 2, %s100
        %p1312 = scmp.lt.s32.totalorder %s100, 0
        %s1313 = scalar_select %p1312, %s100, 0
        %s1314 = smul.addr %s1313, 2
        %s1315 = scalar_lea.vmem %s63, %s1314
        %p1317 = scmp.eq.s32.totalorder %s101, 0
        // Predicated region
        $region201: #{tpu_custom_call.1} parent=127 // pred_check
          %p1318 = pneg %p1317
        $region202: #{tpu_custom_call.1} parent=127 // pred_check_branch
          %1320 = sbr.rel (%p1318) target = $region204
        $region203: #{tpu_custom_call.1} parent=127 // pred_region
          %v1321 = vld [vmem:[#allocation6] sm:$0x3]
          %v1322 = vld [vmem:[#allocation9] sm:$0x3]
          %v1323 = vld [vmem:[#allocation11] sm:$0xff]
          %v1324 = vld [vmem:[#allocation11 + $0x8] sm:$0xff]
          %v1325 = vpack.c.bf16 %v1321, %v1321
          %v1326 = vld [vmem:[#allocation17] sm:$0xf]
          %v1327 = vld [vmem:[#allocation17 + $0x4] sm:$0xf]
          %v1328 = vld [vmem:[#allocation17 + $0x8] sm:$0xf]
          %v1329 = vld [vmem:[#allocation17 + $0xc] sm:$0xf]
          %v1330 = vpack.c.bf16 %v1322, %v1322
          %v1331 = vld [vmem:[%s15] sm:$0xf]
          %v1332 = vld [vmem:[%s15 + $0x4] sm:$0xf]
          %v1333 = vld [vmem:[%s15 + $0x8] sm:$0xf]
          %v1334 = vld [vmem:[%s15 + $0xc] sm:$0xf]
          %v1339 = vunpack.c.l.b16 %v1331
          %v1340 = vunpack.c.l.b16 %v1332
          %v1341 = vunpack.c.l.b16 %v1333
          %v1342 = vunpack.c.l.b16 %v1334
          %v1343 = vpack.c.b16 %v1340, %v1339
          %v1344 = vpack.c.b16 %v1342, %v1341
          %vm1347 = vcmask 261120
          %v1349 = vsel %vm1347, %v1330, 0
          %1351 = vmatprep.subr.bf16.mxu0 0
          %1352 = vmatpush1.bf16.msra.mxu0 0
          %1353 = vmatprep.subr.bf16.mxu0 0
          %1354 = vmatpush1.bf16.msra.mxu0 0
          %1355 = vmatprep.subr.bf16.mxu0 0
          %1356 = vmatpush1.bf16.msra.mxu0 0
          %1357 = vmatprep.subr.bf16.mxu0 0
          %1358 = vmatpush1.bf16.msra.mxu0 0
          %1359 = vmatprep.subr.bf16.mxu0 0
          %1360 = vmatpush1.bf16.msra.mxu0 0
          %1361 = vmatprep.subr.bf16.mxu0 0
          %1362 = vmatpush1.bf16.msra.mxu0 0
          %1363 = vmatprep.subr.bf16.mxu0 0
          %1364 = vmatpush1.bf16.msra.mxu0 %v1344
          %1365 = vmatprep.subr.bf16.mxu0 0
          %1366 = vmatpush1.bf16.msra.mxu0 %v1343
          %1367 = vmatprep.subr.bf16.mxu0 0
          %1368 = vmatpush2.bf16.msra.mxu0 0
          %1369 = vmatprep.subr.bf16.mxu0 0
          %1370 = vmatpush2.bf16.msra.mxu0 0
          %1371 = vmatprep.subr.bf16.mxu0 0
          %1372 = vmatpush2.bf16.msra.mxu0 0
          %1373 = vmatprep.subr.bf16.mxu0 0
          %1374 = vmatpush2.bf16.msra.mxu0 0
          %1375 = vmatprep.subr.bf16.mxu0 0
          %1376 = vmatpush2.bf16.msra.mxu0 0
          %1377 = vmatprep.subr.bf16.mxu0 0
          %1378 = vmatpush2.bf16.msra.mxu0 0
          %1379 = vmatprep.subr.bf16.mxu0 0
          %1380 = vmatpush2.bf16.msra.mxu0 0
          %1381 = vmatprep.subr.bf16.mxu0 0
          %1382 = vmatpush2.bf16.msra.mxu0 0
          %1383 = vmatprep.mubr.bf16.mxu0 0
          %1384 = vmatmul.mubr.bf16.gmra.mxu0 %v1349
          %v1385 = vpop.f32.mrf.mxu0
          %v1386 = vadd.f32 0.0, %v1385
          %v1387 = vpop.f32.mrf.mxu0
          %v1388 = vpop.f32.mrf.mxu0
          %v1389 = vpop.f32.mrf.mxu0
          %1390 = vdwg.mxu0
          %v1395 = vunpack.c.l.b16 %v1326
          %v1396 = vunpack.c.l.b16 %v1327
          %v1397 = vunpack.c.l.b16 %v1328
          %v1398 = vunpack.c.l.b16 %v1329
          %v1399 = vpack.c.b16 %v1396, %v1395
          %v1400 = vpack.c.b16 %v1398, %v1397
          %v1404 = vsel %vm1347, %v1325, 0
          %1406 = vmatprep.subr.bf16.mxu0 0
          %1407 = vmatpush1.bf16.msra.mxu0 0
          %1408 = vmatprep.subr.bf16.mxu0 0
          %1409 = vmatpush1.bf16.msra.mxu0 0
          %1410 = vmatprep.subr.bf16.mxu0 0
          %1411 = vmatpush1.bf16.msra.mxu0 0
          %1412 = vmatprep.subr.bf16.mxu0 0
          %1413 = vmatpush1.bf16.msra.mxu0 0
          %1414 = vmatprep.subr.bf16.mxu0 0
          %1415 = vmatpush1.bf16.msra.mxu0 0
          %1416 = vmatprep.subr.bf16.mxu0 0
          %1417 = vmatpush1.bf16.msra.mxu0 0
          %1418 = vmatprep.subr.bf16.mxu0 0
          %1419 = vmatpush1.bf16.msra.mxu0 %v1400
          %1420 = vmatprep.subr.bf16.mxu0 0
          %1421 = vmatpush1.bf16.msra.mxu0 %v1399
          %1422 = vmatprep.subr.bf16.mxu0 0
          %1423 = vmatpush2.bf16.msra.mxu0 0
          %1424 = vmatprep.subr.bf16.mxu0 0
          %1425 = vmatpush2.bf16.msra.mxu0 0
          %1426 = vmatprep.subr.bf16.mxu0 0
          %1427 = vmatpush2.bf16.msra.mxu0 0
          %1428 = vmatprep.subr.bf16.mxu0 0
          %1429 = vmatpush2.bf16.msra.mxu0 0
          %1430 = vmatprep.subr.bf16.mxu0 0
          %1431 = vmatpush2.bf16.msra.mxu0 0
          %1432 = vmatprep.subr.bf16.mxu0 0
          %1433 = vmatpush2.bf16.msra.mxu0 0
          %1434 = vmatprep.subr.bf16.mxu0 0
          %1435 = vmatpush2.bf16.msra.mxu0 0
          %1436 = vmatprep.subr.bf16.mxu0 0
          %1437 = vmatpush2.bf16.msra.mxu0 0
          %1438 = vmatprep.mubr.bf16.mxu0 0
          %1439 = vmatmul.mubr.bf16.gmra.mxu0 %v1404
          %v1440 = vpop.f32.mrf.mxu0
          %v1441 = vadd.f32 %v1386, %v1440
          %v1442 = vpop.f32.mrf.mxu0
          %v1443 = vpop.f32.mrf.mxu0
          %v1444 = vpop.f32.mrf.mxu0
          %1445 = vdwg.mxu0
          %v1446 = vld [vmem:[%s17] sm:$0x1]
          %v1448 = vlaneseq
          %v1449 = vshrl.u32 %v1448, 7
          %v1450 = vsub.s32 0, %v1449
          %v1451 = vrot.slane %v1446, %v1450
          %v1453 = vadd.f32 %v1441, %v1451
          %v1456 = vunpack.c.l.s4 1966171168
          %v1457 = vunpack.c.0.s8 %v1456
          %v1458 = vlaneseq
          %v1459 = vshrl.u32 %v1458, 7
          %v1460 = vsub.s32 %v1457, %v1459
          %v1461 = vrot.slane %v1453, %v1460
          %v1462 = vcombine.high %v1461, %v1461
          %v1464 = vunpack.c.l.s4 1966171168
          %v1465 = vunpack.c.0.s8 %v1464
          %v1466 = vlaneseq
          %v1467 = vshrl.u32 %v1466, 7
          %v1468 = vsub.s32 %v1465, %v1467
          %v1469 = vrot.slane %v1461, %v1468
          %v1471 = vunpack.c.l.s4 1966171168
          %v1472 = vunpack.c.0.s8 %v1471
          %v1473 = vlaneseq
          %v1474 = vshrl.u32 %v1473, 7
          %v1475 = vsub.s32 %v1472, %v1474
          %v1476 = vrot.slane %v1462, %v1475
          %v1477 = vlaneseq
          %v1478 = vshrl.u32 %v1477, 7
          %v1479 = vsub.s32 0, %v1478
          %v1480 = vrot.slane %v1469, %v1479
          %v1481 = vlaneseq
          %v1482 = vshrl.u32 %v1481, 7
          %v1483 = vsub.s32 0, %v1482
          %v1484 = vrot.slane %v1476, %v1483
          %v1487 = vmul.f32 %v1480, %v1323
          %v1488 = vmul.f32 %v1484, %v1324
          %v1489 = vld [vmem:[#allocation18] sm:$0x1]
          %v1491 = vlaneseq
          %v1492 = vshrl.u32 %v1491, 7
          %v1493 = vsub.s32 0, %v1492
          %v1494 = vrot.slane %v1489, %v1493
          %v1496 = vmul.f32 %v1487, %v1494
          %v1497 = vmul.f32 %v1488, %v1494
          %v1498 = vsel %vm1347, %v1496, 0.0
          %1499 = vadd.xlane.f32.xlu0 %v1498
          %v1500 = vpop.xlane.xlu0 %1499
          %v1501 = vsel %vm1347, %v1497, 0.0
          %1502 = vadd.xlane.f32.xlu0 %v1501
          %v1503 = vpop.xlane.xlu0 %1502
          %s1504 = sld [smem:[#allocation4]]
          %v1505 = vstv %s1504
          %v1506 = vadd.f32 %v1500, %v1505
          %v1507 = vadd.f32 %v1503, %v1505
          %v1508 = vld [vmem:[#allocation12] sm:$0x3]
          %vm1509 = vcmp.gt.f32.partialorder %v1508, 0.5
          %v1512 = vlaneseq
          %v1513 = vand.u32 %v1512, 127
          %v1514 = vlaneseq
          %v1515 = vshrl.u32 %v1514, 7
          %v1516 = vsub.s32 %v1513, %v1515
          %v1517 = vrot.slane %v1506, %v1516
          %v1518 = vlaneseq
          %v1519 = vshrl.u32 %v1518, 7
          %v1520 = vsub.s32 %v1513, %v1519
          %v1521 = vrot.slane %v1507, %v1520
          %vm1522 = vcmask 1041409
          %v1523 = vsel %vm1522, %v1521, %v1517
          %v1525 = vsel %vm1509, %v1523, -1e+30
          %vm1526 = vcmask 58368
          %v1527 = vsel %vm1526, %v1525, -inf
          %1528 = vmax.xlane.f32.xlu0 %v1527
          %v1529 = vpop.xlane.xlu0 %1528
          %v1530 = vsub.f32 %v1525, %v1529
          %v1531 = vmul.f32 %v1530, 1.442695
          %v1532 = vpow.pop %v1531
          %v1533 = vsel %vm1526, %v1532, 0.0
          %1534 = vadd.xlane.f32.xlu0 %v1533
          %v1535 = vpop.xlane.xlu0 %1534
          %v1536 = vrcp.pop %v1535
          %v1537 = vmul.f32 %v1532, %v1536
          %v1538 = vlaneseq
          %v1539 = vshrl.u32 %v1538, 7
          %v1540 = vsub.s32 0, %v1539
          %v1541 = vrot.slane %v1537, %v1540
          %1543 = vbcast.lane.b32.xlu0 %v1541, 256
          %v1544 = vpop.permute.xlu0 %1543
          %v1545 = vlaneseq
          %v1546 = vshrl.u32 %v1545, 7
          %v1547 = vsub.s32 1, %v1546
          %v1548 = vrot.slane %v1537, %v1547
          %1550 = vbcast.lane.b32.xlu0 %v1548, 256
          %v1551 = vpop.permute.xlu0 %1550
          %v1552 = vmul.f32 %v1544, %v1323
          %v1553 = vmul.f32 %v1551, %v1324
          %v1554 = vsel %vm1347, %v1552, 0.0
          %v1555 = vrot.slane %v1554, 4
          %v1556 = vadd.f32 %v1554, %v1555
          %v1557 = vrot.slane %v1556, 2
          %v1558 = vadd.f32 %v1556, %v1557
          %v1559 = vrot.slane %v1558, 1
          %v1560 = vadd.f32 %v1558, %v1559
          %v1561 = vsel %vm1347, %v1553, 0.0
          %v1562 = vrot.slane %v1561, 4
          %v1563 = vadd.f32 %v1561, %v1562
          %v1564 = vrot.slane %v1563, 2
          %v1565 = vadd.f32 %v1563, %v1564
          %v1566 = vrot.slane %v1565, 1
          %v1567 = vadd.f32 %v1565, %v1566
          %v1570 = vsel %vm1522, %v1567, %v1560
          %vm1572 = vcmask 254976
          %1573 = vst.msk [vmem:[#allocation35] sm:$0x3] %vm1572, %v1570
          %1574 = vst.msk [vmem:[#allocation38] sm:$0x3] %vm1526, %v1537
          %v1575 = vld [vmem:[#allocation14] sm:$0x3]
          %v1576 = vpack.c.bf16 %v1575, %v1575
          %v1577 = vld [vmem:[#allocation20] sm:$0xf]
          %v1578 = vld [vmem:[#allocation20 + $0x4] sm:$0xf]
          %v1579 = vld [vmem:[#allocation20 + $0x8] sm:$0xf]
          %v1580 = vld [vmem:[#allocation20 + $0xc] sm:$0xf]
          %v1581 = vld [vmem:[#allocation21] sm:$0x1]
          %v1583 = vlaneseq
          %v1584 = vshrl.u32 %v1583, 7
          %v1585 = vsub.s32 0, %v1584
          %v1586 = vrot.slane %v1581, %v1585
          %v1592 = vunpack.c.l.b16 %v1577
          %v1593 = vunpack.c.l.b16 %v1578
          %v1594 = vunpack.c.l.b16 %v1579
          %v1595 = vunpack.c.l.b16 %v1580
          %v1596 = vpack.c.b16 %v1593, %v1592
          %v1597 = vpack.c.b16 %v1595, %v1594
          %v1601 = vsel %vm1347, %v1576, 0
          %1603 = vmatprep.subr.bf16.mxu0 0
          %1604 = vmatpush1.bf16.msra.mxu0 0
          %1605 = vmatprep.subr.bf16.mxu0 0
          %1606 = vmatpush1.bf16.msra.mxu0 0
          %1607 = vmatprep.subr.bf16.mxu0 0
          %1608 = vmatpush1.bf16.msra.mxu0 0
          %1609 = vmatprep.subr.bf16.mxu0 0
          %1610 = vmatpush1.bf16.msra.mxu0 0
          %1611 = vmatprep.subr.bf16.mxu0 0
          %1612 = vmatpush1.bf16.msra.mxu0 0
          %1613 = vmatprep.subr.bf16.mxu0 0
          %1614 = vmatpush1.bf16.msra.mxu0 0
          %1615 = vmatprep.subr.bf16.mxu0 0
          %1616 = vmatpush1.bf16.msra.mxu0 %v1597
          %1617 = vmatprep.subr.bf16.mxu0 0
          %1618 = vmatpush1.bf16.msra.mxu0 %v1596
          %1619 = vmatprep.subr.bf16.mxu0 0
          %1620 = vmatpush2.bf16.msra.mxu0 0
          %1621 = vmatprep.subr.bf16.mxu0 0
          %1622 = vmatpush2.bf16.msra.mxu0 0
          %1623 = vmatprep.subr.bf16.mxu0 0
          %1624 = vmatpush2.bf16.msra.mxu0 0
          %1625 = vmatprep.subr.bf16.mxu0 0
          %1626 = vmatpush2.bf16.msra.mxu0 0
          %1627 = vmatprep.subr.bf16.mxu0 0
          %1628 = vmatpush2.bf16.msra.mxu0 0
          %1629 = vmatprep.subr.bf16.mxu0 0
          %1630 = vmatpush2.bf16.msra.mxu0 0
          %1631 = vmatprep.subr.bf16.mxu0 0
          %1632 = vmatpush2.bf16.msra.mxu0 0
          %1633 = vmatprep.subr.bf16.mxu0 0
          %1634 = vmatpush2.bf16.msra.mxu0 0
          %1635 = vmatprep.mubr.bf16.mxu0 0
          %1636 = vmatmul.mubr.bf16.gmra.mxu0 %v1601
          %v1637 = vpop.f32.mrf.mxu0
          %v1638 = vadd.f32 %v1586, %v1637
          %v1639 = vpop.f32.mrf.mxu0
          %v1640 = vpop.f32.mrf.mxu0
          %v1641 = vpop.f32.mrf.mxu0
          %1642 = vdwg.mxu0
          %1643 = vst.msk [vmem:[#allocation2] sm:$0x3] %vm1572, %v1638
          %1644 = vst.msk [vmem:[#allocation3] sm:$0x3] %vm1572, 0.0
        $region204: #{tpu_custom_call.1} parent=127 // pred_fallthru
          _
        %v1645 = vld [vmem:[#allocation35] sm:$0x3]
        %v1646 = vld [vmem:[#allocation2] sm:$0x3]
        %v1647 = vld [vmem:[%s1176] sm:$0xf]
        %v1648 = vld [vmem:[%s1176 + $0x4] sm:$0xf]
        %v1649 = vld [vmem:[#allocation23] sm:$0xf]
        %v1650 = vld [vmem:[#allocation23 + $0x4] sm:$0xf]
        %v1651 = vld [vmem:[#allocation23 + $0x8] sm:$0xf]
        %v1652 = vld [vmem:[#allocation23 + $0xc] sm:$0xf]
        %v1653 = vld [vmem:[#allocation24] sm:$0x1]
        %v1655 = vlaneseq
        %v1656 = vshrl.u32 %v1655, 7
        %v1657 = vsub.s32 0, %v1656
        %v1658 = vrot.slane %v1653, %v1657
        %v1662 = vunpack.c.l.b16 %v1647
        %v1663 = vunpack.c.l.b16 %v1648
        %v1664 = vpack.c.b16 %v1663, %v1662
        %v1669 = vunpack.c.l.b16 %v1649
        %v1670 = vunpack.c.l.b16 %v1650
        %v1671 = vunpack.c.l.b16 %v1651
        %v1672 = vunpack.c.l.b16 %v1652
        %v1673 = vpack.c.b16 %v1670, %v1669
        %v1674 = vpack.c.b16 %v1672, %v1671
        %vm1677 = vcmask 261120
        %v1679 = vsel %vm1677, %v1664, 0
        %1681 = vmatprep.subr.bf16.mxu0 0
        %1682 = vmatpush1.bf16.msra.mxu0 0
        %1683 = vmatprep.subr.bf16.mxu0 0
        %1684 = vmatpush1.bf16.msra.mxu0 0
        %1685 = vmatprep.subr.bf16.mxu0 0
        %1686 = vmatpush1.bf16.msra.mxu0 0
        %1687 = vmatprep.subr.bf16.mxu0 0
        %1688 = vmatpush1.bf16.msra.mxu0 0
        %1689 = vmatprep.subr.bf16.mxu0 0
        %1690 = vmatpush1.bf16.msra.mxu0 0
        %1691 = vmatprep.subr.bf16.mxu0 0
        %1692 = vmatpush1.bf16.msra.mxu0 0
        %1693 = vmatprep.subr.bf16.mxu0 0
        %1694 = vmatpush1.bf16.msra.mxu0 %v1674
        %1695 = vmatprep.subr.bf16.mxu0 0
        %1696 = vmatpush1.bf16.msra.mxu0 %v1673
        %1697 = vmatprep.subr.bf16.mxu0 0
        %1698 = vmatpush2.bf16.msra.mxu0 0
        %1699 = vmatprep.subr.bf16.mxu0 0
        %1700 = vmatpush2.bf16.msra.mxu0 0
        %1701 = vmatprep.subr.bf16.mxu0 0
        %1702 = vmatpush2.bf16.msra.mxu0 0
        %1703 = vmatprep.subr.bf16.mxu0 0
        %1704 = vmatpush2.bf16.msra.mxu0 0
        %1705 = vmatprep.subr.bf16.mxu0 0
        %1706 = vmatpush2.bf16.msra.mxu0 0
        %1707 = vmatprep.subr.bf16.mxu0 0
        %1708 = vmatpush2.bf16.msra.mxu0 0
        %1709 = vmatprep.subr.bf16.mxu0 0
        %1710 = vmatpush2.bf16.msra.mxu0 0
        %1711 = vmatprep.subr.bf16.mxu0 0
        %1712 = vmatpush2.bf16.msra.mxu0 0
        %1713 = vmatprep.mubr.bf16.mxu0 0
        %1714 = vmatmul.mubr.bf16.gmra.mxu0 %v1679
        %v1715 = vpop.f32.mrf.mxu0
        %v1716 = vadd.f32 %v1658, %v1715
        %v1717 = vpop.f32.mrf.mxu0
        %v1718 = vpop.f32.mrf.mxu0
        %v1719 = vadd.f32 %v1658, %v1718
        %v1720 = vpop.f32.mrf.mxu0
        %1721 = vdwg.mxu0
        %v1722 = vld [vmem:[#allocation27] sm:$0xf]
        %v1723 = vld [vmem:[#allocation27 + $0x4] sm:$0xf]
        %v1724 = vld [vmem:[#allocation27 + $0x8] sm:$0xf]
        %v1725 = vld [vmem:[#allocation27 + $0xc] sm:$0xf]
        %v1726 = vld [vmem:[#allocation29] sm:$0x1]
        %v1728 = vlaneseq
        %v1729 = vshrl.u32 %v1728, 7
        %v1730 = vsub.s32 0, %v1729
        %v1731 = vrot.slane %v1726, %v1730
        %v1737 = vunpack.c.l.b16 %v1722
        %v1738 = vunpack.c.l.b16 %v1723
        %v1739 = vunpack.c.l.b16 %v1724
        %v1740 = vunpack.c.l.b16 %v1725
        %v1741 = vpack.c.b16 %v1738, %v1737
        %v1742 = vpack.c.b16 %v1740, %v1739
        %1745 = vmatprep.subr.bf16.mxu0 0
        %1746 = vmatpush1.bf16.msra.mxu0 0
        %1747 = vmatprep.subr.bf16.mxu0 0
        %1748 = vmatpush1.bf16.msra.mxu0 0
        %1749 = vmatprep.subr.bf16.mxu0 0
        %1750 = vmatpush1.bf16.msra.mxu0 0
        %1751 = vmatprep.subr.bf16.mxu0 0
        %1752 = vmatpush1.bf16.msra.mxu0 0
        %1753 = vmatprep.subr.bf16.mxu0 0
        %1754 = vmatpush1.bf16.msra.mxu0 0
        %1755 = vmatprep.subr.bf16.mxu0 0
        %1756 = vmatpush1.bf16.msra.mxu0 0
        %1757 = vmatprep.subr.bf16.mxu0 0
        %1758 = vmatpush1.bf16.msra.mxu0 %v1742
        %1759 = vmatprep.subr.bf16.mxu0 0
        %1760 = vmatpush1.bf16.msra.mxu0 %v1741
        %1761 = vmatprep.subr.bf16.mxu0 0
        %1762 = vmatpush2.bf16.msra.mxu0 0
        %1763 = vmatprep.subr.bf16.mxu0 0
        %1764 = vmatpush2.bf16.msra.mxu0 0
        %1765 = vmatprep.subr.bf16.mxu0 0
        %1766 = vmatpush2.bf16.msra.mxu0 0
        %1767 = vmatprep.subr.bf16.mxu0 0
        %1768 = vmatpush2.bf16.msra.mxu0 0
        %1769 = vmatprep.subr.bf16.mxu0 0
        %1770 = vmatpush2.bf16.msra.mxu0 0
        %1771 = vmatprep.subr.bf16.mxu0 0
        %1772 = vmatpush2.bf16.msra.mxu0 0
        %1773 = vmatprep.subr.bf16.mxu0 0
        %1774 = vmatpush2.bf16.msra.mxu0 0
        %1775 = vmatprep.subr.bf16.mxu0 0
        %1776 = vmatpush2.bf16.msra.mxu0 0
        %1777 = vmatprep.mubr.bf16.mxu0 0
        %1778 = vmatmul.mubr.bf16.gmra.mxu0 %v1679
        %v1779 = vpop.f32.mrf.mxu0
        %v1780 = vadd.f32 %v1731, %v1779
        %v1781 = vpop.f32.mrf.mxu0
        %v1782 = vpop.f32.mrf.mxu0
        %v1783 = vadd.f32 %v1731, %v1782
        %v1784 = vpop.f32.mrf.mxu0
        %1785 = vdwg.mxu0
        %v1788 = vunpack.c.l.s4 1966171168
        %v1789 = vunpack.c.0.s8 %v1788
        %v1790 = vlaneseq
        %v1791 = vshrl.u32 %v1790, 7
        %v1792 = vsub.s32 %v1789, %v1791
        %v1793 = vrot.slane %v1646, %v1792
        %v1794 = vcombine.high %v1793, %v1793
        %v1796 = vunpack.c.l.s4 1966171168
        %v1797 = vunpack.c.0.s8 %v1796
        %v1798 = vlaneseq
        %v1799 = vshrl.u32 %v1798, 7
        %v1800 = vsub.s32 %v1797, %v1799
        %v1801 = vrot.slane %v1793, %v1800
        %v1803 = vunpack.c.l.s4 1966171168
        %v1804 = vunpack.c.0.s8 %v1803
        %v1805 = vlaneseq
        %v1806 = vshrl.u32 %v1805, 7
        %v1807 = vsub.s32 %v1804, %v1806
        %v1808 = vrot.slane %v1794, %v1807
        %v1809 = vlaneseq
        %v1810 = vshrl.u32 %v1809, 7
        %v1811 = vsub.s32 0, %v1810
        %v1812 = vrot.slane %v1801, %v1811
        %v1813 = vlaneseq
        %v1814 = vshrl.u32 %v1813, 7
        %v1815 = vsub.s32 0, %v1814
        %v1816 = vrot.slane %v1808, %v1815
        %v1819 = vmul.f32 %v1812, %v1716
        %v1820 = vmul.f32 %v1816, %v1719
        %v1821 = vpack.c.bf16 %v1820, %v1819
        %v1822 = vld [vmem:[#allocation26] sm:$0xf]
        %v1823 = vld [vmem:[#allocation26 + $0x4] sm:$0xf]
        %v1824 = vld [vmem:[#allocation26 + $0x8] sm:$0xf]
        %v1825 = vld [vmem:[#allocation26 + $0xc] sm:$0xf]
        %v1830 = vunpack.c.l.b16 %v1822
        %v1831 = vunpack.c.l.b16 %v1823
        %v1832 = vunpack.c.l.b16 %v1824
        %v1833 = vunpack.c.l.b16 %v1825
        %v1834 = vpack.c.b16 %v1831, %v1830
        %v1835 = vpack.c.b16 %v1833, %v1832
        %v1839 = vsel %vm1677, %v1821, 0
        %1841 = vmatprep.subr.bf16.mxu0 0
        %1842 = vmatpush1.bf16.msra.mxu0 0
        %1843 = vmatprep.subr.bf16.mxu0 0
        %1844 = vmatpush1.bf16.msra.mxu0 0
        %1845 = vmatprep.subr.bf16.mxu0 0
        %1846 = vmatpush1.bf16.msra.mxu0 0
        %1847 = vmatprep.subr.bf16.mxu0 0
        %1848 = vmatpush1.bf16.msra.mxu0 0
        %1849 = vmatprep.subr.bf16.mxu0 0
        %1850 = vmatpush1.bf16.msra.mxu0 0
        %1851 = vmatprep.subr.bf16.mxu0 0
        %1852 = vmatpush1.bf16.msra.mxu0 0
        %1853 = vmatprep.subr.bf16.mxu0 0
        %1854 = vmatpush1.bf16.msra.mxu0 %v1835
        %1855 = vmatprep.subr.bf16.mxu0 0
        %1856 = vmatpush1.bf16.msra.mxu0 %v1834
        %1857 = vmatprep.subr.bf16.mxu0 0
        %1858 = vmatpush2.bf16.msra.mxu0 0
        %1859 = vmatprep.subr.bf16.mxu0 0
        %1860 = vmatpush2.bf16.msra.mxu0 0
        %1861 = vmatprep.subr.bf16.mxu0 0
        %1862 = vmatpush2.bf16.msra.mxu0 0
        %1863 = vmatprep.subr.bf16.mxu0 0
        %1864 = vmatpush2.bf16.msra.mxu0 0
        %1865 = vmatprep.subr.bf16.mxu0 0
        %1866 = vmatpush2.bf16.msra.mxu0 0
        %1867 = vmatprep.subr.bf16.mxu0 0
        %1868 = vmatpush2.bf16.msra.mxu0 0
        %1869 = vmatprep.subr.bf16.mxu0 0
        %1870 = vmatpush2.bf16.msra.mxu0 0
        %1871 = vmatprep.subr.bf16.mxu0 0
        %1872 = vmatpush2.bf16.msra.mxu0 0
        %1873 = vmatprep.mubr.bf16.mxu0 0
        %1874 = vmatmul.mubr.bf16.gmra.mxu0 %v1839
        %v1875 = vpop.f32.mrf.mxu0
        %v1876 = vadd.f32 %v1780, %v1875
        %v1877 = vpop.f32.mrf.mxu0
        %v1878 = vpop.f32.mrf.mxu0
        %v1879 = vadd.f32 %v1783, %v1878
        %v1880 = vpop.f32.mrf.mxu0
        %1881 = vdwg.mxu0
        %v1884 = vunpack.c.l.s4 1966171168
        %v1885 = vunpack.c.0.s8 %v1884
        %v1886 = vlaneseq
        %v1887 = vshrl.u32 %v1886, 7
        %v1888 = vsub.s32 %v1885, %v1887
        %v1889 = vrot.slane %v1645, %v1888
        %v1890 = vcombine.high %v1889, %v1889
        %v1892 = vunpack.c.l.s4 1966171168
        %v1893 = vunpack.c.0.s8 %v1892
        %v1894 = vlaneseq
        %v1895 = vshrl.u32 %v1894, 7
        %v1896 = vsub.s32 %v1893, %v1895
        %v1897 = vrot.slane %v1889, %v1896
        %v1899 = vunpack.c.l.s4 1966171168
        %v1900 = vunpack.c.0.s8 %v1899
        %v1901 = vlaneseq
        %v1902 = vshrl.u32 %v1901, 7
        %v1903 = vsub.s32 %v1900, %v1902
        %v1904 = vrot.slane %v1890, %v1903
        %v1905 = vlaneseq
        %v1906 = vshrl.u32 %v1905, 7
        %v1907 = vsub.s32 0, %v1906
        %v1908 = vrot.slane %v1897, %v1907
        %v1909 = vlaneseq
        %v1910 = vshrl.u32 %v1909, 7
        %v1911 = vsub.s32 0, %v1910
        %v1912 = vrot.slane %v1904, %v1911
        %v1915 = vmul.f32 %v1876, %v1908
        %v1916 = vmul.f32 %v1879, %v1912
        %v1917 = vpack.c.bf16 %v1916, %v1915
        %v1918 = vld [vmem:[%s37] sm:$0xf]
        %v1919 = vld [vmem:[%s37 + $0x4] sm:$0xf]
        %v1920 = vld [vmem:[%s37 + $0x8] sm:$0xf]
        %v1921 = vld [vmem:[%s37 + $0xc] sm:$0xf]
        %v1922 = vld [vmem:[%s39] sm:$0x1]
        %v1924 = vlaneseq
        %v1925 = vshrl.u32 %v1924, 7
        %v1926 = vsub.s32 0, %v1925
        %v1927 = vrot.slane %v1922, %v1926
        %v1933 = vunpack.c.l.b16 %v1918
        %v1934 = vunpack.c.l.b16 %v1919
        %v1935 = vunpack.c.l.b16 %v1920
        %v1936 = vunpack.c.l.b16 %v1921
        %v1937 = vpack.c.b16 %v1934, %v1933
        %v1938 = vpack.c.b16 %v1936, %v1935
        %v1942 = vsel %vm1677, %v1917, 0
        %1944 = vmatprep.subr.bf16.mxu0 0
        %1945 = vmatpush1.bf16.msra.mxu0 0
        %1946 = vmatprep.subr.bf16.mxu0 0
        %1947 = vmatpush1.bf16.msra.mxu0 0
        %1948 = vmatprep.subr.bf16.mxu0 0
        %1949 = vmatpush1.bf16.msra.mxu0 0
        %1950 = vmatprep.subr.bf16.mxu0 0
        %1951 = vmatpush1.bf16.msra.mxu0 0
        %1952 = vmatprep.subr.bf16.mxu0 0
        %1953 = vmatpush1.bf16.msra.mxu0 0
        %1954 = vmatprep.subr.bf16.mxu0 0
        %1955 = vmatpush1.bf16.msra.mxu0 0
        %1956 = vmatprep.subr.bf16.mxu0 0
        %1957 = vmatpush1.bf16.msra.mxu0 %v1938
        %1958 = vmatprep.subr.bf16.mxu0 0
        %1959 = vmatpush1.bf16.msra.mxu0 %v1937
        %1960 = vmatprep.subr.bf16.mxu0 0
        %1961 = vmatpush2.bf16.msra.mxu0 0
        %1962 = vmatprep.subr.bf16.mxu0 0
        %1963 = vmatpush2.bf16.msra.mxu0 0
        %1964 = vmatprep.subr.bf16.mxu0 0
        %1965 = vmatpush2.bf16.msra.mxu0 0
        %1966 = vmatprep.subr.bf16.mxu0 0
        %1967 = vmatpush2.bf16.msra.mxu0 0
        %1968 = vmatprep.subr.bf16.mxu0 0
        %1969 = vmatpush2.bf16.msra.mxu0 0
        %1970 = vmatprep.subr.bf16.mxu0 0
        %1971 = vmatpush2.bf16.msra.mxu0 0
        %1972 = vmatprep.subr.bf16.mxu0 0
        %1973 = vmatpush2.bf16.msra.mxu0 0
        %1974 = vmatprep.subr.bf16.mxu0 0
        %1975 = vmatpush2.bf16.msra.mxu0 0
        %1976 = vmatprep.mubr.bf16.mxu0 0
        %1977 = vmatmul.mubr.bf16.gmra.mxu0 %v1942
        %v1978 = vpop.f32.mrf.mxu0
        %v1979 = vadd.f32 %v1927, %v1978
        %v1980 = vpop.f32.mrf.mxu0
        %v1981 = vpop.f32.mrf.mxu0
        %v1982 = vadd.f32 %v1927, %v1981
        %v1983 = vpop.f32.mrf.mxu0
        %1984 = vdwg.mxu0
        %v1985 = vsel %vm1677, %v1979, -inf
        %1986 = vmax.xlane.f32.xlu0 %v1985
        %v1987 = vpop.xlane.xlu0 %1986
        %v1988 = vsel %vm1677, %v1982, -inf
        %1989 = vmax.xlane.f32.xlu0 %v1988
        %v1990 = vpop.xlane.xlu0 %1989
        %v1991 = vsub.f32 %v1979, %v1987
        %v1992 = vsub.f32 %v1982, %v1990
        %v1993 = vmul.f32 %v1991, 1.442695
        %v1994 = vpow.pop %v1993
        %v1995 = vmul.f32 %v1992, 1.442695
        %v1996 = vpow.pop %v1995
        %v1997 = vsel %vm1677, %v1994, 0.0
        %1998 = vadd.xlane.f32.xlu0 %v1997
        %v1999 = vpop.xlane.xlu0 %1998
        %v2000 = vsel %vm1677, %v1996, 0.0
        %2001 = vadd.xlane.f32.xlu0 %v2000
        %v2002 = vpop.xlane.xlu0 %2001
        %v2003 = vrcp.pop %v1999
        %v2004 = vrcp.pop %v2002
        %v2005 = vmul.f32 %v1994, %v2003
        %v2006 = vmul.f32 %v1996, %v2004
        %v2007 = vpack.c.bf16 %v2005, %v2005
        %v2008 = vpack.c.bf16 %v2006, %v2006
        %vm2009 = vcmask 257024
        %2010 = vst.msk [vmem:[%s1300] sm:$0xf] %vm2009, %v2007
        %2011 = vst.msk [vmem:[%s1300 + $0x4] sm:$0xf] %vm2009, %v2008
        %v2012 = vld [vmem:[#allocation3] sm:$0x3]
        %v2013 = vunpack.c.l.bf16 %v1647
        %v2014 = vunpack.c.l.bf16 %v1648
        %v2015 = vmul.f32 %v2005, %v2013
        %v2016 = vmul.f32 %v2006, %v2014
        %v2017 = vsel %vm1677, %v2015, 0.0
        %v2018 = vrot.slane %v2017, 4
        %v2019 = vadd.f32 %v2017, %v2018
        %v2020 = vrot.slane %v2019, 2
        %v2021 = vadd.f32 %v2019, %v2020
        %v2022 = vrot.slane %v2021, 1
        %v2023 = vadd.f32 %v2021, %v2022
        %v2024 = vsel %vm1677, %v2016, 0.0
        %v2025 = vrot.slane %v2024, 4
        %v2026 = vadd.f32 %v2024, %v2025
        %v2027 = vrot.slane %v2026, 2
        %v2028 = vadd.f32 %v2026, %v2027
        %v2029 = vrot.slane %v2028, 1
        %v2030 = vadd.f32 %v2028, %v2029
        %vm2033 = vcmask 1041409
        %v2034 = vsel %vm2033, %v2030, %v2023
        %v2036 = vadd.f32 %v2012, %v2034
        %vm2037 = vcmask 254976
        %2038 = vst.msk [vmem:[#allocation3] sm:$0x3] %vm2037, %v2036
        %p2039 = scmp.eq.s32.totalorder %s101, 1
        // Predicated region
        $region205: #{tpu_custom_call.1} parent=127 // pred_check
          %p2040 = pneg %p2039
        $region206: #{tpu_custom_call.1} parent=127 // pred_check_branch
          %2042 = sbr.rel (%p2040) target = $region208
        $region207: #{tpu_custom_call.1} parent=127 // pred_region
          %v2043 = vld [vmem:[#allocation3] sm:$0x3]
          %v2044 = vld [vmem:[#allocation14] sm:$0x3]
          %v2045 = vld [vmem:[#allocation35] sm:$0x3]
          %v2046 = vpack.c.bf16 %v2043, %v2043
          %v2047 = vld [vmem:[#allocation30] sm:$0xf]
          %v2048 = vld [vmem:[#allocation30 + $0x4] sm:$0xf]
          %v2049 = vld [vmem:[#allocation30 + $0x8] sm:$0xf]
          %v2050 = vld [vmem:[#allocation30 + $0xc] sm:$0xf]
          %v2051 = vpack.c.bf16 %v2044, %v2044
          %v2052 = vld [vmem:[#allocation32] sm:$0xf]
          %v2053 = vld [vmem:[#allocation32 + $0x4] sm:$0xf]
          %v2054 = vld [vmem:[#allocation32 + $0x8] sm:$0xf]
          %v2055 = vld [vmem:[#allocation32 + $0xc] sm:$0xf]
          %v2060 = vunpack.c.l.b16 %v2052
          %v2061 = vunpack.c.l.b16 %v2053
          %v2062 = vunpack.c.l.b16 %v2054
          %v2063 = vunpack.c.l.b16 %v2055
          %v2064 = vpack.c.b16 %v2061, %v2060
          %v2065 = vpack.c.b16 %v2063, %v2062
          %v2069 = vsel %vm1677, %v2051, 0
          %2071 = vmatprep.subr.bf16.mxu0 0
          %2072 = vmatpush1.bf16.msra.mxu0 0
          %2073 = vmatprep.subr.bf16.mxu0 0
          %2074 = vmatpush1.bf16.msra.mxu0 0
          %2075 = vmatprep.subr.bf16.mxu0 0
          %2076 = vmatpush1.bf16.msra.mxu0 0
          %2077 = vmatprep.subr.bf16.mxu0 0
          %2078 = vmatpush1.bf16.msra.mxu0 0
          %2079 = vmatprep.subr.bf16.mxu0 0
          %2080 = vmatpush1.bf16.msra.mxu0 0
          %2081 = vmatprep.subr.bf16.mxu0 0
          %2082 = vmatpush1.bf16.msra.mxu0 0
          %2083 = vmatprep.subr.bf16.mxu0 0
          %2084 = vmatpush1.bf16.msra.mxu0 %v2065
          %2085 = vmatprep.subr.bf16.mxu0 0
          %2086 = vmatpush1.bf16.msra.mxu0 %v2064
          %2087 = vmatprep.subr.bf16.mxu0 0
          %2088 = vmatpush2.bf16.msra.mxu0 0
          %2089 = vmatprep.subr.bf16.mxu0 0
          %2090 = vmatpush2.bf16.msra.mxu0 0
          %2091 = vmatprep.subr.bf16.mxu0 0
          %2092 = vmatpush2.bf16.msra.mxu0 0
          %2093 = vmatprep.subr.bf16.mxu0 0
          %2094 = vmatpush2.bf16.msra.mxu0 0
          %2095 = vmatprep.subr.bf16.mxu0 0
          %2096 = vmatpush2.bf16.msra.mxu0 0
          %2097 = vmatprep.subr.bf16.mxu0 0
          %2098 = vmatpush2.bf16.msra.mxu0 0
          %2099 = vmatprep.subr.bf16.mxu0 0
          %2100 = vmatpush2.bf16.msra.mxu0 0
          %2101 = vmatprep.subr.bf16.mxu0 0
          %2102 = vmatpush2.bf16.msra.mxu0 0
          %2103 = vmatprep.mubr.bf16.mxu0 0
          %2104 = vmatmul.mubr.bf16.gmra.mxu0 %v2069
          %v2105 = vpop.f32.mrf.mxu0
          %v2106 = vadd.f32 0.0, %v2105
          %v2107 = vpop.f32.mrf.mxu0
          %v2108 = vpop.f32.mrf.mxu0
          %v2109 = vpop.f32.mrf.mxu0
          %2110 = vdwg.mxu0
          %v2115 = vunpack.c.l.b16 %v2047
          %v2116 = vunpack.c.l.b16 %v2048
          %v2117 = vunpack.c.l.b16 %v2049
          %v2118 = vunpack.c.l.b16 %v2050
          %v2119 = vpack.c.b16 %v2116, %v2115
          %v2120 = vpack.c.b16 %v2118, %v2117
          %v2124 = vsel %vm1677, %v2046, 0
          %2126 = vmatprep.subr.bf16.mxu0 0
          %2127 = vmatpush1.bf16.msra.mxu0 0
          %2128 = vmatprep.subr.bf16.mxu0 0
          %2129 = vmatpush1.bf16.msra.mxu0 0
          %2130 = vmatprep.subr.bf16.mxu0 0
          %2131 = vmatpush1.bf16.msra.mxu0 0
          %2132 = vmatprep.subr.bf16.mxu0 0
          %2133 = vmatpush1.bf16.msra.mxu0 0
          %2134 = vmatprep.subr.bf16.mxu0 0
          %2135 = vmatpush1.bf16.msra.mxu0 0
          %2136 = vmatprep.subr.bf16.mxu0 0
          %2137 = vmatpush1.bf16.msra.mxu0 0
          %2138 = vmatprep.subr.bf16.mxu0 0
          %2139 = vmatpush1.bf16.msra.mxu0 %v2120
          %2140 = vmatprep.subr.bf16.mxu0 0
          %2141 = vmatpush1.bf16.msra.mxu0 %v2119
          %2142 = vmatprep.subr.bf16.mxu0 0
          %2143 = vmatpush2.bf16.msra.mxu0 0
          %2144 = vmatprep.subr.bf16.mxu0 0
          %2145 = vmatpush2.bf16.msra.mxu0 0
          %2146 = vmatprep.subr.bf16.mxu0 0
          %2147 = vmatpush2.bf16.msra.mxu0 0
          %2148 = vmatprep.subr.bf16.mxu0 0
          %2149 = vmatpush2.bf16.msra.mxu0 0
          %2150 = vmatprep.subr.bf16.mxu0 0
          %2151 = vmatpush2.bf16.msra.mxu0 0
          %2152 = vmatprep.subr.bf16.mxu0 0
          %2153 = vmatpush2.bf16.msra.mxu0 0
          %2154 = vmatprep.subr.bf16.mxu0 0
          %2155 = vmatpush2.bf16.msra.mxu0 0
          %2156 = vmatprep.subr.bf16.mxu0 0
          %2157 = vmatpush2.bf16.msra.mxu0 0
          %2158 = vmatprep.mubr.bf16.mxu0 0
          %2159 = vmatmul.mubr.bf16.gmra.mxu0 %v2124
          %v2160 = vpop.f32.mrf.mxu0
          %v2161 = vadd.f32 %v2106, %v2160
          %v2162 = vpop.f32.mrf.mxu0
          %v2163 = vpop.f32.mrf.mxu0
          %v2164 = vpop.f32.mrf.mxu0
          %2165 = vdwg.mxu0
          %v2166 = vld [vmem:[%s45] sm:$0x1]
          %v2168 = vlaneseq
          %v2169 = vshrl.u32 %v2168, 7
          %v2170 = vsub.s32 0, %v2169
          %v2171 = vrot.slane %v2166, %v2170
          %v2173 = vadd.f32 %v2161, %v2171
          %v2174 = vpack.c.bf16 %v2173, %v2173
          %v2175 = vld [vmem:[#allocation33] sm:$0xf]
          %v2176 = vld [vmem:[#allocation33 + $0x4] sm:$0xf]
          %v2177 = vld [vmem:[#allocation33 + $0x8] sm:$0xf]
          %v2178 = vld [vmem:[#allocation33 + $0xc] sm:$0xf]
          %v2179 = vld [vmem:[%s49] sm:$0x1]
          %v2181 = vlaneseq
          %v2182 = vshrl.u32 %v2181, 7
          %v2183 = vsub.s32 0, %v2182
          %v2184 = vrot.slane %v2179, %v2183
          %v2190 = vunpack.c.l.b16 %v2175
          %v2191 = vunpack.c.l.b16 %v2176
          %v2192 = vunpack.c.l.b16 %v2177
          %v2193 = vunpack.c.l.b16 %v2178
          %v2194 = vpack.c.b16 %v2191, %v2190
          %v2195 = vpack.c.b16 %v2193, %v2192
          %v2199 = vsel %vm1677, %v2174, 0
          %2201 = vmatprep.subr.bf16.mxu0 0
          %2202 = vmatpush1.bf16.msra.mxu0 0
          %2203 = vmatprep.subr.bf16.mxu0 0
          %2204 = vmatpush1.bf16.msra.mxu0 0
          %2205 = vmatprep.subr.bf16.mxu0 0
          %2206 = vmatpush1.bf16.msra.mxu0 0
          %2207 = vmatprep.subr.bf16.mxu0 0
          %2208 = vmatpush1.bf16.msra.mxu0 0
          %2209 = vmatprep.subr.bf16.mxu0 0
          %2210 = vmatpush1.bf16.msra.mxu0 0
          %2211 = vmatprep.subr.bf16.mxu0 0
          %2212 = vmatpush1.bf16.msra.mxu0 0
          %2213 = vmatprep.subr.bf16.mxu0 0
          %2214 = vmatpush1.bf16.msra.mxu0 %v2195
          %2215 = vmatprep.subr.bf16.mxu0 0
          %2216 = vmatpush1.bf16.msra.mxu0 %v2194
          %2217 = vmatprep.subr.bf16.mxu0 0
          %2218 = vmatpush2.bf16.msra.mxu0 0
          %2219 = vmatprep.subr.bf16.mxu0 0
          %2220 = vmatpush2.bf16.msra.mxu0 0
          %2221 = vmatprep.subr.bf16.mxu0 0
          %2222 = vmatpush2.bf16.msra.mxu0 0
          %2223 = vmatprep.subr.bf16.mxu0 0
          %2224 = vmatpush2.bf16.msra.mxu0 0
          %2225 = vmatprep.subr.bf16.mxu0 0
          %2226 = vmatpush2.bf16.msra.mxu0 0
          %2227 = vmatprep.subr.bf16.mxu0 0
          %2228 = vmatpush2.bf16.msra.mxu0 0
          %2229 = vmatprep.subr.bf16.mxu0 0
          %2230 = vmatpush2.bf16.msra.mxu0 0
          %2231 = vmatprep.subr.bf16.mxu0 0
          %2232 = vmatpush2.bf16.msra.mxu0 0
          %2233 = vmatprep.mubr.bf16.mxu0 0
          %2234 = vmatmul.mubr.bf16.gmra.mxu0 %v2199
          %v2235 = vpop.f32.mrf.mxu0
          %v2236 = vadd.f32 %v2184, %v2235
          %v2237 = vpop.f32.mrf.mxu0
          %v2238 = vpop.f32.mrf.mxu0
          %v2239 = vpop.f32.mrf.mxu0
          %2240 = vdwg.mxu0
          %v2241 = vld [vmem:[%s51] sm:$0x1]
          %v2243 = vlaneseq
          %v2244 = vshrl.u32 %v2243, 7
          %v2245 = vsub.s32 0, %v2244
          %v2246 = vrot.slane %v2241, %v2245
          %v2248 = vmul.f32 %v2045, %v2246
          %v2249 = vsel %vm2037, %v2248, 0.0
          %2250 = vadd.xlane.f32.xlu0 %v2249
          %v2251 = vpop.xlane.xlu0 %2250
          %s2252 = sld [smem:[#allocation5]]
          %v2253 = vstv %s2252
          %v2254 = vadd.f32 %v2251, %v2253
          %v2255 = vxor.u32 %v2254, 2147483648
          %v2256 = vmul.f32 %v2255, 1.442695
          %v2257 = vpow.pop %v2256
          %v2258 = vadd.f32 %v2257, 1.0
          %v2259 = vrcp.pop %v2258
          %v2260 = vmul.f32 1.0, %v2259
          %v2261 = vmul.f32 %v2260, %v2044
          %v2262 = vsub.f32 1.0, %v2260
          %v2263 = vmul.f32 %v2262, %v2236
          %v2264 = vadd.f32 %v2261, %v2263
          %2265 = vst.msk [vmem:[#allocation36] sm:$0x3] %vm2037, %v2264
          %vm2266 = vcmask 1024
          %2267 = vst.msk [vmem:[%s1315] sm:$0x3] %vm2266, %v2260
          %2268 = vst.msk [vmem:[#allocation41] sm:$0x3] %vm2037, %v2236
        $region208: #{tpu_custom_call.1} parent=127 // pred_fallthru
          _
        %s2269 = sand.u32 %s96, 1
        %s2270 = scalar_lea.sflag [#allocation40], %s2269
        %s2271 = sand.u32 %s795, 1
        %s2272 = smul.addr %s2271, 8
        %s2273 = scalar_lea.vmem [#allocation39], %s2272
        %p2274 = scmp.lt.s32.totalorder %s100, 0
        %s2275 = scalar_select %p2274, %s100, 0
        %s2276 = smul.addr %s2275, 2
        %s2277 = scalar_lea.vmem %s63, %s2276
        // Predicated region
        $region209: #{tpu_custom_call.1} parent=127 // pred_check
          %p2278 = pneg %p725
        $region210: #{tpu_custom_call.1} parent=127 // pred_check_branch
          %2280 = sbr.rel (%p2278) target = $region212
        $region211: #{tpu_custom_call.1} parent=127 // pred_region
          %s2282 = ssub.s32 32, 32
          %2283 = vsyncadd [#allocation8], %s2282
          %s2284 = smul.addr %s100, 32
          %s2285 = scalar_lea.hbm %s55, %s2284
          %s2287 = sshll.u32 [#allocation35], 4
          %s2288 = int_to_ptr.vmem [resolvable:$true] %s2287
          %2290 = dma.vmem_to_hbm [thread:$0]  %s2288, 32, %s2285, [#allocation8]
        $region212: #{tpu_custom_call.1} parent=127 // pred_fallthru
          _
        // Predicated region
        $region213: #{tpu_custom_call.1} parent=127 // pred_check
          %p2291 = pneg %p751
        $region214: #{tpu_custom_call.1} parent=127 // pred_check_branch
          %2293 = sbr.rel (%p2291) target = $region216
        $region215: #{tpu_custom_call.1} parent=127 // pred_region
          %s2295 = ssub.s32 32, 32
          %2296 = vsyncadd [#allocation37], %s2295
          %s2297 = smul.addr %s100, 32
          %s2298 = scalar_lea.hbm %s57, %s2297
          %s2300 = sshll.u32 [#allocation36], 4
          %s2301 = int_to_ptr.vmem [resolvable:$true] %s2300
          %2303 = dma.vmem_to_hbm [thread:$0]  %s2301, 32, %s2298, [#allocation37]
        $region216: #{tpu_custom_call.1} parent=127 // pred_fallthru
          _
        // Predicated region
        $region217: #{tpu_custom_call.1} parent=127 // pred_check
          %p2304 = pneg %p777
        $region218: #{tpu_custom_call.1} parent=127 // pred_check_branch
          %2306 = sbr.rel (%p2304) target = $region220
        $region219: #{tpu_custom_call.1} parent=127 // pred_region
          %s2308 = ssub.s32 32, 32
          %2309 = vsyncadd [#allocation37], %s2308
          %s2310 = smul.addr %s100, 32
          %s2311 = scalar_lea.hbm %s59, %s2310
          %s2313 = sshll.u32 [#allocation38], 4
          %s2314 = int_to_ptr.vmem [resolvable:$true] %s2313
          %2316 = dma.vmem_to_hbm [thread:$0]  %s2314, 32, %s2311, [#allocation37]
        $region220: #{tpu_custom_call.1} parent=127 // pred_fallthru
          _
        // Predicated region
        $region221: #{tpu_custom_call.1} parent=127 // pred_check
          %p2317 = pneg %p805
        $region222: #{tpu_custom_call.1} parent=127 // pred_check_branch
          %2319 = sbr.rel (%p2317) target = $region224
        $region223: #{tpu_custom_call.1} parent=127 // pred_region
          %s2320 = smul.u32 2, %s100
          %s2322 = ssub.s32 128, 128
          %2323 = vsyncadd %s2270, %s2322
          %s2324 = smul.addr %s2320, 2
          %s2325 = sadd.s32 %s101, %s2324
          %s2326 = smul.addr %s2325, 64
          %s2327 = scalar_lea.hbm %s61, %s2326
          %s2328 = sshll.u32 %s2273, 4
          %s2329 = int_to_ptr.vmem [resolvable:$true] %s2328
          %2334 = dma.vmem_to_hbm [thread:$0]  %s2329, 128, %s2327, %s2270, 64, 128, 4
        $region224: #{tpu_custom_call.1} parent=127 // pred_fallthru
          _
        // Predicated region
        $region225: #{tpu_custom_call.1} parent=127 // pred_check
          %p2335 = pneg %p831
        $region226: #{tpu_custom_call.1} parent=127 // pred_check_branch
          %2337 = sbr.rel (%p2335) target = $region228
        $region227: #{tpu_custom_call.1} parent=127 // pred_region
          _
        $region228: #{tpu_custom_call.1} parent=127 // pred_fallthru
          _
        // Predicated region
        $region229: #{tpu_custom_call.1} parent=127 // pred_check
          %p2338 = pneg %p857
        $region230: #{tpu_custom_call.1} parent=127 // pred_check_branch
          %2340 = sbr.rel (%p2338) target = $region232
        $region231: #{tpu_custom_call.1} parent=127 // pred_region
          %s2342 = ssub.s32 32, 32
          %2343 = vsyncadd [#allocation40], %s2342
          %s2344 = smul.addr %s100, 32
          %s2345 = scalar_lea.hbm %s65, %s2344
          %s2347 = sshll.u32 [#allocation41], 4
          %s2348 = int_to_ptr.vmem [resolvable:$true] %s2347
          %2350 = dma.vmem_to_hbm [thread:$0]  %s2348, 32, %s2345, [#allocation40]
        $region232: #{tpu_custom_call.1} parent=127 // pred_fallthru
          _
        // Predicated region
        $region233: #{tpu_custom_call.1} parent=127 // pred_check
          %p2351 = pneg %p725
        $region234: #{tpu_custom_call.1} parent=127 // pred_check_branch
          %2353 = sbr.rel (%p2351) target = $region236
        $region235: #{tpu_custom_call.1} parent=127 // pred_region
          %2354 = dma.done [#allocation8], 32
        $region236: #{tpu_custom_call.1} parent=127 // pred_fallthru
          _
        // Predicated region
        $region237: #{tpu_custom_call.1} parent=127 // pred_check
          %p2355 = pneg %p751
        $region238: #{tpu_custom_call.1} parent=127 // pred_check_branch
          %2357 = sbr.rel (%p2355) target = $region240
        $region239: #{tpu_custom_call.1} parent=127 // pred_region
          %2358 = dma.done [#allocation37], 32
        $region240: #{tpu_custom_call.1} parent=127 // pred_fallthru
          _
        // Predicated region
        $region241: #{tpu_custom_call.1} parent=127 // pred_check
          %p2359 = pneg %p777
        $region242: #{tpu_custom_call.1} parent=127 // pred_check_branch
          %2361 = sbr.rel (%p2359) target = $region244
        $region243: #{tpu_custom_call.1} parent=127 // pred_region
          %2362 = dma.done [#allocation37], 32
        $region244: #{tpu_custom_call.1} parent=127 // pred_fallthru
          _
        // Predicated region
        $region245: #{tpu_custom_call.1} parent=127 // pred_check
          %p2363 = pneg %p831
        $region246: #{tpu_custom_call.1} parent=127 // pred_check_branch
          %2365 = sbr.rel (%p2363) target = $region248
        $region247: #{tpu_custom_call.1} parent=127 // pred_region
          %p2366 = scmp.lt.s32.totalorder %s100, 0
          %s2367 = scalar_select %p2366, %s100, 0
          %s2368 = smul.addr %s2367, 2
          %s2369 = scalar_lea.vmem %s63, %s2368
        $region248: #{tpu_custom_call.1} parent=127 // pred_fallthru
          _
        // Predicated region
        $region249: #{tpu_custom_call.1} parent=127 // pred_check
          %p2370 = pneg %p857
        $region250: #{tpu_custom_call.1} parent=127 // pred_check_branch
          %2372 = sbr.rel (%p2370) target = $region252
        $region251: #{tpu_custom_call.1} parent=127 // pred_region
          %2373 = dma.done [#allocation40], 32
        $region252: #{tpu_custom_call.1} parent=127 // pred_fallthru
          _
      $region128: #{tpu_custom_call.1} parent=5 // pred_fallthru
        _
      %p2374 = scmp.le.s32.totalorder 2, %s91
      // Predicated region
      $region253: #{tpu_custom_call.1} parent=5 // pred_check
        %p2375 = pneg %p2374
      $region254: #{tpu_custom_call.1} parent=5 // pred_check_branch
        %2377 = sbr.rel (%p2375) target = $region256
      $region255: #{tpu_custom_call.1} parent=5 // pred_region
        %s2378 = ssub.s32 %s91, 2
        // Predicated region
        $region257: #{tpu_custom_call.1} parent=255 // pred_check
          %p2379 = pneg %p811
        $region258: #{tpu_custom_call.1} parent=255 // pred_check_branch
          %2381 = sbr.rel (%p2379) target = $region260
        $region259: #{tpu_custom_call.1} parent=255 // pred_region
          %s2382 = sand.u32 %s97, 1
          %s2383 = scalar_lea.sflag [#allocation40], %s2382
          %s2384 = sand.u32 %s796, 1
          %s2385 = smul.addr %s2384, 8
          %s2386 = scalar_lea.vmem [#allocation39], %s2385
          %2387 = dma.done %s2383, 128
        $region260: #{tpu_custom_call.1} parent=255 // pred_fallthru
          _
      $region256: #{tpu_custom_call.1} parent=5 // pred_fallthru
        _
    $region6: #{tpu_custom_call.1} parent=1 // loop_footer
      %s95 = sadd.s32 1, %s91
    $region7: #{tpu_custom_call.1} parent=1 // loop_footer_branch
      %90 = sbr.rel target = $region3
    $region8: #{tpu_custom_call.1} parent=1 // loop_exit
      _
    %2388 = vsyncpa [#allocation7], 1
    %s2389 = scalar_lea.sflag [#allocation7], 1
    %2390 = vsyncpa %s2389, 1
    %2391 = vsyncpa [#allocation10], 1
    %2392 = vsyncpa [#allocation13], 1
    %2393 = vsyncpa [#allocation16], 1
    %s2394 = scalar_lea.sflag [#allocation16], 1
    %2395 = vsyncpa %s2394, 1
    %2396 = vsyncpa [#allocation19], 1
    %2397 = vsyncpa [#allocation22], 1
    %2398 = vsyncpa [#allocation25], 1
    %2399 = vsyncpa [#allocation28], 1
    %2400 = vsyncpa [#allocation31], 1
    %2401 = vsyncpa [#allocation34], 1
    %2402 = vsyncpa [#allocation8], 1
    %s2403 = scalar_lea.sflag [#allocation8], 1
    %2404 = vsyncpa %s2403, 1
    %2405 = vsyncpa [#allocation37], 1
    %2406 = vsyncpa [#allocation40], 1
    %s2407 = scalar_lea.sflag [#allocation40], 1
    %2408 = vsyncpa %s2407, 1

</llo_original>
